<compile_context>
chip_gen: v7x
topology: tpu7x:2x2x1
jax: 0.10.0
libtpu: 0.0.40
codegen_flags: <defaults>
</compile_context>

<pallas_src>
import functools

import jax
import jax.numpy as jnp
import numpy as np
from jax.experimental import pallas as pl
from jax.experimental.pallas import tpu as pltpu

NUM_CONSONANT = 7
NUM_GRAPHEME_ROOT = 168
NUM_VOWEL = 11
NUM_OUT = NUM_GRAPHEME_ROOT + NUM_CONSONANT + NUM_VOWEL  # 186

GEM_EPS = 1e-6
KSIZE = 7
PAD = 3


# ----------------------------------------------------------------------------
# Pallas kernel: grid = (model,), one ensemble member per grid step.
# ----------------------------------------------------------------------------
def ensemble_kernel(img_idx_ref, img_ref, mask_ref, cw_ref, cb_ref, p_ref,
                    fw_ref, fb_ref, out_ref, pat_ref, *,
                    batch, height, width, wp, int_p, eps):
    """img_ref : (1, B, Hp*Wp) bf16   flattened zero-padded image (deduped)
       mask_ref: (1, L1) f32          1.0 on real pixels, 0.0 on Wp-stride pad
       cw_ref  : (1, C, 49) bf16      conv1 weights, tap order kh*7+kw
       cb_ref  : (1, C, 1) f32        conv1 bias
       p_ref   : (M,) f32 SMEM        learnable GeM p per model
       fw_ref  : (1, C, NOUT_PAD) bf16
       fb_ref  : (1, 1, NOUT_PAD) f32
       out_ref : (1, B, NOUT_PAD) f32 per-model logits (ensemble mean in XLA)
       pat_ref : VMEM scratch (49, L1) f32
    """
    del img_idx_ref  # only consumed by the index_maps
    m = pl.program_id(0)
    hw_total = height * width
    l1 = (height - 1) * wp + width

    cw = cw_ref[0]                                  # (C, 49) bf16
    cb = cb_ref[0]                                  # (C, 1)  f32
    fw = fw_ref[0].astype(jnp.float32)              # (C, NOUT_PAD)
    fbias = fb_ref[0]                               # (1, NOUT_PAD)
    mask = mask_ref[...]                            # (1, L1) f32
    p = p_ref[m]                                    # SMEM scalar
    inv_p = 1.0 / p

    for b in range(batch):
        # Build the 49-row patch matrix for batch b entirely in VMEM: row
        # k = kh*7+kw is the flat padded image shifted by kh*Wp + kw, so
        # lane q = y*Wp + x of the matmul output is conv1 at pixel (y, x).
        for kh in range(KSIZE):
            for kw in range(KSIZE):
                k = kh * KSIZE + kw
                off = kh * wp + kw
                pat_ref[k:k + 1, :] = (
                    img_ref[0, b:b + 1, off:off + l1].astype(jnp.float32))

        pat = pat_ref[...].astype(jnp.bfloat16)     # (49, L1) lane-dense

        # conv1 (7x7 / stride 1 / pad 3) as one bf16 MXU matmul.
        h = jnp.dot(cw, pat, preferred_element_type=jnp.float32)   # (C, L1)
        hc = jnp.maximum(h + cb, eps)               # fused ReLU + eps clamp

        # GeM power clamp(x, eps)^p: integer-p VPU fast path (init p=3).
        if int_p is not None:
            hp = hc
            for _ in range(int_p - 1):
                hp = hp * hc
        else:
            hp = jnp.exp(p * jnp.log(hc))           # generic (EUP) path

        hp = hp * mask                              # drop Wp-stride pad lanes
        pooled = jnp.sum(hp, axis=1, keepdims=True) * (1.0 / hw_total)  # (C,1)
        pooled = jnp.exp(jnp.log(pooled) * inv_p)   # ^(1/p); pooled >= eps^p

        # fc head: logits[o] = sum_c pooled[c] * fw[c, o]  (+ bias).
        logits = jnp.sum(pooled * fw, axis=0, keepdims=True) + fbias
        out_ref[0, b:b + 1, :] = logits             # (1, NOUT_PAD) lane-dense


# ----------------------------------------------------------------------------
# Wrapper.
# ----------------------------------------------------------------------------
def ensemble_forward(images, img_idx, conv_w, conv_b, gem_p, fc_w, fc_b):
    """images : (U, B, 1, H, W) f32   U unique input images (deduped)
       img_idx: (M,) int32            which unique image each model consumes
       conv_w : (M, 64, 1, 7, 7) f32  per-model conv1 weights (torch layout)
       conv_b : (M, 64) f32
       gem_p  : (M,) f32
       fc_w   : (M, 186, 64) f32      per-model fc weights (torch layout)
       fc_b   : (M, 186) f32
       returns: (B, 186) f32          mean of the per-model logits
    """
    U, B, _, H, W = images.shape
    M, C = conv_w.shape[0], conv_w.shape[1]
    K = KSIZE * KSIZE
    nout = fc_w.shape[1]
    Hp, Wp = H + 2 * PAD, W + 2 * PAD
    L1 = (H - 1) * Wp + W
    nout_pad = ((nout + 127) // 128) * 128          # 186 -> 256 lane-dense

    # Raw padded images, flattened spatial, bf16: no 49x im2col slab in HBM.
    imgs = jnp.pad(images[:, :, 0], ((0, 0), (0, 0), (PAD, PAD), (PAD, PAD)))
    imgs = imgs.reshape(U, B, Hp * Wp).astype(jnp.bfloat16)

    # Validity mask over the Wp-strided output lanes (keep x < W in each row).
    q = jnp.arange(L1, dtype=jnp.int32)
    mask = ((q % Wp) < W).astype(jnp.float32).reshape(1, L1)

    cw = conv_w.reshape(M, C, K).astype(jnp.bfloat16)
    cb = conv_b.reshape(M, C, 1).astype(jnp.float32)

    fw = jnp.zeros((M, C, nout_pad), jnp.bfloat16)
    fw = fw.at[:, :, :nout].set(
        jnp.transpose(fc_w, (0, 2, 1)).astype(jnp.bfloat16))
    fb = jnp.zeros((M, 1, nout_pad), jnp.float32)
    fb = fb.at[:, :, :nout].set(fc_b.reshape(M, 1, nout).astype(jnp.float32))

    # Integer-p fast path (GeM init p=3), chosen statically from the values.
    p_host = np.asarray(jax.device_get(gem_p), dtype=np.float64)
    int_p = None
    if p_host.size and np.all(np.abs(p_host - np.round(p_host[0])) < 1e-6):
        cand = int(round(float(p_host[0])))
        if 1 <= cand <= 8:
            int_p = cand

    kern = functools.partial(ensemble_kernel, batch=B, height=H, width=W,
                             wp=Wp, int_p=int_p, eps=GEM_EPS)

    out = pl.pallas_call(
        kern,
        out_shape=jax.ShapeDtypeStruct((M, B, nout_pad), jnp.float32),
        grid_spec=pltpu.PrefetchScalarGridSpec(
            num_scalar_prefetch=1,
            grid=(M,),
            in_specs=[
                pl.BlockSpec((1, B, Hp * Wp), lambda m, idx: (idx[m], 0, 0)),
                pl.BlockSpec((1, L1), lambda m, idx: (0, 0)),
                pl.BlockSpec((1, C, K), lambda m, idx: (m, 0, 0)),
                pl.BlockSpec((1, C, 1), lambda m, idx: (m, 0, 0)),
                pl.BlockSpec(memory_space=pltpu.MemorySpace.SMEM),
                pl.BlockSpec((1, C, nout_pad), lambda m, idx: (m, 0, 0)),
                pl.BlockSpec((1, 1, nout_pad), lambda m, idx: (m, 0, 0)),
            ],
            out_specs=pl.BlockSpec((1, B, nout_pad), lambda m, idx: (m, 0, 0)),
            scratch_shapes=[pltpu.VMEM((K, L1), jnp.float32)],
        ),
        compiler_params=pltpu.CompilerParams(
            dimension_semantics=("parallel",),
            vmem_limit_bytes=48 * 1024 * 1024),
    )(img_idx, imgs, mask, cw, cb, gem_p.astype(jnp.float32), fw, fb)

    return jnp.mean(out, axis=0)[:, :nout]


# ----------------------------------------------------------------------------
# Pure-JAX reference (mirrors the kernel math on the same bf16-rounded data).
# ----------------------------------------------------------------------------
def ref_forward(images, img_idx, conv_w, conv_b, gem_p, fc_w, fc_b):
    U, B, _, H, W = images.shape
    M, C = conv_w.shape[0], conv_w.shape[1]
    imgs = images.astype(jnp.bfloat16).astype(jnp.float32)
    xp = jnp.pad(imgs[:, :, 0], ((0, 0), (0, 0), (PAD, PAD), (PAD, PAD)))
    cols = []
    for kh in range(KSIZE):
        for kw in range(KSIZE):
            cols.append(xp[:, :, kh:kh + H, kw:kw + W])
    pat = jnp.stack(cols, axis=-1).reshape(U, B, H * W, KSIZE * KSIZE)

    idx = np.asarray(jax.device_get(img_idx))
    outs = []
    for m in range(M):
        u = int(idx[m])
        w = conv_w[m].reshape(C, -1).astype(jnp.bfloat16).astype(jnp.float32)
        h = jnp.einsum('bqk,ck->bqc', pat[u], w) + conv_b[m].reshape(1, 1, C)
        hc = jnp.maximum(h, GEM_EPS)                  # relu + clamp(min=eps)
        p = gem_p[m]
        pooled = jnp.mean(hc ** p, axis=1) ** (1.0 / p)          # (B, C)
        fwm = fc_w[m].astype(jnp.bfloat16).astype(jnp.float32)   # (nout, C)
        outs.append(pooled @ fwm.T + fc_b[m])
    return jnp.mean(jnp.stack(outs, 0), 0)


if __name__ == "__main__":
    # Small shapes consistent with the module: 1-channel grayscale images,
    # 64 stem channels, 186 output classes, 3 ensemble members.
    B, H, W = 2, 16, 16
    C_STEM = 64
    M = 3
    img_types = ['square_crop', 'raw', 'square_crop']

    key = jax.random.PRNGKey(0)
    k_raw, k_sq, k_cw, k_cb, k_fw, k_fb = jax.random.split(key, 6)

    img_raw = jax.random.normal(k_raw, (B, 1, H, W), jnp.float32)
    img_square = jax.random.normal(k_sq, (B, 1, H, W), jnp.float32)

    # Deduplicated unique-image stack + per-model index (scalar prefetch).
    unique = {'square_crop': 0, 'raw': 1}
    images = jnp.stack([img_square, img_raw], axis=0)        # (U, B, 1, H, W)
    img_idx = jnp.asarray([unique[t] for t in img_types], jnp.int32)

    # Deterministic synthetic parameters (per-model, torch layouts).
    conv_w = jax.random.normal(k_cw, (M, C_STEM, 1, 7, 7), jnp.float32) * 0.1
    conv_b = jax.random.normal(k_cb, (M, C_STEM), jnp.float32) * 0.01
    gem_p = jnp.full((M,), 3.0, jnp.float32)      # GeM p initialised to 3
    fc_w = jax.random.normal(k_fw, (M, NUM_OUT, C_STEM), jnp.float32) * 0.05
    fc_b = jax.random.normal(k_fb, (M, NUM_OUT), jnp.float32) * 0.01

    out = ensemble_forward(images, img_idx, conv_w, conv_b, gem_p, fc_w, fc_b)
    out = jax.block_until_ready(out)

    ref = jax.block_until_ready(
        ref_forward(images, img_idx, conv_w, conv_b, gem_p, fc_w, fc_b))
    np.testing.assert_allclose(np.asarray(out), np.asarray(ref),
                               rtol=1e-2, atol=1e-2)

    assert out.shape == (B, NUM_OUT)
    print("KERNEL_OK")
</pallas_src>

<mosaic_0001>
module attributes {stable_mosaic.version = 11 : i64} {
  func.func @ensemble_kernel(%arg0: i32, %arg1: memref<3xi32, #tpu.memory_space<smem>>, %arg2: memref<1x2x484xbf16, #tpu.memory_space<vmem>>, %arg3: memref<1x346xf32, #tpu.memory_space<vmem>>, %arg4: memref<1x64x49xbf16, #tpu.memory_space<vmem>>, %arg5: memref<1x64x1xf32, #tpu.memory_space<vmem>>, %arg6: memref<3xf32, #tpu.memory_space<smem>>, %arg7: memref<1x64x256xbf16, #tpu.memory_space<vmem>>, %arg8: memref<1x1x256xf32, #tpu.memory_space<vmem>>, %arg9: memref<1x2x256xf32, #tpu.memory_space<vmem>>, %arg10: memref<49x346xf32, #tpu.memory_space<vmem>>) attributes {dimension_semantics = [#tpu.dimension_semantics<parallel>], iteration_bounds = array<i64: 3>, scalar_prefetch = 1 : i64, scratch_operands = 1 : i64, tpu.core_type = #tpu.core_type<tc>, window_params = [{transform_indices = @transform_0, window_bounds = array<i64: 1, 2, 484>}, {pipeline_mode = #tpu.pipeline_mode<synchronous>, transform_indices = @transform_1, window_bounds = array<i64: 1, 346>}, {transform_indices = @transform_2, window_bounds = array<i64: 1, 64, 49>}, {transform_indices = @transform_3, window_bounds = array<i64: 1, 64, 1>}, {transform_indices = @transform_4, window_bounds = array<i64: 3>}, {transform_indices = @transform_5, window_bounds = array<i64: 1, 64, 256>}, {transform_indices = @transform_6, window_bounds = array<i64: 1, 1, 256>}, {transform_indices = @transform_7, window_bounds = array<i64: 1, 2, 256>}]} {
    %c0 = arith.constant 0 : index
    %c0_0 = arith.constant 0 : index
    %c0_1 = arith.constant 0 : index
    %0 = vector.load %arg4[%c0, %c0_0, %c0_1] : memref<1x64x49xbf16, #tpu.memory_space<vmem>>, vector<1x64x49xbf16>
    %1 = vector.shape_cast %0 : vector<1x64x49xbf16> to vector<64x49xbf16>
    %c0_2 = arith.constant 0 : index
    %c0_3 = arith.constant 0 : index
    %c0_4 = arith.constant 0 : index
    %2 = vector.load %arg5[%c0_2, %c0_3, %c0_4] : memref<1x64x1xf32, #tpu.memory_space<vmem>>, vector<1x64x1xf32>
    %3 = vector.shape_cast %2 : vector<1x64x1xf32> to vector<64x1xf32>
    %c0_5 = arith.constant 0 : index
    %c0_6 = arith.constant 0 : index
    %c0_7 = arith.constant 0 : index
    %4 = vector.load %arg7[%c0_5, %c0_6, %c0_7] : memref<1x64x256xbf16, #tpu.memory_space<vmem>>, vector<1x64x256xbf16>
    %5 = vector.shape_cast %4 : vector<1x64x256xbf16> to vector<64x256xbf16>
    %6 = arith.extf %5 : vector<64x256xbf16> to vector<64x256xf32>
    %c0_8 = arith.constant 0 : index
    %c0_9 = arith.constant 0 : index
    %c0_10 = arith.constant 0 : index
    %7 = vector.load %arg8[%c0_8, %c0_9, %c0_10] : memref<1x1x256xf32, #tpu.memory_space<vmem>>, vector<1x1x256xf32>
    %8 = vector.shape_cast %7 : vector<1x1x256xf32> to vector<1x256xf32>
    %c0_11 = arith.constant 0 : index
    %c0_12 = arith.constant 0 : index
    %9 = vector.load %arg3[%c0_11, %c0_12] : memref<1x346xf32, #tpu.memory_space<vmem>>, vector<1x346xf32>
    %10 = arith.index_cast %arg0 : i32 to index
    %11 = memref.load %arg6[%10] : memref<3xf32, #tpu.memory_space<smem>>
    %cst = arith.constant 1.000000e+00 : f32
    %12 = arith.divf %cst, %11 : f32
    %c0_13 = arith.constant 0 : index
    %c0_14 = arith.constant 0 : index
    %c0_15 = arith.constant 0 : index
    %13 = vector.load %arg2[%c0_13, %c0_14, %c0_15] : memref<1x2x484xbf16, #tpu.memory_space<vmem>>, vector<1x1x346xbf16>
    %14 = vector.shape_cast %13 : vector<1x1x346xbf16> to vector<1x346xbf16>
    %15 = arith.extf %14 : vector<1x346xbf16> to vector<1x346xf32>
    %c0_16 = arith.constant 0 : index
    %c0_17 = arith.constant 0 : index
    %16 = vector.load %arg10[%c0_16, %c0_17] : memref<49x346xf32, #tpu.memory_space<vmem>>, vector<1x346xf32>
    tpu.vector_store %arg10[%c0_16, %c0_17], %15 {strides = array<i32>} : memref<49x346xf32, #tpu.memory_space<vmem>>, vector<1x346xf32>,
    %c0_18 = arith.constant 0 : index
    %c0_19 = arith.constant 0 : index
    %c1 = arith.constant 1 : index
    %17 = vector.load %arg2[%c0_18, %c0_19, %c1] : memref<1x2x484xbf16, #tpu.memory_space<vmem>>, vector<1x1x346xbf16>
    %18 = vector.shape_cast %17 : vector<1x1x346xbf16> to vector<1x346xbf16>
    %19 = arith.extf %18 : vector<1x346xbf16> to vector<1x346xf32>
    %c1_20 = arith.constant 1 : index
    %c0_21 = arith.constant 0 : index
    %20 = vector.load %arg10[%c1_20, %c0_21] : memref<49x346xf32, #tpu.memory_space<vmem>>, vector<1x346xf32>
    tpu.vector_store %arg10[%c1_20, %c0_21], %19 {strides = array<i32>} : memref<49x346xf32, #tpu.memory_space<vmem>>, vector<1x346xf32>,
    %c0_22 = arith.constant 0 : index
    %c0_23 = arith.constant 0 : index
    %c2 = arith.constant 2 : index
    %21 = vector.load %arg2[%c0_22, %c0_23, %c2] : memref<1x2x484xbf16, #tpu.memory_space<vmem>>, vector<1x1x346xbf16>
    %22 = vector.shape_cast %21 : vector<1x1x346xbf16> to vector<1x346xbf16>
    %23 = arith.extf %22 : vector<1x346xbf16> to vector<1x346xf32>
    %c2_24 = arith.constant 2 : index
    %c0_25 = arith.constant 0 : index
    %24 = vector.load %arg10[%c2_24, %c0_25] : memref<49x346xf32, #tpu.memory_space<vmem>>, vector<1x346xf32>
    tpu.vector_store %arg10[%c2_24, %c0_25], %23 {strides = array<i32>} : memref<49x346xf32, #tpu.memory_space<vmem>>, vector<1x346xf32>,
    %c0_26 = arith.constant 0 : index
    %c0_27 = arith.constant 0 : index
    %c3 = arith.constant 3 : index
    %25 = vector.load %arg2[%c0_26, %c0_27, %c3] : memref<1x2x484xbf16, #tpu.memory_space<vmem>>, vector<1x1x346xbf16>
    %26 = vector.shape_cast %25 : vector<1x1x346xbf16> to vector<1x346xbf16>
    %27 = arith.extf %26 : vector<1x346xbf16> to vector<1x346xf32>
    %c3_28 = arith.constant 3 : index
    %c0_29 = arith.constant 0 : index
    %28 = vector.load %arg10[%c3_28, %c0_29] : memref<49x346xf32, #tpu.memory_space<vmem>>, vector<1x346xf32>
    tpu.vector_store %arg10[%c3_28, %c0_29], %27 {strides = array<i32>} : memref<49x346xf32, #tpu.memory_space<vmem>>, vector<1x346xf32>,
    %c0_30 = arith.constant 0 : index
    %c0_31 = arith.constant 0 : index
    %c4 = arith.constant 4 : index
    %29 = vector.load %arg2[%c0_30, %c0_31, %c4] : memref<1x2x484xbf16, #tpu.memory_space<vmem>>, vector<1x1x346xbf16>
    %30 = vector.shape_cast %29 : vector<1x1x346xbf16> to vector<1x346xbf16>
    %31 = arith.extf %30 : vector<1x346xbf16> to vector<1x346xf32>
    %c4_32 = arith.constant 4 : index
    %c0_33 = arith.constant 0 : index
    %32 = vector.load %arg10[%c4_32, %c0_33] : memref<49x346xf32, #tpu.memory_space<vmem>>, vector<1x346xf32>
    tpu.vector_store %arg10[%c4_32, %c0_33], %31 {strides = array<i32>} : memref<49x346xf32, #tpu.memory_space<vmem>>, vector<1x346xf32>,
    %c0_34 = arith.constant 0 : index
    %c0_35 = arith.constant 0 : index
    %c5 = arith.constant 5 : index
    %33 = vector.load %arg2[%c0_34, %c0_35, %c5] : memref<1x2x484xbf16, #tpu.memory_space<vmem>>, vector<1x1x346xbf16>
    %34 = vector.shape_cast %33 : vector<1x1x346xbf16> to vector<1x346xbf16>
    %35 = arith.extf %34 : vector<1x346xbf16> to vector<1x346xf32>
    %c5_36 = arith.constant 5 : index
    %c0_37 = arith.constant 0 : index
    %36 = vector.load %arg10[%c5_36, %c0_37] : memref<49x346xf32, #tpu.memory_space<vmem>>, vector<1x346xf32>
    tpu.vector_store %arg10[%c5_36, %c0_37], %35 {strides = array<i32>} : memref<49x346xf32, #tpu.memory_space<vmem>>, vector<1x346xf32>,
    %c0_38 = arith.constant 0 : index
    %c0_39 = arith.constant 0 : index
    %c6 = arith.constant 6 : index
    %37 = vector.load %arg2[%c0_38, %c0_39, %c6] : memref<1x2x484xbf16, #tpu.memory_space<vmem>>, vector<1x1x346xbf16>
    %38 = vector.shape_cast %37 : vector<1x1x346xbf16> to vector<1x346xbf16>
    %39 = arith.extf %38 : vector<1x346xbf16> to vector<1x346xf32>
    %c6_40 = arith.constant 6 : index
    %c0_41 = arith.constant 0 : index
    %40 = vector.load %arg10[%c6_40, %c0_41] : memref<49x346xf32, #tpu.memory_space<vmem>>, vector<1x346xf32>
    tpu.vector_store %arg10[%c6_40, %c0_41], %39 {strides = array<i32>} : memref<49x346xf32, #tpu.memory_space<vmem>>, vector<1x346xf32>,
    %c0_42 = arith.constant 0 : index
    %c0_43 = arith.constant 0 : index
    %c22 = arith.constant 22 : index
    %41 = vector.load %arg2[%c0_42, %c0_43, %c22] : memref<1x2x484xbf16, #tpu.memory_space<vmem>>, vector<1x1x346xbf16>
    %42 = vector.shape_cast %41 : vector<1x1x346xbf16> to vector<1x346xbf16>
    %43 = arith.extf %42 : vector<1x346xbf16> to vector<1x346xf32>
    %c7 = arith.constant 7 : index
    %c0_44 = arith.constant 0 : index
    %44 = vector.load %arg10[%c7, %c0_44] : memref<49x346xf32, #tpu.memory_space<vmem>>, vector<1x346xf32>
    tpu.vector_store %arg10[%c7, %c0_44], %43 {strides = array<i32>} : memref<49x346xf32, #tpu.memory_space<vmem>>, vector<1x346xf32>,
    %c0_45 = arith.constant 0 : index
    %c0_46 = arith.constant 0 : index
    %c23 = arith.constant 23 : index
    %45 = vector.load %arg2[%c0_45, %c0_46, %c23] : memref<1x2x484xbf16, #tpu.memory_space<vmem>>, vector<1x1x346xbf16>
    %46 = vector.shape_cast %45 : vector<1x1x346xbf16> to vector<1x346xbf16>
    %47 = arith.extf %46 : vector<1x346xbf16> to vector<1x346xf32>
    %c8 = arith.constant 8 : index
    %c0_47 = arith.constant 0 : index
    %48 = vector.load %arg10[%c8, %c0_47] : memref<49x346xf32, #tpu.memory_space<vmem>>, vector<1x346xf32>
    tpu.vector_store %arg10[%c8, %c0_47], %47 {strides = array<i32>} : memref<49x346xf32, #tpu.memory_space<vmem>>, vector<1x346xf32>,
    %c0_48 = arith.constant 0 : index
    %c0_49 = arith.constant 0 : index
    %c24 = arith.constant 24 : index
    %49 = vector.load %arg2[%c0_48, %c0_49, %c24] : memref<1x2x484xbf16, #tpu.memory_space<vmem>>, vector<1x1x346xbf16>
    %50 = vector.shape_cast %49 : vector<1x1x346xbf16> to vector<1x346xbf16>
    %51 = arith.extf %50 : vector<1x346xbf16> to vector<1x346xf32>
    %c9 = arith.constant 9 : index
    %c0_50 = arith.constant 0 : index
    %52 = vector.load %arg10[%c9, %c0_50] : memref<49x346xf32, #tpu.memory_space<vmem>>, vector<1x346xf32>
    tpu.vector_store %arg10[%c9, %c0_50], %51 {strides = array<i32>} : memref<49x346xf32, #tpu.memory_space<vmem>>, vector<1x346xf32>,
    %c0_51 = arith.constant 0 : index
    %c0_52 = arith.constant 0 : index
    %c25 = arith.constant 25 : index
    %53 = vector.load %arg2[%c0_51, %c0_52, %c25] : memref<1x2x484xbf16, #tpu.memory_space<vmem>>, vector<1x1x346xbf16>
    %54 = vector.shape_cast %53 : vector<1x1x346xbf16> to vector<1x346xbf16>
    %55 = arith.extf %54 : vector<1x346xbf16> to vector<1x346xf32>
    %c10 = arith.constant 10 : index
    %c0_53 = arith.constant 0 : index
    %56 = vector.load %arg10[%c10, %c0_53] : memref<49x346xf32, #tpu.memory_space<vmem>>, vector<1x346xf32>
    tpu.vector_store %arg10[%c10, %c0_53], %55 {strides = array<i32>} : memref<49x346xf32, #tpu.memory_space<vmem>>, vector<1x346xf32>,
    %c0_54 = arith.constant 0 : index
    %c0_55 = arith.constant 0 : index
    %c26 = arith.constant 26 : index
    %57 = vector.load %arg2[%c0_54, %c0_55, %c26] : memref<1x2x484xbf16, #tpu.memory_space<vmem>>, vector<1x1x346xbf16>
    %58 = vector.shape_cast %57 : vector<1x1x346xbf16> to vector<1x346xbf16>
    %59 = arith.extf %58 : vector<1x346xbf16> to vector<1x346xf32>
    %c11 = arith.constant 11 : index
    %c0_56 = arith.constant 0 : index
    %60 = vector.load %arg10[%c11, %c0_56] : memref<49x346xf32, #tpu.memory_space<vmem>>, vector<1x346xf32>
    tpu.vector_store %arg10[%c11, %c0_56], %59 {strides = array<i32>} : memref<49x346xf32, #tpu.memory_space<vmem>>, vector<1x346xf32>,
    %c0_57 = arith.constant 0 : index
    %c0_58 = arith.constant 0 : index
    %c27 = arith.constant 27 : index
    %61 = vector.load %arg2[%c0_57, %c0_58, %c27] : memref<1x2x484xbf16, #tpu.memory_space<vmem>>, vector<1x1x346xbf16>
    %62 = vector.shape_cast %61 : vector<1x1x346xbf16> to vector<1x346xbf16>
    %63 = arith.extf %62 : vector<1x346xbf16> to vector<1x346xf32>
    %c12 = arith.constant 12 : index
    %c0_59 = arith.constant 0 : index
    %64 = vector.load %arg10[%c12, %c0_59] : memref<49x346xf32, #tpu.memory_space<vmem>>, vector<1x346xf32>
    tpu.vector_store %arg10[%c12, %c0_59], %63 {strides = array<i32>} : memref<49x346xf32, #tpu.memory_space<vmem>>, vector<1x346xf32>,
    %c0_60 = arith.constant 0 : index
    %c0_61 = arith.constant 0 : index
    %c28 = arith.constant 28 : index
    %65 = vector.load %arg2[%c0_60, %c0_61, %c28] : memref<1x2x484xbf16, #tpu.memory_space<vmem>>, vector<1x1x346xbf16>
    %66 = vector.shape_cast %65 : vector<1x1x346xbf16> to vector<1x346xbf16>
    %67 = arith.extf %66 : vector<1x346xbf16> to vector<1x346xf32>
    %c13 = arith.constant 13 : index
    %c0_62 = arith.constant 0 : index
    %68 = vector.load %arg10[%c13, %c0_62] : memref<49x346xf32, #tpu.memory_space<vmem>>, vector<1x346xf32>
    tpu.vector_store %arg10[%c13, %c0_62], %67 {strides = array<i32>} : memref<49x346xf32, #tpu.memory_space<vmem>>, vector<1x346xf32>,
    %c0_63 = arith.constant 0 : index
    %c0_64 = arith.constant 0 : index
    %c44 = arith.constant 44 : index
    %69 = vector.load %arg2[%c0_63, %c0_64, %c44] : memref<1x2x484xbf16, #tpu.memory_space<vmem>>, vector<1x1x346xbf16>
    %70 = vector.shape_cast %69 : vector<1x1x346xbf16> to vector<1x346xbf16>
    %71 = arith.extf %70 : vector<1x346xbf16> to vector<1x346xf32>
    %c14 = arith.constant 14 : index
    %c0_65 = arith.constant 0 : index
    %72 = vector.load %arg10[%c14, %c0_65] : memref<49x346xf32, #tpu.memory_space<vmem>>, vector<1x346xf32>
    tpu.vector_store %arg10[%c14, %c0_65], %71 {strides = array<i32>} : memref<49x346xf32, #tpu.memory_space<vmem>>, vector<1x346xf32>,
    %c0_66 = arith.constant 0 : index
    %c0_67 = arith.constant 0 : index
    %c45 = arith.constant 45 : index
    %73 = vector.load %arg2[%c0_66, %c0_67, %c45] : memref<1x2x484xbf16, #tpu.memory_space<vmem>>, vector<1x1x346xbf16>
    %74 = vector.shape_cast %73 : vector<1x1x346xbf16> to vector<1x346xbf16>
    %75 = arith.extf %74 : vector<1x346xbf16> to vector<1x346xf32>
    %c15 = arith.constant 15 : index
    %c0_68 = arith.constant 0 : index
    %76 = vector.load %arg10[%c15, %c0_68] : memref<49x346xf32, #tpu.memory_space<vmem>>, vector<1x346xf32>
    tpu.vector_store %arg10[%c15, %c0_68], %75 {strides = array<i32>} : memref<49x346xf32, #tpu.memory_space<vmem>>, vector<1x346xf32>,
    %c0_69 = arith.constant 0 : index
    %c0_70 = arith.constant 0 : index
    %c46 = arith.constant 46 : index
    %77 = vector.load %arg2[%c0_69, %c0_70, %c46] : memref<1x2x484xbf16, #tpu.memory_space<vmem>>, vector<1x1x346xbf16>
    %78 = vector.shape_cast %77 : vector<1x1x346xbf16> to vector<1x346xbf16>
    %79 = arith.extf %78 : vector<1x346xbf16> to vector<1x346xf32>
    %c16 = arith.constant 16 : index
    %c0_71 = arith.constant 0 : index
    %80 = vector.load %arg10[%c16, %c0_71] : memref<49x346xf32, #tpu.memory_space<vmem>>, vector<1x346xf32>
    tpu.vector_store %arg10[%c16, %c0_71], %79 {strides = array<i32>} : memref<49x346xf32, #tpu.memory_space<vmem>>, vector<1x346xf32>,
    %c0_72 = arith.constant 0 : index
    %c0_73 = arith.constant 0 : index
    %c47 = arith.constant 47 : index
    %81 = vector.load %arg2[%c0_72, %c0_73, %c47] : memref<1x2x484xbf16, #tpu.memory_space<vmem>>, vector<1x1x346xbf16>
    %82 = vector.shape_cast %81 : vector<1x1x346xbf16> to vector<1x346xbf16>
    %83 = arith.extf %82 : vector<1x346xbf16> to vector<1x346xf32>
    %c17 = arith.constant 17 : index
    %c0_74 = arith.constant 0 : index
    %84 = vector.load %arg10[%c17, %c0_74] : memref<49x346xf32, #tpu.memory_space<vmem>>, vector<1x346xf32>
    tpu.vector_store %arg10[%c17, %c0_74], %83 {strides = array<i32>} : memref<49x346xf32, #tpu.memory_space<vmem>>, vector<1x346xf32>,
    %c0_75 = arith.constant 0 : index
    %c0_76 = arith.constant 0 : index
    %c48 = arith.constant 48 : index
    %85 = vector.load %arg2[%c0_75, %c0_76, %c48] : memref<1x2x484xbf16, #tpu.memory_space<vmem>>, vector<1x1x346xbf16>
    %86 = vector.shape_cast %85 : vector<1x1x346xbf16> to vector<1x346xbf16>
    %87 = arith.extf %86 : vector<1x346xbf16> to vector<1x346xf32>
    %c18 = arith.constant 18 : index
    %c0_77 = arith.constant 0 : index
    %88 = vector.load %arg10[%c18, %c0_77] : memref<49x346xf32, #tpu.memory_space<vmem>>, vector<1x346xf32>
    tpu.vector_store %arg10[%c18, %c0_77], %87 {strides = array<i32>} : memref<49x346xf32, #tpu.memory_space<vmem>>, vector<1x346xf32>,
    %c0_78 = arith.constant 0 : index
    %c0_79 = arith.constant 0 : index
    %c49 = arith.constant 49 : index
    %89 = vector.load %arg2[%c0_78, %c0_79, %c49] : memref<1x2x484xbf16, #tpu.memory_space<vmem>>, vector<1x1x346xbf16>
    %90 = vector.shape_cast %89 : vector<1x1x346xbf16> to vector<1x346xbf16>
    %91 = arith.extf %90 : vector<1x346xbf16> to vector<1x346xf32>
    %c19 = arith.constant 19 : index
    %c0_80 = arith.constant 0 : index
    %92 = vector.load %arg10[%c19, %c0_80] : memref<49x346xf32, #tpu.memory_space<vmem>>, vector<1x346xf32>
    tpu.vector_store %arg10[%c19, %c0_80], %91 {strides = array<i32>} : memref<49x346xf32, #tpu.memory_space<vmem>>, vector<1x346xf32>,
    %c0_81 = arith.constant 0 : index
    %c0_82 = arith.constant 0 : index
    %c50 = arith.constant 50 : index
    %93 = vector.load %arg2[%c0_81, %c0_82, %c50] : memref<1x2x484xbf16, #tpu.memory_space<vmem>>, vector<1x1x346xbf16>
    %94 = vector.shape_cast %93 : vector<1x1x346xbf16> to vector<1x346xbf16>
    %95 = arith.extf %94 : vector<1x346xbf16> to vector<1x346xf32>
    %c20 = arith.constant 20 : index
    %c0_83 = arith.constant 0 : index
    %96 = vector.load %arg10[%c20, %c0_83] : memref<49x346xf32, #tpu.memory_space<vmem>>, vector<1x346xf32>
    tpu.vector_store %arg10[%c20, %c0_83], %95 {strides = array<i32>} : memref<49x346xf32, #tpu.memory_space<vmem>>, vector<1x346xf32>,
    %c0_84 = arith.constant 0 : index
    %c0_85 = arith.constant 0 : index
    %c66 = arith.constant 66 : index
    %97 = vector.load %arg2[%c0_84, %c0_85, %c66] : memref<1x2x484xbf16, #tpu.memory_space<vmem>>, vector<1x1x346xbf16>
    %98 = vector.shape_cast %97 : vector<1x1x346xbf16> to vector<1x346xbf16>
    %99 = arith.extf %98 : vector<1x346xbf16> to vector<1x346xf32>
    %c21 = arith.constant 21 : index
    %c0_86 = arith.constant 0 : index
    %100 = vector.load %arg10[%c21, %c0_86] : memref<49x346xf32, #tpu.memory_space<vmem>>, vector<1x346xf32>
    tpu.vector_store %arg10[%c21, %c0_86], %99 {strides = array<i32>} : memref<49x346xf32, #tpu.memory_space<vmem>>, vector<1x346xf32>,
    %c0_87 = arith.constant 0 : index
    %c0_88 = arith.constant 0 : index
    %c67 = arith.constant 67 : index
    %101 = vector.load %arg2[%c0_87, %c0_88, %c67] : memref<1x2x484xbf16, #tpu.memory_space<vmem>>, vector<1x1x346xbf16>
    %102 = vector.shape_cast %101 : vector<1x1x346xbf16> to vector<1x346xbf16>
    %103 = arith.extf %102 : vector<1x346xbf16> to vector<1x346xf32>
    %c22_89 = arith.constant 22 : index
    %c0_90 = arith.constant 0 : index
    %104 = vector.load %arg10[%c22_89, %c0_90] : memref<49x346xf32, #tpu.memory_space<vmem>>, vector<1x346xf32>
    tpu.vector_store %arg10[%c22_89, %c0_90], %103 {strides = array<i32>} : memref<49x346xf32, #tpu.memory_space<vmem>>, vector<1x346xf32>,
    %c0_91 = arith.constant 0 : index
    %c0_92 = arith.constant 0 : index
    %c68 = arith.constant 68 : index
    %105 = vector.load %arg2[%c0_91, %c0_92, %c68] : memref<1x2x484xbf16, #tpu.memory_space<vmem>>, vector<1x1x346xbf16>
    %106 = vector.shape_cast %105 : vector<1x1x346xbf16> to vector<1x346xbf16>
    %107 = arith.extf %106 : vector<1x346xbf16> to vector<1x346xf32>
    %c23_93 = arith.constant 23 : index
    %c0_94 = arith.constant 0 : index
    %108 = vector.load %arg10[%c23_93, %c0_94] : memref<49x346xf32, #tpu.memory_space<vmem>>, vector<1x346xf32>
    tpu.vector_store %arg10[%c23_93, %c0_94], %107 {strides = array<i32>} : memref<49x346xf32, #tpu.memory_space<vmem>>, vector<1x346xf32>,
    %c0_95 = arith.constant 0 : index
    %c0_96 = arith.constant 0 : index
    %c69 = arith.constant 69 : index
    %109 = vector.load %arg2[%c0_95, %c0_96, %c69] : memref<1x2x484xbf16, #tpu.memory_space<vmem>>, vector<1x1x346xbf16>
    %110 = vector.shape_cast %109 : vector<1x1x346xbf16> to vector<1x346xbf16>
    %111 = arith.extf %110 : vector<1x346xbf16> to vector<1x346xf32>
    %c24_97 = arith.constant 24 : index
    %c0_98 = arith.constant 0 : index
    %112 = vector.load %arg10[%c24_97, %c0_98] : memref<49x346xf32, #tpu.memory_space<vmem>>, vector<1x346xf32>
    tpu.vector_store %arg10[%c24_97, %c0_98], %111 {strides = array<i32>} : memref<49x346xf32, #tpu.memory_space<vmem>>, vector<1x346xf32>,
    %c0_99 = arith.constant 0 : index
    %c0_100 = arith.constant 0 : index
    %c70 = arith.constant 70 : index
    %113 = vector.load %arg2[%c0_99, %c0_100, %c70] : memref<1x2x484xbf16, #tpu.memory_space<vmem>>, vector<1x1x346xbf16>
    %114 = vector.shape_cast %113 : vector<1x1x346xbf16> to vector<1x346xbf16>
    %115 = arith.extf %114 : vector<1x346xbf16> to vector<1x346xf32>
    %c25_101 = arith.constant 25 : index
    %c0_102 = arith.constant 0 : index
    %116 = vector.load %arg10[%c25_101, %c0_102] : memref<49x346xf32, #tpu.memory_space<vmem>>, vector<1x346xf32>
    tpu.vector_store %arg10[%c25_101, %c0_102], %115 {strides = array<i32>} : memref<49x346xf32, #tpu.memory_space<vmem>>, vector<1x346xf32>,
    %c0_103 = arith.constant 0 : index
    %c0_104 = arith.constant 0 : index
    %c71 = arith.constant 71 : index
    %117 = vector.load %arg2[%c0_103, %c0_104, %c71] : memref<1x2x484xbf16, #tpu.memory_space<vmem>>, vector<1x1x346xbf16>
    %118 = vector.shape_cast %117 : vector<1x1x346xbf16> to vector<1x346xbf16>
    %119 = arith.extf %118 : vector<1x346xbf16> to vector<1x346xf32>
    %c26_105 = arith.constant 26 : index
    %c0_106 = arith.constant 0 : index
    %120 = vector.load %arg10[%c26_105, %c0_106] : memref<49x346xf32, #tpu.memory_space<vmem>>, vector<1x346xf32>
    tpu.vector_store %arg10[%c26_105, %c0_106], %119 {strides = array<i32>} : memref<49x346xf32, #tpu.memory_space<vmem>>, vector<1x346xf32>,
    %c0_107 = arith.constant 0 : index
    %c0_108 = arith.constant 0 : index
    %c72 = arith.constant 72 : index
    %121 = vector.load %arg2[%c0_107, %c0_108, %c72] : memref<1x2x484xbf16, #tpu.memory_space<vmem>>, vector<1x1x346xbf16>
    %122 = vector.shape_cast %121 : vector<1x1x346xbf16> to vector<1x346xbf16>
    %123 = arith.extf %122 : vector<1x346xbf16> to vector<1x346xf32>
    %c27_109 = arith.constant 27 : index
    %c0_110 = arith.constant 0 : index
    %124 = vector.load %arg10[%c27_109, %c0_110] : memref<49x346xf32, #tpu.memory_space<vmem>>, vector<1x346xf32>
    tpu.vector_store %arg10[%c27_109, %c0_110], %123 {strides = array<i32>} : memref<49x346xf32, #tpu.memory_space<vmem>>, vector<1x346xf32>,
    %c0_111 = arith.constant 0 : index
    %c0_112 = arith.constant 0 : index
    %c88 = arith.constant 88 : index
    %125 = vector.load %arg2[%c0_111, %c0_112, %c88] : memref<1x2x484xbf16, #tpu.memory_space<vmem>>, vector<1x1x346xbf16>
    %126 = vector.shape_cast %125 : vector<1x1x346xbf16> to vector<1x346xbf16>
    %127 = arith.extf %126 : vector<1x346xbf16> to vector<1x346xf32>
    %c28_113 = arith.constant 28 : index
    %c0_114 = arith.constant 0 : index
    %128 = vector.load %arg10[%c28_113, %c0_114] : memref<49x346xf32, #tpu.memory_space<vmem>>, vector<1x346xf32>
    tpu.vector_store %arg10[%c28_113, %c0_114], %127 {strides = array<i32>} : memref<49x346xf32, #tpu.memory_space<vmem>>, vector<1x346xf32>,
    %c0_115 = arith.constant 0 : index
    %c0_116 = arith.constant 0 : index
    %c89 = arith.constant 89 : index
    %129 = vector.load %arg2[%c0_115, %c0_116, %c89] : memref<1x2x484xbf16, #tpu.memory_space<vmem>>, vector<1x1x346xbf16>
    %130 = vector.shape_cast %129 : vector<1x1x346xbf16> to vector<1x346xbf16>
    %131 = arith.extf %130 : vector<1x346xbf16> to vector<1x346xf32>
    %c29 = arith.constant 29 : index
    %c0_117 = arith.constant 0 : index
    %132 = vector.load %arg10[%c29, %c0_117] : memref<49x346xf32, #tpu.memory_space<vmem>>, vector<1x346xf32>
    tpu.vector_store %arg10[%c29, %c0_117], %131 {strides = array<i32>} : memref<49x346xf32, #tpu.memory_space<vmem>>, vector<1x346xf32>,
    %c0_118 = arith.constant 0 : index
    %c0_119 = arith.constant 0 : index
    %c90 = arith.constant 90 : index
    %133 = vector.load %arg2[%c0_118, %c0_119, %c90] : memref<1x2x484xbf16, #tpu.memory_space<vmem>>, vector<1x1x346xbf16>
    %134 = vector.shape_cast %133 : vector<1x1x346xbf16> to vector<1x346xbf16>
    %135 = arith.extf %134 : vector<1x346xbf16> to vector<1x346xf32>
    %c30 = arith.constant 30 : index
    %c0_120 = arith.constant 0 : index
    %136 = vector.load %arg10[%c30, %c0_120] : memref<49x346xf32, #tpu.memory_space<vmem>>, vector<1x346xf32>
    tpu.vector_store %arg10[%c30, %c0_120], %135 {strides = array<i32>} : memref<49x346xf32, #tpu.memory_space<vmem>>, vector<1x346xf32>,
    %c0_121 = arith.constant 0 : index
    %c0_122 = arith.constant 0 : index
    %c91 = arith.constant 91 : index
    %137 = vector.load %arg2[%c0_121, %c0_122, %c91] : memref<1x2x484xbf16, #tpu.memory_space<vmem>>, vector<1x1x346xbf16>
    %138 = vector.shape_cast %137 : vector<1x1x346xbf16> to vector<1x346xbf16>
    %139 = arith.extf %138 : vector<1x346xbf16> to vector<1x346xf32>
    %c31 = arith.constant 31 : index
    %c0_123 = arith.constant 0 : index
    %140 = vector.load %arg10[%c31, %c0_123] : memref<49x346xf32, #tpu.memory_space<vmem>>, vector<1x346xf32>
    tpu.vector_store %arg10[%c31, %c0_123], %139 {strides = array<i32>} : memref<49x346xf32, #tpu.memory_space<vmem>>, vector<1x346xf32>,
    %c0_124 = arith.constant 0 : index
    %c0_125 = arith.constant 0 : index
    %c92 = arith.constant 92 : index
    %141 = vector.load %arg2[%c0_124, %c0_125, %c92] : memref<1x2x484xbf16, #tpu.memory_space<vmem>>, vector<1x1x346xbf16>
    %142 = vector.shape_cast %141 : vector<1x1x346xbf16> to vector<1x346xbf16>
    %143 = arith.extf %142 : vector<1x346xbf16> to vector<1x346xf32>
    %c32 = arith.constant 32 : index
    %c0_126 = arith.constant 0 : index
    %144 = vector.load %arg10[%c32, %c0_126] : memref<49x346xf32, #tpu.memory_space<vmem>>, vector<1x346xf32>
    tpu.vector_store %arg10[%c32, %c0_126], %143 {strides = array<i32>} : memref<49x346xf32, #tpu.memory_space<vmem>>, vector<1x346xf32>,
    %c0_127 = arith.constant 0 : index
    %c0_128 = arith.constant 0 : index
    %c93 = arith.constant 93 : index
    %145 = vector.load %arg2[%c0_127, %c0_128, %c93] : memref<1x2x484xbf16, #tpu.memory_space<vmem>>, vector<1x1x346xbf16>
    %146 = vector.shape_cast %145 : vector<1x1x346xbf16> to vector<1x346xbf16>
    %147 = arith.extf %146 : vector<1x346xbf16> to vector<1x346xf32>
    %c33 = arith.constant 33 : index
    %c0_129 = arith.constant 0 : index
    %148 = vector.load %arg10[%c33, %c0_129] : memref<49x346xf32, #tpu.memory_space<vmem>>, vector<1x346xf32>
    tpu.vector_store %arg10[%c33, %c0_129], %147 {strides = array<i32>} : memref<49x346xf32, #tpu.memory_space<vmem>>, vector<1x346xf32>,
    %c0_130 = arith.constant 0 : index
    %c0_131 = arith.constant 0 : index
    %c94 = arith.constant 94 : index
    %149 = vector.load %arg2[%c0_130, %c0_131, %c94] : memref<1x2x484xbf16, #tpu.memory_space<vmem>>, vector<1x1x346xbf16>
    %150 = vector.shape_cast %149 : vector<1x1x346xbf16> to vector<1x346xbf16>
    %151 = arith.extf %150 : vector<1x346xbf16> to vector<1x346xf32>
    %c34 = arith.constant 34 : index
    %c0_132 = arith.constant 0 : index
    %152 = vector.load %arg10[%c34, %c0_132] : memref<49x346xf32, #tpu.memory_space<vmem>>, vector<1x346xf32>
    tpu.vector_store %arg10[%c34, %c0_132], %151 {strides = array<i32>} : memref<49x346xf32, #tpu.memory_space<vmem>>, vector<1x346xf32>,
    %c0_133 = arith.constant 0 : index
    %c0_134 = arith.constant 0 : index
    %c110 = arith.constant 110 : index
    %153 = vector.load %arg2[%c0_133, %c0_134, %c110] : memref<1x2x484xbf16, #tpu.memory_space<vmem>>, vector<1x1x346xbf16>
    %154 = vector.shape_cast %153 : vector<1x1x346xbf16> to vector<1x346xbf16>
    %155 = arith.extf %154 : vector<1x346xbf16> to vector<1x346xf32>
    %c35 = arith.constant 35 : index
    %c0_135 = arith.constant 0 : index
    %156 = vector.load %arg10[%c35, %c0_135] : memref<49x346xf32, #tpu.memory_space<vmem>>, vector<1x346xf32>
    tpu.vector_store %arg10[%c35, %c0_135], %155 {strides = array<i32>} : memref<49x346xf32, #tpu.memory_space<vmem>>, vector<1x346xf32>,
    %c0_136 = arith.constant 0 : index
    %c0_137 = arith.constant 0 : index
    %c111 = arith.constant 111 : index
    %157 = vector.load %arg2[%c0_136, %c0_137, %c111] : memref<1x2x484xbf16, #tpu.memory_space<vmem>>, vector<1x1x346xbf16>
    %158 = vector.shape_cast %157 : vector<1x1x346xbf16> to vector<1x346xbf16>
    %159 = arith.extf %158 : vector<1x346xbf16> to vector<1x346xf32>
    %c36 = arith.constant 36 : index
    %c0_138 = arith.constant 0 : index
    %160 = vector.load %arg10[%c36, %c0_138] : memref<49x346xf32, #tpu.memory_space<vmem>>, vector<1x346xf32>
    tpu.vector_store %arg10[%c36, %c0_138], %159 {strides = array<i32>} : memref<49x346xf32, #tpu.memory_space<vmem>>, vector<1x346xf32>,
    %c0_139 = arith.constant 0 : index
    %c0_140 = arith.constant 0 : index
    %c112 = arith.constant 112 : index
    %161 = vector.load %arg2[%c0_139, %c0_140, %c112] : memref<1x2x484xbf16, #tpu.memory_space<vmem>>, vector<1x1x346xbf16>
    %162 = vector.shape_cast %161 : vector<1x1x346xbf16> to vector<1x346xbf16>
    %163 = arith.extf %162 : vector<1x346xbf16> to vector<1x346xf32>
    %c37 = arith.constant 37 : index
    %c0_141 = arith.constant 0 : index
    %164 = vector.load %arg10[%c37, %c0_141] : memref<49x346xf32, #tpu.memory_space<vmem>>, vector<1x346xf32>
    tpu.vector_store %arg10[%c37, %c0_141], %163 {strides = array<i32>} : memref<49x346xf32, #tpu.memory_space<vmem>>, vector<1x346xf32>,
    %c0_142 = arith.constant 0 : index
    %c0_143 = arith.constant 0 : index
    %c113 = arith.constant 113 : index
    %165 = vector.load %arg2[%c0_142, %c0_143, %c113] : memref<1x2x484xbf16, #tpu.memory_space<vmem>>, vector<1x1x346xbf16>
    %166 = vector.shape_cast %165 : vector<1x1x346xbf16> to vector<1x346xbf16>
    %167 = arith.extf %166 : vector<1x346xbf16> to vector<1x346xf32>
    %c38 = arith.constant 38 : index
    %c0_144 = arith.constant 0 : index
    %168 = vector.load %arg10[%c38, %c0_144] : memref<49x346xf32, #tpu.memory_space<vmem>>, vector<1x346xf32>
    tpu.vector_store %arg10[%c38, %c0_144], %167 {strides = array<i32>} : memref<49x346xf32, #tpu.memory_space<vmem>>, vector<1x346xf32>,
    %c0_145 = arith.constant 0 : index
    %c0_146 = arith.constant 0 : index
    %c114 = arith.constant 114 : index
    %169 = vector.load %arg2[%c0_145, %c0_146, %c114] : memref<1x2x484xbf16, #tpu.memory_space<vmem>>, vector<1x1x346xbf16>
    %170 = vector.shape_cast %169 : vector<1x1x346xbf16> to vector<1x346xbf16>
    %171 = arith.extf %170 : vector<1x346xbf16> to vector<1x346xf32>
    %c39 = arith.constant 39 : index
    %c0_147 = arith.constant 0 : index
    %172 = vector.load %arg10[%c39, %c0_147] : memref<49x346xf32, #tpu.memory_space<vmem>>, vector<1x346xf32>
    tpu.vector_store %arg10[%c39, %c0_147], %171 {strides = array<i32>} : memref<49x346xf32, #tpu.memory_space<vmem>>, vector<1x346xf32>,
    %c0_148 = arith.constant 0 : index
    %c0_149 = arith.constant 0 : index
    %c115 = arith.constant 115 : index
    %173 = vector.load %arg2[%c0_148, %c0_149, %c115] : memref<1x2x484xbf16, #tpu.memory_space<vmem>>, vector<1x1x346xbf16>
    %174 = vector.shape_cast %173 : vector<1x1x346xbf16> to vector<1x346xbf16>
    %175 = arith.extf %174 : vector<1x346xbf16> to vector<1x346xf32>
    %c40 = arith.constant 40 : index
    %c0_150 = arith.constant 0 : index
    %176 = vector.load %arg10[%c40, %c0_150] : memref<49x346xf32, #tpu.memory_space<vmem>>, vector<1x346xf32>
    tpu.vector_store %arg10[%c40, %c0_150], %175 {strides = array<i32>} : memref<49x346xf32, #tpu.memory_space<vmem>>, vector<1x346xf32>,
    %c0_151 = arith.constant 0 : index
    %c0_152 = arith.constant 0 : index
    %c116 = arith.constant 116 : index
    %177 = vector.load %arg2[%c0_151, %c0_152, %c116] : memref<1x2x484xbf16, #tpu.memory_space<vmem>>, vector<1x1x346xbf16>
    %178 = vector.shape_cast %177 : vector<1x1x346xbf16> to vector<1x346xbf16>
    %179 = arith.extf %178 : vector<1x346xbf16> to vector<1x346xf32>
    %c41 = arith.constant 41 : index
    %c0_153 = arith.constant 0 : index
    %180 = vector.load %arg10[%c41, %c0_153] : memref<49x346xf32, #tpu.memory_space<vmem>>, vector<1x346xf32>
    tpu.vector_store %arg10[%c41, %c0_153], %179 {strides = array<i32>} : memref<49x346xf32, #tpu.memory_space<vmem>>, vector<1x346xf32>,
    %c0_154 = arith.constant 0 : index
    %c0_155 = arith.constant 0 : index
    %c132 = arith.constant 132 : index
    %181 = vector.load %arg2[%c0_154, %c0_155, %c132] : memref<1x2x484xbf16, #tpu.memory_space<vmem>>, vector<1x1x346xbf16>
    %182 = vector.shape_cast %181 : vector<1x1x346xbf16> to vector<1x346xbf16>
    %183 = arith.extf %182 : vector<1x346xbf16> to vector<1x346xf32>
    %c42 = arith.constant 42 : index
    %c0_156 = arith.constant 0 : index
    %184 = vector.load %arg10[%c42, %c0_156] : memref<49x346xf32, #tpu.memory_space<vmem>>, vector<1x346xf32>
    tpu.vector_store %arg10[%c42, %c0_156], %183 {strides = array<i32>} : memref<49x346xf32, #tpu.memory_space<vmem>>, vector<1x346xf32>,
    %c0_157 = arith.constant 0 : index
    %c0_158 = arith.constant 0 : index
    %c133 = arith.constant 133 : index
    %185 = vector.load %arg2[%c0_157, %c0_158, %c133] : memref<1x2x484xbf16, #tpu.memory_space<vmem>>, vector<1x1x346xbf16>
    %186 = vector.shape_cast %185 : vector<1x1x346xbf16> to vector<1x346xbf16>
    %187 = arith.extf %186 : vector<1x346xbf16> to vector<1x346xf32>
    %c43 = arith.constant 43 : index
    %c0_159 = arith.constant 0 : index
    %188 = vector.load %arg10[%c43, %c0_159] : memref<49x346xf32, #tpu.memory_space<vmem>>, vector<1x346xf32>
    tpu.vector_store %arg10[%c43, %c0_159], %187 {strides = array<i32>} : memref<49x346xf32, #tpu.memory_space<vmem>>, vector<1x346xf32>,
    %c0_160 = arith.constant 0 : index
    %c0_161 = arith.constant 0 : index
    %c134 = arith.constant 134 : index
    %189 = vector.load %arg2[%c0_160, %c0_161, %c134] : memref<1x2x484xbf16, #tpu.memory_space<vmem>>, vector<1x1x346xbf16>
    %190 = vector.shape_cast %189 : vector<1x1x346xbf16> to vector<1x346xbf16>
    %191 = arith.extf %190 : vector<1x346xbf16> to vector<1x346xf32>
    %c44_162 = arith.constant 44 : index
    %c0_163 = arith.constant 0 : index
    %192 = vector.load %arg10[%c44_162, %c0_163] : memref<49x346xf32, #tpu.memory_space<vmem>>, vector<1x346xf32>
    tpu.vector_store %arg10[%c44_162, %c0_163], %191 {strides = array<i32>} : memref<49x346xf32, #tpu.memory_space<vmem>>, vector<1x346xf32>,
    %c0_164 = arith.constant 0 : index
    %c0_165 = arith.constant 0 : index
    %c135 = arith.constant 135 : index
    %193 = vector.load %arg2[%c0_164, %c0_165, %c135] : memref<1x2x484xbf16, #tpu.memory_space<vmem>>, vector<1x1x346xbf16>
    %194 = vector.shape_cast %193 : vector<1x1x346xbf16> to vector<1x346xbf16>
    %195 = arith.extf %194 : vector<1x346xbf16> to vector<1x346xf32>
    %c45_166 = arith.constant 45 : index
    %c0_167 = arith.constant 0 : index
    %196 = vector.load %arg10[%c45_166, %c0_167] : memref<49x346xf32, #tpu.memory_space<vmem>>, vector<1x346xf32>
    tpu.vector_store %arg10[%c45_166, %c0_167], %195 {strides = array<i32>} : memref<49x346xf32, #tpu.memory_space<vmem>>, vector<1x346xf32>,
    %c0_168 = arith.constant 0 : index
    %c0_169 = arith.constant 0 : index
    %c136 = arith.constant 136 : index
    %197 = vector.load %arg2[%c0_168, %c0_169, %c136] : memref<1x2x484xbf16, #tpu.memory_space<vmem>>, vector<1x1x346xbf16>
    %198 = vector.shape_cast %197 : vector<1x1x346xbf16> to vector<1x346xbf16>
    %199 = arith.extf %198 : vector<1x346xbf16> to vector<1x346xf32>
    %c46_170 = arith.constant 46 : index
    %c0_171 = arith.constant 0 : index
    %200 = vector.load %arg10[%c46_170, %c0_171] : memref<49x346xf32, #tpu.memory_space<vmem>>, vector<1x346xf32>
    tpu.vector_store %arg10[%c46_170, %c0_171], %199 {strides = array<i32>} : memref<49x346xf32, #tpu.memory_space<vmem>>, vector<1x346xf32>,
    %c0_172 = arith.constant 0 : index
    %c0_173 = arith.constant 0 : index
    %c137 = arith.constant 137 : index
    %201 = vector.load %arg2[%c0_172, %c0_173, %c137] : memref<1x2x484xbf16, #tpu.memory_space<vmem>>, vector<1x1x346xbf16>
    %202 = vector.shape_cast %201 : vector<1x1x346xbf16> to vector<1x346xbf16>
    %203 = arith.extf %202 : vector<1x346xbf16> to vector<1x346xf32>
    %c47_174 = arith.constant 47 : index
    %c0_175 = arith.constant 0 : index
    %204 = vector.load %arg10[%c47_174, %c0_175] : memref<49x346xf32, #tpu.memory_space<vmem>>, vector<1x346xf32>
    tpu.vector_store %arg10[%c47_174, %c0_175], %203 {strides = array<i32>} : memref<49x346xf32, #tpu.memory_space<vmem>>, vector<1x346xf32>,
    %c0_176 = arith.constant 0 : index
    %c0_177 = arith.constant 0 : index
    %c138 = arith.constant 138 : index
    %205 = vector.load %arg2[%c0_176, %c0_177, %c138] : memref<1x2x484xbf16, #tpu.memory_space<vmem>>, vector<1x1x346xbf16>
    %206 = vector.shape_cast %205 : vector<1x1x346xbf16> to vector<1x346xbf16>
    %207 = arith.extf %206 : vector<1x346xbf16> to vector<1x346xf32>
    %c48_178 = arith.constant 48 : index
    %c0_179 = arith.constant 0 : index
    %208 = vector.load %arg10[%c48_178, %c0_179] : memref<49x346xf32, #tpu.memory_space<vmem>>, vector<1x346xf32>
    tpu.vector_store %arg10[%c48_178, %c0_179], %207 {strides = array<i32>} : memref<49x346xf32, #tpu.memory_space<vmem>>, vector<1x346xf32>,
    %c0_180 = arith.constant 0 : index
    %c0_181 = arith.constant 0 : index
    %209 = vector.load %arg10[%c0_180, %c0_181] : memref<49x346xf32, #tpu.memory_space<vmem>>, vector<49x346xf32>
    %210 = arith.truncf %209 : vector<49x346xf32> to vector<49x346xbf16>
    %cst_182 = arith.constant dense<0.000000e+00> : vector<64x346xf32>
    %211 = tpu.matmul %1, %210, %cst_182 {dimension_numbers = #tpu.dot_dimension_numbers<[1], [0], [0], [1], [0, 0, 1, 1], [], []>} : vector<64x49xbf16>, vector<49x346xbf16>, vector<64x346xf32> -> vector<64x346xf32>
    %212 = vector.broadcast %3 : vector<64x1xf32> to vector<64x346xf32>
    %213 = arith.addf %211, %212 : vector<64x346xf32>
    %cst_183 = arith.constant 9.99999997E-7 : f32
    %214 = vector.broadcast %cst_183 : f32 to vector<64x346xf32>
    %215 = arith.maximumf %213, %214 : vector<64x346xf32>
    %216 = arith.mulf %215, %215 : vector<64x346xf32>
    %217 = arith.mulf %216, %215 : vector<64x346xf32>
    %218 = vector.broadcast %9 : vector<1x346xf32> to vector<64x346xf32>
    %219 = arith.mulf %217, %218 : vector<64x346xf32>
    %cst_184 = arith.constant dense<0.000000e+00> : vector<64xf32>
    %220 = vector.multi_reduction <add>, %219, %cst_184 [1] : vector<64x346xf32> to vector<64xf32>
    %221 = vector.shape_cast %220 : vector<64xf32> to vector<64x1xf32>
    %cst_185 = arith.constant 3.906250e-03 : f32
    %222 = vector.broadcast %cst_185 : f32 to vector<64x1xf32>
    %223 = arith.mulf %221, %222 : vector<64x1xf32>
    %224 = math.log %223 : vector<64x1xf32>
    %225 = vector.broadcast %12 : f32 to vector<64x1xf32>
    %226 = arith.mulf %224, %225 : vector<64x1xf32>
    %227 = math.exp %226 : vector<64x1xf32>
    %228 = vector.broadcast %227 : vector<64x1xf32> to vector<64x256xf32>
    %229 = arith.mulf %228, %6 : vector<64x256xf32>
    %cst_186 = arith.constant dense<0.000000e+00> : vector<256xf32>
    %230 = vector.multi_reduction <add>, %229, %cst_186 [0] : vector<64x256xf32> to vector<256xf32>
    %231 = vector.shape_cast %230 : vector<256xf32> to vector<1x256xf32>
    %232 = arith.addf %231, %8 : vector<1x256xf32>
    %c0_187 = arith.constant 0 : index
    %c0_188 = arith.constant 0 : index
    %c0_189 = arith.constant 0 : index
    %233 = vector.load %arg9[%c0_187, %c0_188, %c0_189] : memref<1x2x256xf32, #tpu.memory_space<vmem>>, vector<1x1x256xf32>
    %234 = vector.shape_cast %233 : vector<1x1x256xf32> to vector<1x256xf32>
    %235 = vector.shape_cast %232 : vector<1x256xf32> to vector<1x1x256xf32>
    tpu.vector_store %arg9[%c0_187, %c0_188, %c0_189], %235 {strides = array<i32>} : memref<1x2x256xf32, #tpu.memory_space<vmem>>, vector<1x1x256xf32>,
    %c0_190 = arith.constant 0 : index
    %c1_191 = arith.constant 1 : index
    %c0_192 = arith.constant 0 : index
    %236 = vector.load %arg2[%c0_190, %c1_191, %c0_192] : memref<1x2x484xbf16, #tpu.memory_space<vmem>>, vector<1x1x346xbf16>
    %237 = vector.shape_cast %236 : vector<1x1x346xbf16> to vector<1x346xbf16>
    %238 = arith.extf %237 : vector<1x346xbf16> to vector<1x346xf32>
    %c0_193 = arith.constant 0 : index
    %c0_194 = arith.constant 0 : index
    %239 = vector.load %arg10[%c0_193, %c0_194] : memref<49x346xf32, #tpu.memory_space<vmem>>, vector<1x346xf32>
    tpu.vector_store %arg10[%c0_193, %c0_194], %238 {strides = array<i32>} : memref<49x346xf32, #tpu.memory_space<vmem>>, vector<1x346xf32>,
    %c0_195 = arith.constant 0 : index
    %c1_196 = arith.constant 1 : index
    %c1_197 = arith.constant 1 : index
    %240 = vector.load %arg2[%c0_195, %c1_196, %c1_197] : memref<1x2x484xbf16, #tpu.memory_space<vmem>>, vector<1x1x346xbf16>
    %241 = vector.shape_cast %240 : vector<1x1x346xbf16> to vector<1x346xbf16>
    %242 = arith.extf %241 : vector<1x346xbf16> to vector<1x346xf32>
    %c1_198 = arith.constant 1 : index
    %c0_199 = arith.constant 0 : index
    %243 = vector.load %arg10[%c1_198, %c0_199] : memref<49x346xf32, #tpu.memory_space<vmem>>, vector<1x346xf32>
    tpu.vector_store %arg10[%c1_198, %c0_199], %242 {strides = array<i32>} : memref<49x346xf32, #tpu.memory_space<vmem>>, vector<1x346xf32>,
    %c0_200 = arith.constant 0 : index
    %c1_201 = arith.constant 1 : index
    %c2_202 = arith.constant 2 : index
    %244 = vector.load %arg2[%c0_200, %c1_201, %c2_202] : memref<1x2x484xbf16, #tpu.memory_space<vmem>>, vector<1x1x346xbf16>
    %245 = vector.shape_cast %244 : vector<1x1x346xbf16> to vector<1x346xbf16>
    %246 = arith.extf %245 : vector<1x346xbf16> to vector<1x346xf32>
    %c2_203 = arith.constant 2 : index
    %c0_204 = arith.constant 0 : index
    %247 = vector.load %arg10[%c2_203, %c0_204] : memref<49x346xf32, #tpu.memory_space<vmem>>, vector<1x346xf32>
    tpu.vector_store %arg10[%c2_203, %c0_204], %246 {strides = array<i32>} : memref<49x346xf32, #tpu.memory_space<vmem>>, vector<1x346xf32>,
    %c0_205 = arith.constant 0 : index
    %c1_206 = arith.constant 1 : index
    %c3_207 = arith.constant 3 : index
    %248 = vector.load %arg2[%c0_205, %c1_206, %c3_207] : memref<1x2x484xbf16, #tpu.memory_space<vmem>>, vector<1x1x346xbf16>
    %249 = vector.shape_cast %248 : vector<1x1x346xbf16> to vector<1x346xbf16>
    %250 = arith.extf %249 : vector<1x346xbf16> to vector<1x346xf32>
    %c3_208 = arith.constant 3 : index
    %c0_209 = arith.constant 0 : index
    %251 = vector.load %arg10[%c3_208, %c0_209] : memref<49x346xf32, #tpu.memory_space<vmem>>, vector<1x346xf32>
    tpu.vector_store %arg10[%c3_208, %c0_209], %250 {strides = array<i32>} : memref<49x346xf32, #tpu.memory_space<vmem>>, vector<1x346xf32>,
    %c0_210 = arith.constant 0 : index
    %c1_211 = arith.constant 1 : index
    %c4_212 = arith.constant 4 : index
    %252 = vector.load %arg2[%c0_210, %c1_211, %c4_212] : memref<1x2x484xbf16, #tpu.memory_space<vmem>>, vector<1x1x346xbf16>
    %253 = vector.shape_cast %252 : vector<1x1x346xbf16> to vector<1x346xbf16>
    %254 = arith.extf %253 : vector<1x346xbf16> to vector<1x346xf32>
    %c4_213 = arith.constant 4 : index
    %c0_214 = arith.constant 0 : index
    %255 = vector.load %arg10[%c4_213, %c0_214] : memref<49x346xf32, #tpu.memory_space<vmem>>, vector<1x346xf32>
    tpu.vector_store %arg10[%c4_213, %c0_214], %254 {strides = array<i32>} : memref<49x346xf32, #tpu.memory_space<vmem>>, vector<1x346xf32>,
    %c0_215 = arith.constant 0 : index
    %c1_216 = arith.constant 1 : index
    %c5_217 = arith.constant 5 : index
    %256 = vector.load %arg2[%c0_215, %c1_216, %c5_217] : memref<1x2x484xbf16, #tpu.memory_space<vmem>>, vector<1x1x346xbf16>
    %257 = vector.shape_cast %256 : vector<1x1x346xbf16> to vector<1x346xbf16>
    %258 = arith.extf %257 : vector<1x346xbf16> to vector<1x346xf32>
    %c5_218 = arith.constant 5 : index
    %c0_219 = arith.constant 0 : index
    %259 = vector.load %arg10[%c5_218, %c0_219] : memref<49x346xf32, #tpu.memory_space<vmem>>, vector<1x346xf32>
    tpu.vector_store %arg10[%c5_218, %c0_219], %258 {strides = array<i32>} : memref<49x346xf32, #tpu.memory_space<vmem>>, vector<1x346xf32>,
    %c0_220 = arith.constant 0 : index
    %c1_221 = arith.constant 1 : index
    %c6_222 = arith.constant 6 : index
    %260 = vector.load %arg2[%c0_220, %c1_221, %c6_222] : memref<1x2x484xbf16, #tpu.memory_space<vmem>>, vector<1x1x346xbf16>
    %261 = vector.shape_cast %260 : vector<1x1x346xbf16> to vector<1x346xbf16>
    %262 = arith.extf %261 : vector<1x346xbf16> to vector<1x346xf32>
    %c6_223 = arith.constant 6 : index
    %c0_224 = arith.constant 0 : index
    %263 = vector.load %arg10[%c6_223, %c0_224] : memref<49x346xf32, #tpu.memory_space<vmem>>, vector<1x346xf32>
    tpu.vector_store %arg10[%c6_223, %c0_224], %262 {strides = array<i32>} : memref<49x346xf32, #tpu.memory_space<vmem>>, vector<1x346xf32>,
    %c0_225 = arith.constant 0 : index
    %c1_226 = arith.constant 1 : index
    %c22_227 = arith.constant 22 : index
    %264 = vector.load %arg2[%c0_225, %c1_226, %c22_227] : memref<1x2x484xbf16, #tpu.memory_space<vmem>>, vector<1x1x346xbf16>
    %265 = vector.shape_cast %264 : vector<1x1x346xbf16> to vector<1x346xbf16>
    %266 = arith.extf %265 : vector<1x346xbf16> to vector<1x346xf32>
    %c7_228 = arith.constant 7 : index
    %c0_229 = arith.constant 0 : index
    %267 = vector.load %arg10[%c7_228, %c0_229] : memref<49x346xf32, #tpu.memory_space<vmem>>, vector<1x346xf32>
    tpu.vector_store %arg10[%c7_228, %c0_229], %266 {strides = array<i32>} : memref<49x346xf32, #tpu.memory_space<vmem>>, vector<1x346xf32>,
    %c0_230 = arith.constant 0 : index
    %c1_231 = arith.constant 1 : index
    %c23_232 = arith.constant 23 : index
    %268 = vector.load %arg2[%c0_230, %c1_231, %c23_232] : memref<1x2x484xbf16, #tpu.memory_space<vmem>>, vector<1x1x346xbf16>
    %269 = vector.shape_cast %268 : vector<1x1x346xbf16> to vector<1x346xbf16>
    %270 = arith.extf %269 : vector<1x346xbf16> to vector<1x346xf32>
    %c8_233 = arith.constant 8 : index
    %c0_234 = arith.constant 0 : index
    %271 = vector.load %arg10[%c8_233, %c0_234] : memref<49x346xf32, #tpu.memory_space<vmem>>, vector<1x346xf32>
    tpu.vector_store %arg10[%c8_233, %c0_234], %270 {strides = array<i32>} : memref<49x346xf32, #tpu.memory_space<vmem>>, vector<1x346xf32>,
    %c0_235 = arith.constant 0 : index
    %c1_236 = arith.constant 1 : index
    %c24_237 = arith.constant 24 : index
    %272 = vector.load %arg2[%c0_235, %c1_236, %c24_237] : memref<1x2x484xbf16, #tpu.memory_space<vmem>>, vector<1x1x346xbf16>
    %273 = vector.shape_cast %272 : vector<1x1x346xbf16> to vector<1x346xbf16>
    %274 = arith.extf %273 : vector<1x346xbf16> to vector<1x346xf32>
    %c9_238 = arith.constant 9 : index
    %c0_239 = arith.constant 0 : index
    %275 = vector.load %arg10[%c9_238, %c0_239] : memref<49x346xf32, #tpu.memory_space<vmem>>, vector<1x346xf32>
    tpu.vector_store %arg10[%c9_238, %c0_239], %274 {strides = array<i32>} : memref<49x346xf32, #tpu.memory_space<vmem>>, vector<1x346xf32>,
    %c0_240 = arith.constant 0 : index
    %c1_241 = arith.constant 1 : index
    %c25_242 = arith.constant 25 : index
    %276 = vector.load %arg2[%c0_240, %c1_241, %c25_242] : memref<1x2x484xbf16, #tpu.memory_space<vmem>>, vector<1x1x346xbf16>
    %277 = vector.shape_cast %276 : vector<1x1x346xbf16> to vector<1x346xbf16>
    %278 = arith.extf %277 : vector<1x346xbf16> to vector<1x346xf32>
    %c10_243 = arith.constant 10 : index
    %c0_244 = arith.constant 0 : index
    %279 = vector.load %arg10[%c10_243, %c0_244] : memref<49x346xf32, #tpu.memory_space<vmem>>, vector<1x346xf32>
    tpu.vector_store %arg10[%c10_243, %c0_244], %278 {strides = array<i32>} : memref<49x346xf32, #tpu.memory_space<vmem>>, vector<1x346xf32>,
    %c0_245 = arith.constant 0 : index
    %c1_246 = arith.constant 1 : index
    %c26_247 = arith.constant 26 : index
    %280 = vector.load %arg2[%c0_245, %c1_246, %c26_247] : memref<1x2x484xbf16, #tpu.memory_space<vmem>>, vector<1x1x346xbf16>
    %281 = vector.shape_cast %280 : vector<1x1x346xbf16> to vector<1x346xbf16>
    %282 = arith.extf %281 : vector<1x346xbf16> to vector<1x346xf32>
    %c11_248 = arith.constant 11 : index
    %c0_249 = arith.constant 0 : index
    %283 = vector.load %arg10[%c11_248, %c0_249] : memref<49x346xf32, #tpu.memory_space<vmem>>, vector<1x346xf32>
    tpu.vector_store %arg10[%c11_248, %c0_249], %282 {strides = array<i32>} : memref<49x346xf32, #tpu.memory_space<vmem>>, vector<1x346xf32>,
    %c0_250 = arith.constant 0 : index
    %c1_251 = arith.constant 1 : index
    %c27_252 = arith.constant 27 : index
    %284 = vector.load %arg2[%c0_250, %c1_251, %c27_252] : memref<1x2x484xbf16, #tpu.memory_space<vmem>>, vector<1x1x346xbf16>
    %285 = vector.shape_cast %284 : vector<1x1x346xbf16> to vector<1x346xbf16>
    %286 = arith.extf %285 : vector<1x346xbf16> to vector<1x346xf32>
    %c12_253 = arith.constant 12 : index
    %c0_254 = arith.constant 0 : index
    %287 = vector.load %arg10[%c12_253, %c0_254] : memref<49x346xf32, #tpu.memory_space<vmem>>, vector<1x346xf32>
    tpu.vector_store %arg10[%c12_253, %c0_254], %286 {strides = array<i32>} : memref<49x346xf32, #tpu.memory_space<vmem>>, vector<1x346xf32>,
    %c0_255 = arith.constant 0 : index
    %c1_256 = arith.constant 1 : index
    %c28_257 = arith.constant 28 : index
    %288 = vector.load %arg2[%c0_255, %c1_256, %c28_257] : memref<1x2x484xbf16, #tpu.memory_space<vmem>>, vector<1x1x346xbf16>
    %289 = vector.shape_cast %288 : vector<1x1x346xbf16> to vector<1x346xbf16>
    %290 = arith.extf %289 : vector<1x346xbf16> to vector<1x346xf32>
    %c13_258 = arith.constant 13 : index
    %c0_259 = arith.constant 0 : index
    %291 = vector.load %arg10[%c13_258, %c0_259] : memref<49x346xf32, #tpu.memory_space<vmem>>, vector<1x346xf32>
    tpu.vector_store %arg10[%c13_258, %c0_259], %290 {strides = array<i32>} : memref<49x346xf32, #tpu.memory_space<vmem>>, vector<1x346xf32>,
    %c0_260 = arith.constant 0 : index
    %c1_261 = arith.constant 1 : index
    %c44_262 = arith.constant 44 : index
    %292 = vector.load %arg2[%c0_260, %c1_261, %c44_262] : memref<1x2x484xbf16, #tpu.memory_space<vmem>>, vector<1x1x346xbf16>
    %293 = vector.shape_cast %292 : vector<1x1x346xbf16> to vector<1x346xbf16>
    %294 = arith.extf %293 : vector<1x346xbf16> to vector<1x346xf32>
    %c14_263 = arith.constant 14 : index
    %c0_264 = arith.constant 0 : index
    %295 = vector.load %arg10[%c14_263, %c0_264] : memref<49x346xf32, #tpu.memory_space<vmem>>, vector<1x346xf32>
    tpu.vector_store %arg10[%c14_263, %c0_264], %294 {strides = array<i32>} : memref<49x346xf32, #tpu.memory_space<vmem>>, vector<1x346xf32>,
    %c0_265 = arith.constant 0 : index
    %c1_266 = arith.constant 1 : index
    %c45_267 = arith.constant 45 : index
    %296 = vector.load %arg2[%c0_265, %c1_266, %c45_267] : memref<1x2x484xbf16, #tpu.memory_space<vmem>>, vector<1x1x346xbf16>
    %297 = vector.shape_cast %296 : vector<1x1x346xbf16> to vector<1x346xbf16>
    %298 = arith.extf %297 : vector<1x346xbf16> to vector<1x346xf32>
    %c15_268 = arith.constant 15 : index
    %c0_269 = arith.constant 0 : index
    %299 = vector.load %arg10[%c15_268, %c0_269] : memref<49x346xf32, #tpu.memory_space<vmem>>, vector<1x346xf32>
    tpu.vector_store %arg10[%c15_268, %c0_269], %298 {strides = array<i32>} : memref<49x346xf32, #tpu.memory_space<vmem>>, vector<1x346xf32>,
    %c0_270 = arith.constant 0 : index
    %c1_271 = arith.constant 1 : index
    %c46_272 = arith.constant 46 : index
    %300 = vector.load %arg2[%c0_270, %c1_271, %c46_272] : memref<1x2x484xbf16, #tpu.memory_space<vmem>>, vector<1x1x346xbf16>
    %301 = vector.shape_cast %300 : vector<1x1x346xbf16> to vector<1x346xbf16>
    %302 = arith.extf %301 : vector<1x346xbf16> to vector<1x346xf32>
    %c16_273 = arith.constant 16 : index
    %c0_274 = arith.constant 0 : index
    %303 = vector.load %arg10[%c16_273, %c0_274] : memref<49x346xf32, #tpu.memory_space<vmem>>, vector<1x346xf32>
    tpu.vector_store %arg10[%c16_273, %c0_274], %302 {strides = array<i32>} : memref<49x346xf32, #tpu.memory_space<vmem>>, vector<1x346xf32>,
    %c0_275 = arith.constant 0 : index
    %c1_276 = arith.constant 1 : index
    %c47_277 = arith.constant 47 : index
    %304 = vector.load %arg2[%c0_275, %c1_276, %c47_277] : memref<1x2x484xbf16, #tpu.memory_space<vmem>>, vector<1x1x346xbf16>
    %305 = vector.shape_cast %304 : vector<1x1x346xbf16> to vector<1x346xbf16>
    %306 = arith.extf %305 : vector<1x346xbf16> to vector<1x346xf32>
    %c17_278 = arith.constant 17 : index
    %c0_279 = arith.constant 0 : index
    %307 = vector.load %arg10[%c17_278, %c0_279] : memref<49x346xf32, #tpu.memory_space<vmem>>, vector<1x346xf32>
    tpu.vector_store %arg10[%c17_278, %c0_279], %306 {strides = array<i32>} : memref<49x346xf32, #tpu.memory_space<vmem>>, vector<1x346xf32>,
    %c0_280 = arith.constant 0 : index
    %c1_281 = arith.constant 1 : index
    %c48_282 = arith.constant 48 : index
    %308 = vector.load %arg2[%c0_280, %c1_281, %c48_282] : memref<1x2x484xbf16, #tpu.memory_space<vmem>>, vector<1x1x346xbf16>
    %309 = vector.shape_cast %308 : vector<1x1x346xbf16> to vector<1x346xbf16>
    %310 = arith.extf %309 : vector<1x346xbf16> to vector<1x346xf32>
    %c18_283 = arith.constant 18 : index
    %c0_284 = arith.constant 0 : index
    %311 = vector.load %arg10[%c18_283, %c0_284] : memref<49x346xf32, #tpu.memory_space<vmem>>, vector<1x346xf32>
    tpu.vector_store %arg10[%c18_283, %c0_284], %310 {strides = array<i32>} : memref<49x346xf32, #tpu.memory_space<vmem>>, vector<1x346xf32>,
    %c0_285 = arith.constant 0 : index
    %c1_286 = arith.constant 1 : index
    %c49_287 = arith.constant 49 : index
    %312 = vector.load %arg2[%c0_285, %c1_286, %c49_287] : memref<1x2x484xbf16, #tpu.memory_space<vmem>>, vector<1x1x346xbf16>
    %313 = vector.shape_cast %312 : vector<1x1x346xbf16> to vector<1x346xbf16>
    %314 = arith.extf %313 : vector<1x346xbf16> to vector<1x346xf32>
    %c19_288 = arith.constant 19 : index
    %c0_289 = arith.constant 0 : index
    %315 = vector.load %arg10[%c19_288, %c0_289] : memref<49x346xf32, #tpu.memory_space<vmem>>, vector<1x346xf32>
    tpu.vector_store %arg10[%c19_288, %c0_289], %314 {strides = array<i32>} : memref<49x346xf32, #tpu.memory_space<vmem>>, vector<1x346xf32>,
    %c0_290 = arith.constant 0 : index
    %c1_291 = arith.constant 1 : index
    %c50_292 = arith.constant 50 : index
    %316 = vector.load %arg2[%c0_290, %c1_291, %c50_292] : memref<1x2x484xbf16, #tpu.memory_space<vmem>>, vector<1x1x346xbf16>
    %317 = vector.shape_cast %316 : vector<1x1x346xbf16> to vector<1x346xbf16>
    %318 = arith.extf %317 : vector<1x346xbf16> to vector<1x346xf32>
    %c20_293 = arith.constant 20 : index
    %c0_294 = arith.constant 0 : index
    %319 = vector.load %arg10[%c20_293, %c0_294] : memref<49x346xf32, #tpu.memory_space<vmem>>, vector<1x346xf32>
    tpu.vector_store %arg10[%c20_293, %c0_294], %318 {strides = array<i32>} : memref<49x346xf32, #tpu.memory_space<vmem>>, vector<1x346xf32>,
    %c0_295 = arith.constant 0 : index
    %c1_296 = arith.constant 1 : index
    %c66_297 = arith.constant 66 : index
    %320 = vector.load %arg2[%c0_295, %c1_296, %c66_297] : memref<1x2x484xbf16, #tpu.memory_space<vmem>>, vector<1x1x346xbf16>
    %321 = vector.shape_cast %320 : vector<1x1x346xbf16> to vector<1x346xbf16>
    %322 = arith.extf %321 : vector<1x346xbf16> to vector<1x346xf32>
    %c21_298 = arith.constant 21 : index
    %c0_299 = arith.constant 0 : index
    %323 = vector.load %arg10[%c21_298, %c0_299] : memref<49x346xf32, #tpu.memory_space<vmem>>, vector<1x346xf32>
    tpu.vector_store %arg10[%c21_298, %c0_299], %322 {strides = array<i32>} : memref<49x346xf32, #tpu.memory_space<vmem>>, vector<1x346xf32>,
    %c0_300 = arith.constant 0 : index
    %c1_301 = arith.constant 1 : index
    %c67_302 = arith.constant 67 : index
    %324 = vector.load %arg2[%c0_300, %c1_301, %c67_302] : memref<1x2x484xbf16, #tpu.memory_space<vmem>>, vector<1x1x346xbf16>
    %325 = vector.shape_cast %324 : vector<1x1x346xbf16> to vector<1x346xbf16>
    %326 = arith.extf %325 : vector<1x346xbf16> to vector<1x346xf32>
    %c22_303 = arith.constant 22 : index
    %c0_304 = arith.constant 0 : index
    %327 = vector.load %arg10[%c22_303, %c0_304] : memref<49x346xf32, #tpu.memory_space<vmem>>, vector<1x346xf32>
    tpu.vector_store %arg10[%c22_303, %c0_304], %326 {strides = array<i32>} : memref<49x346xf32, #tpu.memory_space<vmem>>, vector<1x346xf32>,
    %c0_305 = arith.constant 0 : index
    %c1_306 = arith.constant 1 : index
    %c68_307 = arith.constant 68 : index
    %328 = vector.load %arg2[%c0_305, %c1_306, %c68_307] : memref<1x2x484xbf16, #tpu.memory_space<vmem>>, vector<1x1x346xbf16>
    %329 = vector.shape_cast %328 : vector<1x1x346xbf16> to vector<1x346xbf16>
    %330 = arith.extf %329 : vector<1x346xbf16> to vector<1x346xf32>
    %c23_308 = arith.constant 23 : index
    %c0_309 = arith.constant 0 : index
    %331 = vector.load %arg10[%c23_308, %c0_309] : memref<49x346xf32, #tpu.memory_space<vmem>>, vector<1x346xf32>
    tpu.vector_store %arg10[%c23_308, %c0_309], %330 {strides = array<i32>} : memref<49x346xf32, #tpu.memory_space<vmem>>, vector<1x346xf32>,
    %c0_310 = arith.constant 0 : index
    %c1_311 = arith.constant 1 : index
    %c69_312 = arith.constant 69 : index
    %332 = vector.load %arg2[%c0_310, %c1_311, %c69_312] : memref<1x2x484xbf16, #tpu.memory_space<vmem>>, vector<1x1x346xbf16>
    %333 = vector.shape_cast %332 : vector<1x1x346xbf16> to vector<1x346xbf16>
    %334 = arith.extf %333 : vector<1x346xbf16> to vector<1x346xf32>
    %c24_313 = arith.constant 24 : index
    %c0_314 = arith.constant 0 : index
    %335 = vector.load %arg10[%c24_313, %c0_314] : memref<49x346xf32, #tpu.memory_space<vmem>>, vector<1x346xf32>
    tpu.vector_store %arg10[%c24_313, %c0_314], %334 {strides = array<i32>} : memref<49x346xf32, #tpu.memory_space<vmem>>, vector<1x346xf32>,
    %c0_315 = arith.constant 0 : index
    %c1_316 = arith.constant 1 : index
    %c70_317 = arith.constant 70 : index
    %336 = vector.load %arg2[%c0_315, %c1_316, %c70_317] : memref<1x2x484xbf16, #tpu.memory_space<vmem>>, vector<1x1x346xbf16>
    %337 = vector.shape_cast %336 : vector<1x1x346xbf16> to vector<1x346xbf16>
    %338 = arith.extf %337 : vector<1x346xbf16> to vector<1x346xf32>
    %c25_318 = arith.constant 25 : index
    %c0_319 = arith.constant 0 : index
    %339 = vector.load %arg10[%c25_318, %c0_319] : memref<49x346xf32, #tpu.memory_space<vmem>>, vector<1x346xf32>
    tpu.vector_store %arg10[%c25_318, %c0_319], %338 {strides = array<i32>} : memref<49x346xf32, #tpu.memory_space<vmem>>, vector<1x346xf32>,
    %c0_320 = arith.constant 0 : index
    %c1_321 = arith.constant 1 : index
    %c71_322 = arith.constant 71 : index
    %340 = vector.load %arg2[%c0_320, %c1_321, %c71_322] : memref<1x2x484xbf16, #tpu.memory_space<vmem>>, vector<1x1x346xbf16>
    %341 = vector.shape_cast %340 : vector<1x1x346xbf16> to vector<1x346xbf16>
    %342 = arith.extf %341 : vector<1x346xbf16> to vector<1x346xf32>
    %c26_323 = arith.constant 26 : index
    %c0_324 = arith.constant 0 : index
    %343 = vector.load %arg10[%c26_323, %c0_324] : memref<49x346xf32, #tpu.memory_space<vmem>>, vector<1x346xf32>
    tpu.vector_store %arg10[%c26_323, %c0_324], %342 {strides = array<i32>} : memref<49x346xf32, #tpu.memory_space<vmem>>, vector<1x346xf32>,
    %c0_325 = arith.constant 0 : index
    %c1_326 = arith.constant 1 : index
    %c72_327 = arith.constant 72 : index
    %344 = vector.load %arg2[%c0_325, %c1_326, %c72_327] : memref<1x2x484xbf16, #tpu.memory_space<vmem>>, vector<1x1x346xbf16>
    %345 = vector.shape_cast %344 : vector<1x1x346xbf16> to vector<1x346xbf16>
    %346 = arith.extf %345 : vector<1x346xbf16> to vector<1x346xf32>
    %c27_328 = arith.constant 27 : index
    %c0_329 = arith.constant 0 : index
    %347 = vector.load %arg10[%c27_328, %c0_329] : memref<49x346xf32, #tpu.memory_space<vmem>>, vector<1x346xf32>
    tpu.vector_store %arg10[%c27_328, %c0_329], %346 {strides = array<i32>} : memref<49x346xf32, #tpu.memory_space<vmem>>, vector<1x346xf32>,
    %c0_330 = arith.constant 0 : index
    %c1_331 = arith.constant 1 : index
    %c88_332 = arith.constant 88 : index
    %348 = vector.load %arg2[%c0_330, %c1_331, %c88_332] : memref<1x2x484xbf16, #tpu.memory_space<vmem>>, vector<1x1x346xbf16>
    %349 = vector.shape_cast %348 : vector<1x1x346xbf16> to vector<1x346xbf16>
    %350 = arith.extf %349 : vector<1x346xbf16> to vector<1x346xf32>
    %c28_333 = arith.constant 28 : index
    %c0_334 = arith.constant 0 : index
    %351 = vector.load %arg10[%c28_333, %c0_334] : memref<49x346xf32, #tpu.memory_space<vmem>>, vector<1x346xf32>
    tpu.vector_store %arg10[%c28_333, %c0_334], %350 {strides = array<i32>} : memref<49x346xf32, #tpu.memory_space<vmem>>, vector<1x346xf32>,
    %c0_335 = arith.constant 0 : index
    %c1_336 = arith.constant 1 : index
    %c89_337 = arith.constant 89 : index
    %352 = vector.load %arg2[%c0_335, %c1_336, %c89_337] : memref<1x2x484xbf16, #tpu.memory_space<vmem>>, vector<1x1x346xbf16>
    %353 = vector.shape_cast %352 : vector<1x1x346xbf16> to vector<1x346xbf16>
    %354 = arith.extf %353 : vector<1x346xbf16> to vector<1x346xf32>
    %c29_338 = arith.constant 29 : index
    %c0_339 = arith.constant 0 : index
    %355 = vector.load %arg10[%c29_338, %c0_339] : memref<49x346xf32, #tpu.memory_space<vmem>>, vector<1x346xf32>
    tpu.vector_store %arg10[%c29_338, %c0_339], %354 {strides = array<i32>} : memref<49x346xf32, #tpu.memory_space<vmem>>, vector<1x346xf32>,
    %c0_340 = arith.constant 0 : index
    %c1_341 = arith.constant 1 : index
    %c90_342 = arith.constant 90 : index
    %356 = vector.load %arg2[%c0_340, %c1_341, %c90_342] : memref<1x2x484xbf16, #tpu.memory_space<vmem>>, vector<1x1x346xbf16>
    %357 = vector.shape_cast %356 : vector<1x1x346xbf16> to vector<1x346xbf16>
    %358 = arith.extf %357 : vector<1x346xbf16> to vector<1x346xf32>
    %c30_343 = arith.constant 30 : index
    %c0_344 = arith.constant 0 : index
    %359 = vector.load %arg10[%c30_343, %c0_344] : memref<49x346xf32, #tpu.memory_space<vmem>>, vector<1x346xf32>
    tpu.vector_store %arg10[%c30_343, %c0_344], %358 {strides = array<i32>} : memref<49x346xf32, #tpu.memory_space<vmem>>, vector<1x346xf32>,
    %c0_345 = arith.constant 0 : index
    %c1_346 = arith.constant 1 : index
    %c91_347 = arith.constant 91 : index
    %360 = vector.load %arg2[%c0_345, %c1_346, %c91_347] : memref<1x2x484xbf16, #tpu.memory_space<vmem>>, vector<1x1x346xbf16>
    %361 = vector.shape_cast %360 : vector<1x1x346xbf16> to vector<1x346xbf16>
    %362 = arith.extf %361 : vector<1x346xbf16> to vector<1x346xf32>
    %c31_348 = arith.constant 31 : index
    %c0_349 = arith.constant 0 : index
    %363 = vector.load %arg10[%c31_348, %c0_349] : memref<49x346xf32, #tpu.memory_space<vmem>>, vector<1x346xf32>
    tpu.vector_store %arg10[%c31_348, %c0_349], %362 {strides = array<i32>} : memref<49x346xf32, #tpu.memory_space<vmem>>, vector<1x346xf32>,
    %c0_350 = arith.constant 0 : index
    %c1_351 = arith.constant 1 : index
    %c92_352 = arith.constant 92 : index
    %364 = vector.load %arg2[%c0_350, %c1_351, %c92_352] : memref<1x2x484xbf16, #tpu.memory_space<vmem>>, vector<1x1x346xbf16>
    %365 = vector.shape_cast %364 : vector<1x1x346xbf16> to vector<1x346xbf16>
    %366 = arith.extf %365 : vector<1x346xbf16> to vector<1x346xf32>
    %c32_353 = arith.constant 32 : index
    %c0_354 = arith.constant 0 : index
    %367 = vector.load %arg10[%c32_353, %c0_354] : memref<49x346xf32, #tpu.memory_space<vmem>>, vector<1x346xf32>
    tpu.vector_store %arg10[%c32_353, %c0_354], %366 {strides = array<i32>} : memref<49x346xf32, #tpu.memory_space<vmem>>, vector<1x346xf32>,
    %c0_355 = arith.constant 0 : index
    %c1_356 = arith.constant 1 : index
    %c93_357 = arith.constant 93 : index
    %368 = vector.load %arg2[%c0_355, %c1_356, %c93_357] : memref<1x2x484xbf16, #tpu.memory_space<vmem>>, vector<1x1x346xbf16>
    %369 = vector.shape_cast %368 : vector<1x1x346xbf16> to vector<1x346xbf16>
    %370 = arith.extf %369 : vector<1x346xbf16> to vector<1x346xf32>
    %c33_358 = arith.constant 33 : index
    %c0_359 = arith.constant 0 : index
    %371 = vector.load %arg10[%c33_358, %c0_359] : memref<49x346xf32, #tpu.memory_space<vmem>>, vector<1x346xf32>
    tpu.vector_store %arg10[%c33_358, %c0_359], %370 {strides = array<i32>} : memref<49x346xf32, #tpu.memory_space<vmem>>, vector<1x346xf32>,
    %c0_360 = arith.constant 0 : index
    %c1_361 = arith.constant 1 : index
    %c94_362 = arith.constant 94 : index
    %372 = vector.load %arg2[%c0_360, %c1_361, %c94_362] : memref<1x2x484xbf16, #tpu.memory_space<vmem>>, vector<1x1x346xbf16>
    %373 = vector.shape_cast %372 : vector<1x1x346xbf16> to vector<1x346xbf16>
    %374 = arith.extf %373 : vector<1x346xbf16> to vector<1x346xf32>
    %c34_363 = arith.constant 34 : index
    %c0_364 = arith.constant 0 : index
    %375 = vector.load %arg10[%c34_363, %c0_364] : memref<49x346xf32, #tpu.memory_space<vmem>>, vector<1x346xf32>
    tpu.vector_store %arg10[%c34_363, %c0_364], %374 {strides = array<i32>} : memref<49x346xf32, #tpu.memory_space<vmem>>, vector<1x346xf32>,
    %c0_365 = arith.constant 0 : index
    %c1_366 = arith.constant 1 : index
    %c110_367 = arith.constant 110 : index
    %376 = vector.load %arg2[%c0_365, %c1_366, %c110_367] : memref<1x2x484xbf16, #tpu.memory_space<vmem>>, vector<1x1x346xbf16>
    %377 = vector.shape_cast %376 : vector<1x1x346xbf16> to vector<1x346xbf16>
    %378 = arith.extf %377 : vector<1x346xbf16> to vector<1x346xf32>
    %c35_368 = arith.constant 35 : index
    %c0_369 = arith.constant 0 : index
    %379 = vector.load %arg10[%c35_368, %c0_369] : memref<49x346xf32, #tpu.memory_space<vmem>>, vector<1x346xf32>
    tpu.vector_store %arg10[%c35_368, %c0_369], %378 {strides = array<i32>} : memref<49x346xf32, #tpu.memory_space<vmem>>, vector<1x346xf32>,
    %c0_370 = arith.constant 0 : index
    %c1_371 = arith.constant 1 : index
    %c111_372 = arith.constant 111 : index
    %380 = vector.load %arg2[%c0_370, %c1_371, %c111_372] : memref<1x2x484xbf16, #tpu.memory_space<vmem>>, vector<1x1x346xbf16>
    %381 = vector.shape_cast %380 : vector<1x1x346xbf16> to vector<1x346xbf16>
    %382 = arith.extf %381 : vector<1x346xbf16> to vector<1x346xf32>
    %c36_373 = arith.constant 36 : index
    %c0_374 = arith.constant 0 : index
    %383 = vector.load %arg10[%c36_373, %c0_374] : memref<49x346xf32, #tpu.memory_space<vmem>>, vector<1x346xf32>
    tpu.vector_store %arg10[%c36_373, %c0_374], %382 {strides = array<i32>} : memref<49x346xf32, #tpu.memory_space<vmem>>, vector<1x346xf32>,
    %c0_375 = arith.constant 0 : index
    %c1_376 = arith.constant 1 : index
    %c112_377 = arith.constant 112 : index
    %384 = vector.load %arg2[%c0_375, %c1_376, %c112_377] : memref<1x2x484xbf16, #tpu.memory_space<vmem>>, vector<1x1x346xbf16>
    %385 = vector.shape_cast %384 : vector<1x1x346xbf16> to vector<1x346xbf16>
    %386 = arith.extf %385 : vector<1x346xbf16> to vector<1x346xf32>
    %c37_378 = arith.constant 37 : index
    %c0_379 = arith.constant 0 : index
    %387 = vector.load %arg10[%c37_378, %c0_379] : memref<49x346xf32, #tpu.memory_space<vmem>>, vector<1x346xf32>
    tpu.vector_store %arg10[%c37_378, %c0_379], %386 {strides = array<i32>} : memref<49x346xf32, #tpu.memory_space<vmem>>, vector<1x346xf32>,
    %c0_380 = arith.constant 0 : index
    %c1_381 = arith.constant 1 : index
    %c113_382 = arith.constant 113 : index
    %388 = vector.load %arg2[%c0_380, %c1_381, %c113_382] : memref<1x2x484xbf16, #tpu.memory_space<vmem>>, vector<1x1x346xbf16>
    %389 = vector.shape_cast %388 : vector<1x1x346xbf16> to vector<1x346xbf16>
    %390 = arith.extf %389 : vector<1x346xbf16> to vector<1x346xf32>
    %c38_383 = arith.constant 38 : index
    %c0_384 = arith.constant 0 : index
    %391 = vector.load %arg10[%c38_383, %c0_384] : memref<49x346xf32, #tpu.memory_space<vmem>>, vector<1x346xf32>
    tpu.vector_store %arg10[%c38_383, %c0_384], %390 {strides = array<i32>} : memref<49x346xf32, #tpu.memory_space<vmem>>, vector<1x346xf32>,
    %c0_385 = arith.constant 0 : index
    %c1_386 = arith.constant 1 : index
    %c114_387 = arith.constant 114 : index
    %392 = vector.load %arg2[%c0_385, %c1_386, %c114_387] : memref<1x2x484xbf16, #tpu.memory_space<vmem>>, vector<1x1x346xbf16>
    %393 = vector.shape_cast %392 : vector<1x1x346xbf16> to vector<1x346xbf16>
    %394 = arith.extf %393 : vector<1x346xbf16> to vector<1x346xf32>
    %c39_388 = arith.constant 39 : index
    %c0_389 = arith.constant 0 : index
    %395 = vector.load %arg10[%c39_388, %c0_389] : memref<49x346xf32, #tpu.memory_space<vmem>>, vector<1x346xf32>
    tpu.vector_store %arg10[%c39_388, %c0_389], %394 {strides = array<i32>} : memref<49x346xf32, #tpu.memory_space<vmem>>, vector<1x346xf32>,
    %c0_390 = arith.constant 0 : index
    %c1_391 = arith.constant 1 : index
    %c115_392 = arith.constant 115 : index
    %396 = vector.load %arg2[%c0_390, %c1_391, %c115_392] : memref<1x2x484xbf16, #tpu.memory_space<vmem>>, vector<1x1x346xbf16>
    %397 = vector.shape_cast %396 : vector<1x1x346xbf16> to vector<1x346xbf16>
    %398 = arith.extf %397 : vector<1x346xbf16> to vector<1x346xf32>
    %c40_393 = arith.constant 40 : index
    %c0_394 = arith.constant 0 : index
    %399 = vector.load %arg10[%c40_393, %c0_394] : memref<49x346xf32, #tpu.memory_space<vmem>>, vector<1x346xf32>
    tpu.vector_store %arg10[%c40_393, %c0_394], %398 {strides = array<i32>} : memref<49x346xf32, #tpu.memory_space<vmem>>, vector<1x346xf32>,
    %c0_395 = arith.constant 0 : index
    %c1_396 = arith.constant 1 : index
    %c116_397 = arith.constant 116 : index
    %400 = vector.load %arg2[%c0_395, %c1_396, %c116_397] : memref<1x2x484xbf16, #tpu.memory_space<vmem>>, vector<1x1x346xbf16>
    %401 = vector.shape_cast %400 : vector<1x1x346xbf16> to vector<1x346xbf16>
    %402 = arith.extf %401 : vector<1x346xbf16> to vector<1x346xf32>
    %c41_398 = arith.constant 41 : index
    %c0_399 = arith.constant 0 : index
    %403 = vector.load %arg10[%c41_398, %c0_399] : memref<49x346xf32, #tpu.memory_space<vmem>>, vector<1x346xf32>
    tpu.vector_store %arg10[%c41_398, %c0_399], %402 {strides = array<i32>} : memref<49x346xf32, #tpu.memory_space<vmem>>, vector<1x346xf32>,
    %c0_400 = arith.constant 0 : index
    %c1_401 = arith.constant 1 : index
    %c132_402 = arith.constant 132 : index
    %404 = vector.load %arg2[%c0_400, %c1_401, %c132_402] : memref<1x2x484xbf16, #tpu.memory_space<vmem>>, vector<1x1x346xbf16>
    %405 = vector.shape_cast %404 : vector<1x1x346xbf16> to vector<1x346xbf16>
    %406 = arith.extf %405 : vector<1x346xbf16> to vector<1x346xf32>
    %c42_403 = arith.constant 42 : index
    %c0_404 = arith.constant 0 : index
    %407 = vector.load %arg10[%c42_403, %c0_404] : memref<49x346xf32, #tpu.memory_space<vmem>>, vector<1x346xf32>
    tpu.vector_store %arg10[%c42_403, %c0_404], %406 {strides = array<i32>} : memref<49x346xf32, #tpu.memory_space<vmem>>, vector<1x346xf32>,
    %c0_405 = arith.constant 0 : index
    %c1_406 = arith.constant 1 : index
    %c133_407 = arith.constant 133 : index
    %408 = vector.load %arg2[%c0_405, %c1_406, %c133_407] : memref<1x2x484xbf16, #tpu.memory_space<vmem>>, vector<1x1x346xbf16>
    %409 = vector.shape_cast %408 : vector<1x1x346xbf16> to vector<1x346xbf16>
    %410 = arith.extf %409 : vector<1x346xbf16> to vector<1x346xf32>
    %c43_408 = arith.constant 43 : index
    %c0_409 = arith.constant 0 : index
    %411 = vector.load %arg10[%c43_408, %c0_409] : memref<49x346xf32, #tpu.memory_space<vmem>>, vector<1x346xf32>
    tpu.vector_store %arg10[%c43_408, %c0_409], %410 {strides = array<i32>} : memref<49x346xf32, #tpu.memory_space<vmem>>, vector<1x346xf32>,
    %c0_410 = arith.constant 0 : index
    %c1_411 = arith.constant 1 : index
    %c134_412 = arith.constant 134 : index
    %412 = vector.load %arg2[%c0_410, %c1_411, %c134_412] : memref<1x2x484xbf16, #tpu.memory_space<vmem>>, vector<1x1x346xbf16>
    %413 = vector.shape_cast %412 : vector<1x1x346xbf16> to vector<1x346xbf16>
    %414 = arith.extf %413 : vector<1x346xbf16> to vector<1x346xf32>
    %c44_413 = arith.constant 44 : index
    %c0_414 = arith.constant 0 : index
    %415 = vector.load %arg10[%c44_413, %c0_414] : memref<49x346xf32, #tpu.memory_space<vmem>>, vector<1x346xf32>
    tpu.vector_store %arg10[%c44_413, %c0_414], %414 {strides = array<i32>} : memref<49x346xf32, #tpu.memory_space<vmem>>, vector<1x346xf32>,
    %c0_415 = arith.constant 0 : index
    %c1_416 = arith.constant 1 : index
    %c135_417 = arith.constant 135 : index
    %416 = vector.load %arg2[%c0_415, %c1_416, %c135_417] : memref<1x2x484xbf16, #tpu.memory_space<vmem>>, vector<1x1x346xbf16>
    %417 = vector.shape_cast %416 : vector<1x1x346xbf16> to vector<1x346xbf16>
    %418 = arith.extf %417 : vector<1x346xbf16> to vector<1x346xf32>
    %c45_418 = arith.constant 45 : index
    %c0_419 = arith.constant 0 : index
    %419 = vector.load %arg10[%c45_418, %c0_419] : memref<49x346xf32, #tpu.memory_space<vmem>>, vector<1x346xf32>
    tpu.vector_store %arg10[%c45_418, %c0_419], %418 {strides = array<i32>} : memref<49x346xf32, #tpu.memory_space<vmem>>, vector<1x346xf32>,
    %c0_420 = arith.constant 0 : index
    %c1_421 = arith.constant 1 : index
    %c136_422 = arith.constant 136 : index
    %420 = vector.load %arg2[%c0_420, %c1_421, %c136_422] : memref<1x2x484xbf16, #tpu.memory_space<vmem>>, vector<1x1x346xbf16>
    %421 = vector.shape_cast %420 : vector<1x1x346xbf16> to vector<1x346xbf16>
    %422 = arith.extf %421 : vector<1x346xbf16> to vector<1x346xf32>
    %c46_423 = arith.constant 46 : index
    %c0_424 = arith.constant 0 : index
    %423 = vector.load %arg10[%c46_423, %c0_424] : memref<49x346xf32, #tpu.memory_space<vmem>>, vector<1x346xf32>
    tpu.vector_store %arg10[%c46_423, %c0_424], %422 {strides = array<i32>} : memref<49x346xf32, #tpu.memory_space<vmem>>, vector<1x346xf32>,
    %c0_425 = arith.constant 0 : index
    %c1_426 = arith.constant 1 : index
    %c137_427 = arith.constant 137 : index
    %424 = vector.load %arg2[%c0_425, %c1_426, %c137_427] : memref<1x2x484xbf16, #tpu.memory_space<vmem>>, vector<1x1x346xbf16>
    %425 = vector.shape_cast %424 : vector<1x1x346xbf16> to vector<1x346xbf16>
    %426 = arith.extf %425 : vector<1x346xbf16> to vector<1x346xf32>
    %c47_428 = arith.constant 47 : index
    %c0_429 = arith.constant 0 : index
    %427 = vector.load %arg10[%c47_428, %c0_429] : memref<49x346xf32, #tpu.memory_space<vmem>>, vector<1x346xf32>
    tpu.vector_store %arg10[%c47_428, %c0_429], %426 {strides = array<i32>} : memref<49x346xf32, #tpu.memory_space<vmem>>, vector<1x346xf32>,
    %c0_430 = arith.constant 0 : index
    %c1_431 = arith.constant 1 : index
    %c138_432 = arith.constant 138 : index
    %428 = vector.load %arg2[%c0_430, %c1_431, %c138_432] : memref<1x2x484xbf16, #tpu.memory_space<vmem>>, vector<1x1x346xbf16>
    %429 = vector.shape_cast %428 : vector<1x1x346xbf16> to vector<1x346xbf16>
    %430 = arith.extf %429 : vector<1x346xbf16> to vector<1x346xf32>
    %c48_433 = arith.constant 48 : index
    %c0_434 = arith.constant 0 : index
    %431 = vector.load %arg10[%c48_433, %c0_434] : memref<49x346xf32, #tpu.memory_space<vmem>>, vector<1x346xf32>
    tpu.vector_store %arg10[%c48_433, %c0_434], %430 {strides = array<i32>} : memref<49x346xf32, #tpu.memory_space<vmem>>, vector<1x346xf32>,
    %c0_435 = arith.constant 0 : index
    %c0_436 = arith.constant 0 : index
    %432 = vector.load %arg10[%c0_435, %c0_436] : memref<49x346xf32, #tpu.memory_space<vmem>>, vector<49x346xf32>
    %433 = arith.truncf %432 : vector<49x346xf32> to vector<49x346xbf16>
    %cst_437 = arith.constant dense<0.000000e+00> : vector<64x346xf32>
    %434 = tpu.matmul %1, %433, %cst_437 {dimension_numbers = #tpu.dot_dimension_numbers<[1], [0], [0], [1], [0, 0, 1, 1], [], []>} : vector<64x49xbf16>, vector<49x346xbf16>, vector<64x346xf32> -> vector<64x346xf32>
    %435 = vector.broadcast %3 : vector<64x1xf32> to vector<64x346xf32>
    %436 = arith.addf %434, %435 : vector<64x346xf32>
    %cst_438 = arith.constant 9.99999997E-7 : f32
    %437 = vector.broadcast %cst_438 : f32 to vector<64x346xf32>
    %438 = arith.maximumf %436, %437 : vector<64x346xf32>
    %439 = arith.mulf %438, %438 : vector<64x346xf32>
    %440 = arith.mulf %439, %438 : vector<64x346xf32>
    %441 = vector.broadcast %9 : vector<1x346xf32> to vector<64x346xf32>
    %442 = arith.mulf %440, %441 : vector<64x346xf32>
    %cst_439 = arith.constant dense<0.000000e+00> : vector<64xf32>
    %443 = vector.multi_reduction <add>, %442, %cst_439 [1] : vector<64x346xf32> to vector<64xf32>
    %444 = vector.shape_cast %443 : vector<64xf32> to vector<64x1xf32>
    %cst_440 = arith.constant 3.906250e-03 : f32
    %445 = vector.broadcast %cst_440 : f32 to vector<64x1xf32>
    %446 = arith.mulf %444, %445 : vector<64x1xf32>
    %447 = math.log %446 : vector<64x1xf32>
    %448 = vector.broadcast %12 : f32 to vector<64x1xf32>
    %449 = arith.mulf %447, %448 : vector<64x1xf32>
    %450 = math.exp %449 : vector<64x1xf32>
    %451 = vector.broadcast %450 : vector<64x1xf32> to vector<64x256xf32>
    %452 = arith.mulf %451, %6 : vector<64x256xf32>
    %cst_441 = arith.constant dense<0.000000e+00> : vector<256xf32>
    %453 = vector.multi_reduction <add>, %452, %cst_441 [0] : vector<64x256xf32> to vector<256xf32>
    %454 = vector.shape_cast %453 : vector<256xf32> to vector<1x256xf32>
    %455 = arith.addf %454, %8 : vector<1x256xf32>
    %c0_442 = arith.constant 0 : index
    %c1_443 = arith.constant 1 : index
    %c0_444 = arith.constant 0 : index
    %456 = vector.load %arg9[%c0_442, %c1_443, %c0_444] : memref<1x2x256xf32, #tpu.memory_space<vmem>>, vector<1x1x256xf32>
    %457 = vector.shape_cast %456 : vector<1x1x256xf32> to vector<1x256xf32>
    %458 = vector.shape_cast %455 : vector<1x256xf32> to vector<1x1x256xf32>
    tpu.vector_store %arg9[%c0_442, %c1_443, %c0_444], %458 {strides = array<i32>} : memref<1x2x256xf32, #tpu.memory_space<vmem>>, vector<1x1x256xf32>,
    return
  }
  func.func @transform_0(%arg0: i32, %arg1: memref<3xi32, #tpu.memory_space<smem>>) -> (i32, i32, i32) {
    %0 = arith.index_cast %arg0 : i32 to index
    %1 = memref.load %arg1[%0] : memref<3xi32, #tpu.memory_space<smem>>
    %c0_i32 = arith.constant 0 : i32
    %c0_i32_0 = arith.constant 0 : i32
    %c0_i32_1 = arith.constant 0 : i32
    return %1, %c0_i32, %c0_i32_0 : i32, i32, i32
  }
  func.func @transform_1(%arg0: i32, %arg1: memref<3xi32, #tpu.memory_space<smem>>) -> (i32, i32) {
    %c0_i32 = arith.constant 0 : i32
    %c0_i32_0 = arith.constant 0 : i32
    %c0_i32_1 = arith.constant 0 : i32
    return %c0_i32, %c0_i32_0 : i32, i32
  }
  func.func @transform_2(%arg0: i32, %arg1: memref<3xi32, #tpu.memory_space<smem>>) -> (i32, i32, i32) {
    %c0_i32 = arith.constant 0 : i32
    %c0_i32_0 = arith.constant 0 : i32
    %c0_i32_1 = arith.constant 0 : i32
    return %arg0, %c0_i32, %c0_i32_0 : i32, i32, i32
  }
  func.func @transform_3(%arg0: i32, %arg1: memref<3xi32, #tpu.memory_space<smem>>) -> (i32, i32, i32) {
    %c0_i32 = arith.constant 0 : i32
    %c0_i32_0 = arith.constant 0 : i32
    %c0_i32_1 = arith.constant 0 : i32
    return %arg0, %c0_i32, %c0_i32_0 : i32, i32, i32
  }
  func.func @transform_4(%arg0: i32, %arg1: memref<3xi32, #tpu.memory_space<smem>>) -> i32 {
    %c0_i32 = arith.constant 0 : i32
    %c0_i32_0 = arith.constant 0 : i32
    return %c0_i32 : i32
  }
  func.func @transform_5(%arg0: i32, %arg1: memref<3xi32, #tpu.memory_space<smem>>) -> (i32, i32, i32) {
    %c0_i32 = arith.constant 0 : i32
    %c0_i32_0 = arith.constant 0 : i32
    %c0_i32_1 = arith.constant 0 : i32
    return %arg0, %c0_i32, %c0_i32_0 : i32, i32, i32
  }
  func.func @transform_6(%arg0: i32, %arg1: memref<3xi32, #tpu.memory_space<smem>>) -> (i32, i32, i32) {
    %c0_i32 = arith.constant 0 : i32
    %c0_i32_0 = arith.constant 0 : i32
    %c0_i32_1 = arith.constant 0 : i32
    return %arg0, %c0_i32, %c0_i32_0 : i32, i32, i32
  }
  func.func @transform_7(%arg0: i32, %arg1: memref<3xi32, #tpu.memory_space<smem>>) -> (i32, i32, i32) {
    %c0_i32 = arith.constant 0 : i32
    %c0_i32_0 = arith.constant 0 : i32
    %c0_i32_1 = arith.constant 0 : i32
    return %arg0, %c0_i32, %c0_i32_0 : i32, i32, i32
  }
}

</mosaic_0001>

<llo_original>
// kernel: tpu_custom_call.1
$region0: #{tpu_custom_call.1}
  #allocation0 [shape = 'u32[]', space=smem, size = 0x4, offset = 0x4, fixed_abs, tag = 'smem constant byte address 0x4 - core index']
  #allocation1 [shape = 'u32[144,128]{1,0:T(1,128)}', space=vmem, size = 0x12000, scoped, tag = 'internal scratch']
  #allocation2 [shape = 'f32[49,346]{1,0:T(8,128)}', space=vmem, size = 0x15000, scoped, tag = 'scratch operand']
  #allocation3 [shape = 's32[1]{0}', space=sflag, size = 0x4, scoped, tag = 'scoped memory for tpu_custom_call.1']
  #allocation4 [shape = 'u8[512]{0}', space=smem, size = 0x200, scoped, tag = 'prefetched SMEM operand 0']
  %s0 = inlined_call_operand.vmem [shape: s32[3], index: 0, kind: input, shape index: {}]
  %s1 = inlined_call_operand.vmem [shape: bf16[2,2,484], index: 1, kind: input, shape index: {}]
  %s2 = inlined_call_operand.vmem [shape: f32[1,346], index: 2, kind: input, shape index: {}]
  %s3 = inlined_call_operand.vmem [shape: bf16[3,64,49], index: 3, kind: input, shape index: {}]
  %s4 = inlined_call_operand.vmem [shape: f32[3,64,1], index: 4, kind: input, shape index: {}]
  %s5 = inlined_call_operand.vmem [shape: f32[3], index: 5, kind: input, shape index: {}]
  %s6 = inlined_call_operand.vmem [shape: bf16[3,64,256], index: 6, kind: input, shape index: {}]
  %s7 = inlined_call_operand.vmem [shape: f32[3,1,256], index: 7, kind: input, shape index: {}]
  %s8 = inlined_call_operand.hbm [shape: f32[3,2,256], index: 8, kind: output, shape index: {}]
  %s9 = sld [smem:[#allocation0]]
  $region65: #{tpu_custom_call.1} parent=0
    _
  %s11 = ssub.s32 1, %s9
  %s12 = scalar_select 0, %s11, %s9
  %s13 = sshll.u32 %s0, 4
  %s14 = int_to_ptr.vmem [resolvable:$true] %s13
  %16 = dma.vmem_to_smem %s14, 16, [#allocation4], [#allocation3]
  %17 = dma.done [#allocation3], 16
  %18 = sfence
  $region1: #{tpu_custom_call.1} parent=0
    #allocation5 [shape = 'u8[512]{0}', space=smem, size = 0x200, scoped, tag = 'input window, operand 5, single buffered']
    #allocation6 [shape = 's32[2]{0}', space=sflag, size = 0x8, scoped, tag = 'scoped memory for tpu_custom_call.1']
    #allocation7 [shape = 's32[2]{0}', space=sflag, size = 0x8, scoped, tag = 'scoped memory for tpu_custom_call.1']
    #allocation8 [shape = 'u8[4096]{0}', space=vmem, size = 0x1000, scoped, tag = 'output window, operand 0']
    %19 = vsyncpa [#allocation7], 0
    %20 = vsyncpa [#allocation6], 0
    %s21 = scalar_lea.sflag [#allocation6], 1
    %22 = vsyncpa %s21, 0
    loop: start=0, step=1, limit=5
    $region2: #{tpu_custom_call.1} parent=1 // loop_pre_header
      _
    $region3: #{tpu_custom_call.1} parent=1 // loop_header
      %s24 = sphi 0, %s28
      %p25 = scmp.ge.s32.totalorder %s24, 5
      %s36 = sphi 0, %s38
      %s39 = sphi 0, %s36
      %s40 = sphi 0, %s39
      %s56 = sphi 0, %s40
      %s60 = sphi 0, %s60
      %s62 = sphi 0, %s60
      %s63 = sphi 0, %s62
      %s77 = sphi 0, %s63
      %s83 = sphi 0, %s85
      %s86 = sphi 0, %s83
      %s87 = sphi 0, %s86
      %s103 = sphi 0, %s87
      %s109 = sphi 0, %s111
      %s112 = sphi 0, %s109
      %s113 = sphi 0, %s112
      %s129 = sphi 0, %s113
      %s133 = sphi 0, %s133
      %s135 = sphi 0, %s133
      %s136 = sphi 0, %s135
      %s150 = sphi 0, %s136
      %s156 = sphi 0, %s158
      %s159 = sphi 0, %s156
      %s160 = sphi 0, %s159
      %s176 = sphi 0, %s160
      %s182 = sphi 0, %s184
      %s185 = sphi 0, %s182
      %s186 = sphi 0, %s185
      %s202 = sphi 0, %s186
      %s208 = sphi 0, %s210
      %s211 = sphi 0, %s208
      %s212 = sphi 0, %s211
      %s228 = sphi 0, %s212
    $region4: #{tpu_custom_call.1} parent=1 // loop_header_branch
      %27 = sbr.rel (%p25) target = $region8
    $region5: #{tpu_custom_call.1} parent=1 // loop_body
      %s29 = ssub.s32 %s24, 1
      %s30 = ssub.s32 %s24, 2
      %s31 = sadd.s32 %s24, 1
      %s32 = sld [smem:[#allocation4 + %s24]]
      %s33 = sld [smem:[#allocation4 + %s31]]
      %s34 = ssub.s32 %s32, %s33
      %p35 = scmp.eq.s32.totalorder %s34, 0
      %s37 = sadd.s32 %s36, 1
      %s38 = scalar_select %p35, %s36, %s37
      %p41 = pneg %p35
      %p42 = scmp.eq.s32.totalorder %s24, 2
      %p43 = por %p41, %p42
      %p44 = scmp.ne.s32.totalorder %s36, %s39
      %p45 = scmp.eq.s32.totalorder %s24, 0
      %p46 = por %p44, %p45
      %p47 = scmp.ne.s32.totalorder %s36, %s39
      %p48 = scmp.eq.s32.totalorder %s29, 2
      %p49 = por %p47, %p48
      %p50 = scmp.ne.s32.totalorder %s39, %s40
      %p51 = scmp.eq.s32.totalorder %s29, 0
      %p52 = por %p50, %p51
      %p53 = scmp.ne.s32.totalorder %s39, %s40
      %p54 = scmp.eq.s32.totalorder %s30, 2
      %p55 = por %p53, %p54
      %p57 = scmp.ne.s32.totalorder %s40, %s56
      %p58 = scmp.eq.s32.totalorder %s30, 0
      %p59 = por %p57, %p58
      %s61 = sadd.s32 %s60, 1
      %p64 = scmp.eq.s32.totalorder %s24, 2
      %p65 = scmp.ne.s32.totalorder %s60, %s62
      %p66 = scmp.eq.s32.totalorder %s24, 0
      %p67 = por %p65, %p66
      %p68 = scmp.ne.s32.totalorder %s60, %s62
      %p69 = scmp.eq.s32.totalorder %s29, 2
      %p70 = por %p68, %p69
      %p71 = scmp.ne.s32.totalorder %s62, %s63
      %p72 = scmp.eq.s32.totalorder %s29, 0
      %p73 = por %p71, %p72
      %p74 = scmp.ne.s32.totalorder %s62, %s63
      %p75 = scmp.eq.s32.totalorder %s30, 2
      %p76 = por %p74, %p75
      %p78 = scmp.ne.s32.totalorder %s63, %s77
      %p79 = scmp.eq.s32.totalorder %s30, 0
      %p80 = por %p78, %p79
      %s81 = ssub.s32 %s24, %s31
      %p82 = scmp.eq.s32.totalorder %s81, 0
      %s84 = sadd.s32 %s83, 1
      %s85 = scalar_select %p82, %s83, %s84
      %p88 = pneg %p82
      %p89 = scmp.eq.s32.totalorder %s24, 2
      %p90 = por %p88, %p89
      %p91 = scmp.ne.s32.totalorder %s83, %s86
      %p92 = scmp.eq.s32.totalorder %s24, 0
      %p93 = por %p91, %p92
      %p94 = scmp.ne.s32.totalorder %s83, %s86
      %p95 = scmp.eq.s32.totalorder %s29, 2
      %p96 = por %p94, %p95
      %p97 = scmp.ne.s32.totalorder %s86, %s87
      %p98 = scmp.eq.s32.totalorder %s29, 0
      %p99 = por %p97, %p98
      %p100 = scmp.ne.s32.totalorder %s86, %s87
      %p101 = scmp.eq.s32.totalorder %s30, 2
      %p102 = por %p100, %p101
      %p104 = scmp.ne.s32.totalorder %s87, %s103
      %p105 = scmp.eq.s32.totalorder %s30, 0
      %p106 = por %p104, %p105
      %s107 = ssub.s32 %s24, %s31
      %p108 = scmp.eq.s32.totalorder %s107, 0
      %s110 = sadd.s32 %s109, 1
      %s111 = scalar_select %p108, %s109, %s110
      %p114 = pneg %p108
      %p115 = scmp.eq.s32.totalorder %s24, 2
      %p116 = por %p114, %p115
      %p117 = scmp.ne.s32.totalorder %s109, %s112
      %p118 = scmp.eq.s32.totalorder %s24, 0
      %p119 = por %p117, %p118
      %p120 = scmp.ne.s32.totalorder %s109, %s112
      %p121 = scmp.eq.s32.totalorder %s29, 2
      %p122 = por %p120, %p121
      %p123 = scmp.ne.s32.totalorder %s112, %s113
      %p124 = scmp.eq.s32.totalorder %s29, 0
      %p125 = por %p123, %p124
      %p126 = scmp.ne.s32.totalorder %s112, %s113
      %p127 = scmp.eq.s32.totalorder %s30, 2
      %p128 = por %p126, %p127
      %p130 = scmp.ne.s32.totalorder %s113, %s129
      %p131 = scmp.eq.s32.totalorder %s30, 0
      %p132 = por %p130, %p131
      %s134 = sadd.s32 %s133, 1
      %p137 = scmp.eq.s32.totalorder %s24, 2
      %p138 = scmp.ne.s32.totalorder %s133, %s135
      %p139 = scmp.eq.s32.totalorder %s24, 0
      %p140 = por %p138, %p139
      %p141 = scmp.ne.s32.totalorder %s133, %s135
      %p142 = scmp.eq.s32.totalorder %s29, 2
      %p143 = por %p141, %p142
      %p144 = scmp.ne.s32.totalorder %s135, %s136
      %p145 = scmp.eq.s32.totalorder %s29, 0
      %p146 = por %p144, %p145
      %p147 = scmp.ne.s32.totalorder %s135, %s136
      %p148 = scmp.eq.s32.totalorder %s30, 2
      %p149 = por %p147, %p148
      %p151 = scmp.ne.s32.totalorder %s136, %s150
      %p152 = scmp.eq.s32.totalorder %s30, 0
      %p153 = por %p151, %p152
      %s154 = ssub.s32 %s24, %s31
      %p155 = scmp.eq.s32.totalorder %s154, 0
      %s157 = sadd.s32 %s156, 1
      %s158 = scalar_select %p155, %s156, %s157
      %p161 = pneg %p155
      %p162 = scmp.eq.s32.totalorder %s24, 2
      %p163 = por %p161, %p162
      %p164 = scmp.ne.s32.totalorder %s156, %s159
      %p165 = scmp.eq.s32.totalorder %s24, 0
      %p166 = por %p164, %p165
      %p167 = scmp.ne.s32.totalorder %s156, %s159
      %p168 = scmp.eq.s32.totalorder %s29, 2
      %p169 = por %p167, %p168
      %p170 = scmp.ne.s32.totalorder %s159, %s160
      %p171 = scmp.eq.s32.totalorder %s29, 0
      %p172 = por %p170, %p171
      %p173 = scmp.ne.s32.totalorder %s159, %s160
      %p174 = scmp.eq.s32.totalorder %s30, 2
      %p175 = por %p173, %p174
      %p177 = scmp.ne.s32.totalorder %s160, %s176
      %p178 = scmp.eq.s32.totalorder %s30, 0
      %p179 = por %p177, %p178
      %s180 = ssub.s32 %s24, %s31
      %p181 = scmp.eq.s32.totalorder %s180, 0
      %s183 = sadd.s32 %s182, 1
      %s184 = scalar_select %p181, %s182, %s183
      %p187 = pneg %p181
      %p188 = scmp.eq.s32.totalorder %s24, 2
      %p189 = por %p187, %p188
      %p190 = scmp.ne.s32.totalorder %s182, %s185
      %p191 = scmp.eq.s32.totalorder %s24, 0
      %p192 = por %p190, %p191
      %p193 = scmp.ne.s32.totalorder %s182, %s185
      %p194 = scmp.eq.s32.totalorder %s29, 2
      %p195 = por %p193, %p194
      %p196 = scmp.ne.s32.totalorder %s185, %s186
      %p197 = scmp.eq.s32.totalorder %s29, 0
      %p198 = por %p196, %p197
      %p199 = scmp.ne.s32.totalorder %s185, %s186
      %p200 = scmp.eq.s32.totalorder %s30, 2
      %p201 = por %p199, %p200
      %p203 = scmp.ne.s32.totalorder %s186, %s202
      %p204 = scmp.eq.s32.totalorder %s30, 0
      %p205 = por %p203, %p204
      %s206 = ssub.s32 %s24, %s31
      %p207 = scmp.eq.s32.totalorder %s206, 0
      %s209 = sadd.s32 %s208, 1
      %s210 = scalar_select %p207, %s208, %s209
      %p213 = pneg %p207
      %p214 = scmp.eq.s32.totalorder %s24, 2
      %p215 = por %p213, %p214
      %p216 = scmp.ne.s32.totalorder %s208, %s211
      %p217 = scmp.eq.s32.totalorder %s24, 0
      %p218 = por %p216, %p217
      %p219 = scmp.ne.s32.totalorder %s208, %s211
      %p220 = scmp.eq.s32.totalorder %s29, 2
      %p221 = por %p219, %p220
      %p222 = scmp.ne.s32.totalorder %s211, %s212
      %p223 = scmp.eq.s32.totalorder %s29, 0
      %p224 = por %p222, %p223
      %p225 = scmp.ne.s32.totalorder %s211, %s212
      %p226 = scmp.eq.s32.totalorder %s30, 2
      %p227 = por %p225, %p226
      %p229 = scmp.ne.s32.totalorder %s212, %s228
      %p230 = scmp.eq.s32.totalorder %s30, 0
      %p231 = por %p229, %p230
      %p232 = scmp.le.s32.totalorder 1, %s24
      %p233 = scmp.lt.s32.totalorder %s24, 4
      %p234 = pnand %p232, %p233
      %p235 = pneg %p234
      // Predicated region
      $region9: #{tpu_custom_call.1} parent=5 // pred_check
        _
      $region10: #{tpu_custom_call.1} parent=5 // pred_check_branch
        %237 = sbr.rel (%p234) target = $region12
      $region11: #{tpu_custom_call.1} parent=5 // pred_region
        %s238 = ssub.s32 %s24, 1
        // Predicated region
        $region13: #{tpu_custom_call.1} parent=11 // pred_check
          %p239 = pneg %p73
        $region14: #{tpu_custom_call.1} parent=11 // pred_check_branch
          %241 = sbr.rel (%p239) target = $region16
        $region15: #{tpu_custom_call.1} parent=11 // pred_region
          _
        $region16: #{tpu_custom_call.1} parent=11 // pred_fallthru
          _
        // Predicated region
        $region17: #{tpu_custom_call.1} parent=11 // pred_check
          %p242 = pneg %p146
        $region18: #{tpu_custom_call.1} parent=11 // pred_check_branch
          %244 = sbr.rel (%p242) target = $region20
        $region19: #{tpu_custom_call.1} parent=11 // pred_region
          %s246 = ssub.s32 16, 16
          %247 = vsyncadd [#allocation7], %s246
          %s249 = sshll.u32 %s5, 4
          %s250 = int_to_ptr.vmem [resolvable:$true] %s249
          %252 = dma.vmem_to_smem %s250, 16, [#allocation5], [#allocation7]
        $region20: #{tpu_custom_call.1} parent=11 // pred_fallthru
          _
      $region12: #{tpu_custom_call.1} parent=5 // pred_fallthru
        _
      %p253 = scmp.lt.s32.totalorder %s24, 3
      // Predicated region
      $region21: #{tpu_custom_call.1} parent=5 // pred_check
        %p254 = pneg %p253
      $region22: #{tpu_custom_call.1} parent=5 // pred_check_branch
        %256 = sbr.rel (%p254) target = $region24
      $region23: #{tpu_custom_call.1} parent=5 // pred_region
        // Predicated region
        $region25: #{tpu_custom_call.1} parent=23 // pred_check
          %p257 = pneg %p46
        $region26: #{tpu_custom_call.1} parent=23 // pred_check_branch
          %259 = sbr.rel (%p257) target = $region28
        $region27: #{tpu_custom_call.1} parent=23 // pred_region
          %s260 = sld [smem:[#allocation4 + %s24]]
          %p261 = scmp.lt.s32.totalorder %s260, 1
          %s262 = scalar_select %p261, %s260, 1
          %s263 = smul.addr %s262, 4
          %s264 = scalar_lea.vmem %s1, %s263
          %s265 = sld [smem:[#allocation4 + %s24]]
        $region28: #{tpu_custom_call.1} parent=23 // pred_fallthru
          _
        // Predicated region
        $region29: #{tpu_custom_call.1} parent=23 // pred_check
          %p266 = pneg %p93
        $region30: #{tpu_custom_call.1} parent=23 // pred_check_branch
          %268 = sbr.rel (%p266) target = $region32
        $region31: #{tpu_custom_call.1} parent=23 // pred_region
          %p269 = scmp.lt.s32.totalorder %s24, 2
          %s270 = scalar_select %p269, %s24, 2
          %s271 = smul.addr %s270, 8
          %s272 = smul.addr %s271, 4
          %s273 = scalar_lea.vmem %s3, %s272
        $region32: #{tpu_custom_call.1} parent=23 // pred_fallthru
          _
        // Predicated region
        $region33: #{tpu_custom_call.1} parent=23 // pred_check
          %p274 = pneg %p119
        $region34: #{tpu_custom_call.1} parent=23 // pred_check_branch
          %276 = sbr.rel (%p274) target = $region36
        $region35: #{tpu_custom_call.1} parent=23 // pred_region
          %p277 = scmp.lt.s32.totalorder %s24, 2
          %s278 = scalar_select %p277, %s24, 2
          %s279 = smul.addr %s278, 8
          %s280 = smul.addr %s279, 8
          %s281 = scalar_lea.vmem %s4, %s280
        $region36: #{tpu_custom_call.1} parent=23 // pred_fallthru
          _
        // Predicated region
        $region37: #{tpu_custom_call.1} parent=23 // pred_check
          %p282 = pneg %p166
        $region38: #{tpu_custom_call.1} parent=23 // pred_check_branch
          %284 = sbr.rel (%p282) target = $region40
        $region39: #{tpu_custom_call.1} parent=23 // pred_region
          %p285 = scmp.lt.s32.totalorder %s24, 2
          %s286 = scalar_select %p285, %s24, 2
          %s287 = smul.addr %s286, 16
          %s288 = smul.addr %s287, 4
          %s289 = scalar_lea.vmem %s6, %s288
        $region40: #{tpu_custom_call.1} parent=23 // pred_fallthru
          _
        // Predicated region
        $region41: #{tpu_custom_call.1} parent=23 // pred_check
          %p290 = pneg %p192
        $region42: #{tpu_custom_call.1} parent=23 // pred_check_branch
          %292 = sbr.rel (%p290) target = $region44
        $region43: #{tpu_custom_call.1} parent=23 // pred_region
          %p293 = scmp.lt.s32.totalorder %s24, 2
          %s294 = scalar_select %p293, %s24, 2
          %s295 = smul.addr %s294, 2
          %s296 = scalar_lea.vmem %s7, %s295
        $region44: #{tpu_custom_call.1} parent=23 // pred_fallthru
          _
      $region24: #{tpu_custom_call.1} parent=5 // pred_fallthru
        _
      %p297 = scmp.le.s32.totalorder 1, %s24
      %p298 = scmp.lt.s32.totalorder %s24, 4
      %p299 = pnand %p297, %p298
      %p300 = pneg %p299
      // Predicated region
      $region45: #{tpu_custom_call.1} parent=5 // pred_check
        _
      $region46: #{tpu_custom_call.1} parent=5 // pred_check_branch
        %302 = sbr.rel (%p299) target = $region48
      $region47: #{tpu_custom_call.1} parent=5 // pred_region
        %s303 = ssub.s32 %s24, 1
        // Predicated region
        $region49: #{tpu_custom_call.1} parent=47 // pred_check
          %p304 = pneg %p146
        $region50: #{tpu_custom_call.1} parent=47 // pred_check_branch
          %306 = sbr.rel (%p304) target = $region52
        $region51: #{tpu_custom_call.1} parent=47 // pred_region
          %307 = dma.done [#allocation7], 16
        $region52: #{tpu_custom_call.1} parent=47 // pred_fallthru
          _
        %308 = sfence
        %s309 = sld [smem:[#allocation4 + %s29]]
        %p310 = scmp.lt.s32.totalorder %s309, 1
        %s311 = scalar_select %p310, %s309, 1
        %s312 = smul.addr %s311, 4
        %s313 = scalar_lea.vmem %s1, %s312
        %p314 = pneg %p52
        %p315 = pneg %p49
        %p316 = pneg %p73
        %p317 = pneg %p70
        %p318 = scmp.lt.s32.totalorder %s29, 2
        %s319 = scalar_select %p318, %s29, 2
        %s320 = smul.addr %s319, 8
        %s321 = smul.addr %s320, 4
        %s322 = scalar_lea.vmem %s3, %s321
        %p323 = pneg %p99
        %p324 = pneg %p96
        %p325 = scmp.lt.s32.totalorder %s29, 2
        %s326 = scalar_select %p325, %s29, 2
        %s327 = smul.addr %s326, 8
        %s328 = smul.addr %s327, 8
        %s329 = scalar_lea.vmem %s4, %s328
        %p330 = pneg %p125
        %p331 = pneg %p122
        %p332 = pneg %p146
        %p333 = pneg %p143
        %p334 = scmp.lt.s32.totalorder %s29, 2
        %s335 = scalar_select %p334, %s29, 2
        %s336 = smul.addr %s335, 16
        %s337 = smul.addr %s336, 4
        %s338 = scalar_lea.vmem %s6, %s337
        %p339 = pneg %p172
        %p340 = pneg %p169
        %p341 = scmp.lt.s32.totalorder %s29, 2
        %s342 = scalar_select %p341, %s29, 2
        %s343 = smul.addr %s342, 2
        %s344 = scalar_lea.vmem %s7, %s343
        %p345 = pneg %p198
        %p346 = pneg %p195
        %p347 = pneg %p224
        %p348 = pneg %p221
        %s349 = sand.u32 %s211, 1
        %s350 = scalar_lea.sflag [#allocation6], %s349
        %s351 = sand.u32 %s211, 1
        %s352 = smul.addr %s351, 4
        %s353 = scalar_lea.vmem [#allocation8], %s352
        %s354 = sld [smem:[#allocation4 + %s29]]
        %p355 = scmp.lt.s32.totalorder %s354, 1
        %s356 = scalar_select %p355, %s354, 1
        %s357 = smul.addr %s356, 4
        %s358 = scalar_lea.vmem %s1, %s357
        %s359 = sld [smem:[#allocation4 + %s29]]
        %p360 = scmp.lt.s32.totalorder %s29, 2
        %s361 = scalar_select %p360, %s29, 2
        %s362 = smul.addr %s361, 8
        %s363 = smul.addr %s362, 4
        %s364 = scalar_lea.vmem %s3, %s363
        %p365 = scmp.lt.s32.totalorder %s29, 2
        %s366 = scalar_select %p365, %s29, 2
        %s367 = smul.addr %s366, 8
        %s368 = smul.addr %s367, 8
        %s369 = scalar_lea.vmem %s4, %s368
        %p370 = scmp.lt.s32.totalorder %s29, 2
        %s371 = scalar_select %p370, %s29, 2
        %s372 = smul.addr %s371, 16
        %s373 = smul.addr %s372, 4
        %s374 = scalar_lea.vmem %s6, %s373
        %p375 = scmp.lt.s32.totalorder %s29, 2
        %s376 = scalar_select %p375, %s29, 2
        %s377 = smul.addr %s376, 2
        %s378 = scalar_lea.vmem %s7, %s377
        %v380 = vld [vmem:[%s364] sm:$0xf]
        %v381 = vld [vmem:[%s364 + $0x4] sm:$0xf]
        %v382 = vld [vmem:[%s364 + $0x8] sm:$0xf]
        %v383 = vld [vmem:[%s364 + $0xc] sm:$0xf]
        %v384 = vld [vmem:[%s364 + $0x10] sm:$0xf]
        %v385 = vld [vmem:[%s364 + $0x14] sm:$0xf]
        %v386 = vld [vmem:[%s364 + $0x18] sm:$0xf]
        %v387 = vld [vmem:[%s364 + $0x1c] sm:$0xf]
        %v388 = vld [vmem:[%s369] sm:$0xff]
        %v389 = vld [vmem:[%s369 + $0x8] sm:$0xff]
        %v390 = vld [vmem:[%s369 + $0x10] sm:$0xff]
        %v391 = vld [vmem:[%s369 + $0x18] sm:$0xff]
        %v392 = vld [vmem:[%s369 + $0x20] sm:$0xff]
        %v393 = vld [vmem:[%s369 + $0x28] sm:$0xff]
        %v394 = vld [vmem:[%s369 + $0x30] sm:$0xff]
        %v395 = vld [vmem:[%s369 + $0x38] sm:$0xff]
        %v396 = vld [vmem:[%s374] sm:$0xff]
        %v397 = vld [vmem:[%s374 + $0x8] sm:$0xff]
        %v398 = vld [vmem:[%s374 + $0x10] sm:$0xff]
        %v399 = vld [vmem:[%s374 + $0x18] sm:$0xff]
        %v400 = vld [vmem:[%s374 + $0x20] sm:$0xff]
        %v401 = vld [vmem:[%s374 + $0x28] sm:$0xff]
        %v402 = vld [vmem:[%s374 + $0x30] sm:$0xff]
        %v403 = vld [vmem:[%s374 + $0x38] sm:$0xff]
        %v404 = vunpack.c.l.bf16 %v396
        %v405 = vunpack.c.h.bf16 %v396
        %v406 = vunpack.c.l.bf16 %v397
        %v407 = vunpack.c.h.bf16 %v397
        %v408 = vunpack.c.l.bf16 %v398
        %v409 = vunpack.c.h.bf16 %v398
        %v410 = vunpack.c.l.bf16 %v399
        %v411 = vunpack.c.h.bf16 %v399
        %v412 = vunpack.c.l.bf16 %v400
        %v413 = vunpack.c.h.bf16 %v400
        %v414 = vunpack.c.l.bf16 %v401
        %v415 = vunpack.c.h.bf16 %v401
        %v416 = vunpack.c.l.bf16 %v402
        %v417 = vunpack.c.h.bf16 %v402
        %v418 = vunpack.c.l.bf16 %v403
        %v419 = vunpack.c.h.bf16 %v403
        %v420 = vld [vmem:[%s378] sm:$0x3]
        %v421 = vld [vmem:[%s2] sm:$0x7]
        %s422 = sld [smem:[#allocation5 + %s29]]
        %v423 = vstv %s422
        %v424 = vrcp.pop %v423
        %s425 = vtos %v424
        %v426 = vld [vmem:[%s358] sm:$0x7]
        %v427 = vunpack.c.l.bf16 %v426
        %v430 = vunpack.c.l.s4 1966171168
        %v431 = vunpack.c.0.s8 %v430
        %v432 = vlaneseq
        %v433 = vshrl.u32 %v432, 7
        %v434 = vsub.s32 %v431, %v433
        %v435 = vrot.slane %v427, %v434
        %v437 = vlaneseq
        %vm438 = vcmp.ge.s32.totalorder %v437, 0
        %vm439 = vcmp.lt.s32.totalorder %v437, 346
        %vm440 = vmand %vm438, %vm439
        %441 = vst.msk [vmem:[#allocation2] ss:$8 sm:$0x7] %vm440, %v435
        %442 = vst.msk [vmem:[#allocation2] ss:$8 sm:$0x0] %vm440, %v435
        %v443 = vld [vmem:[%s358] sm:$0x7]
        %v444 = vunpack.c.l.bf16 %v443
        %v447 = vunpack.c.l.s4 1966171168
        %v448 = vunpack.c.0.s8 %v447
        %v449 = vlaneseq
        %v450 = vshrl.u32 %v449, 7
        %v451 = vsub.s32 %v448, %v450
        %v452 = vrot.slane %v444, %v451
        %453 = vrot.lane.b32.xlu0 %v452, 127
        %v454 = vpop.permute.xlu0 %453
        %v455 = vrot.slane %v454, 1
        %vm456 = vcmask 1039360
        %v457 = vsel %vm456, %v454, %v455
        %s459 = scalar_lea.vmem [#allocation2], 1
        %460 = vst.msk [vmem:[%s459] ss:$8 sm:$0x7] %vm440, %v457
        %461 = vst.msk [vmem:[%s459] ss:$8 sm:$0x0] %vm440, %v457
        %v462 = vld [vmem:[%s358] sm:$0x7]
        %v463 = vunpack.c.l.bf16 %v462
        %v466 = vunpack.c.l.s4 1966171168
        %v467 = vunpack.c.0.s8 %v466
        %v468 = vlaneseq
        %v469 = vshrl.u32 %v468, 7
        %v470 = vsub.s32 %v467, %v469
        %v471 = vrot.slane %v463, %v470
        %472 = vrot.lane.b32.xlu0 %v471, 126
        %v473 = vpop.permute.xlu0 %472
        %v474 = vrot.slane %v473, 1
        %vm475 = vcmask 1031168
        %v476 = vsel %vm475, %v473, %v474
        %s478 = scalar_lea.vmem [#allocation2], 2
        %479 = vst.msk [vmem:[%s478] ss:$8 sm:$0x7] %vm440, %v476
        %480 = vst.msk [vmem:[%s478] ss:$8 sm:$0x0] %vm440, %v476
        %v481 = vld [vmem:[%s358] sm:$0x7]
        %v482 = vunpack.c.l.bf16 %v481
        %v485 = vunpack.c.l.s4 1966171168
        %v486 = vunpack.c.0.s8 %v485
        %v487 = vlaneseq
        %v488 = vshrl.u32 %v487, 7
        %v489 = vsub.s32 %v486, %v488
        %v490 = vrot.slane %v482, %v489
        %491 = vrot.lane.b32.xlu0 %v490, 125
        %v492 = vpop.permute.xlu0 %491
        %v493 = vrot.slane %v492, 1
        %vm494 = vcmask 1022976
        %v495 = vsel %vm494, %v492, %v493
        %s497 = scalar_lea.vmem [#allocation2], 3
        %498 = vst.msk [vmem:[%s497] ss:$8 sm:$0x7] %vm440, %v495
        %499 = vst.msk [vmem:[%s497] ss:$8 sm:$0x0] %vm440, %v495
        %v500 = vld [vmem:[%s358] sm:$0x7]
        %v501 = vunpack.c.l.bf16 %v500
        %v504 = vunpack.c.l.s4 1966171168
        %v505 = vunpack.c.0.s8 %v504
        %v506 = vlaneseq
        %v507 = vshrl.u32 %v506, 7
        %v508 = vsub.s32 %v505, %v507
        %v509 = vrot.slane %v501, %v508
        %510 = vrot.lane.b32.xlu0 %v509, 124
        %v511 = vpop.permute.xlu0 %510
        %v512 = vrot.slane %v511, 1
        %vm513 = vcmask 1014784
        %v514 = vsel %vm513, %v511, %v512
        %s516 = scalar_lea.vmem [#allocation2], 4
        %517 = vst.msk [vmem:[%s516] ss:$8 sm:$0x7] %vm440, %v514
        %518 = vst.msk [vmem:[%s516] ss:$8 sm:$0x0] %vm440, %v514
        %v519 = vld [vmem:[%s358] sm:$0x7]
        %v520 = vunpack.c.l.bf16 %v519
        %v523 = vunpack.c.l.s4 1966171168
        %v524 = vunpack.c.0.s8 %v523
        %v525 = vlaneseq
        %v526 = vshrl.u32 %v525, 7
        %v527 = vsub.s32 %v524, %v526
        %v528 = vrot.slane %v520, %v527
        %529 = vrot.lane.b32.xlu0 %v528, 123
        %v530 = vpop.permute.xlu0 %529
        %v531 = vrot.slane %v530, 1
        %vm532 = vcmask 1006592
        %v533 = vsel %vm532, %v530, %v531
        %s535 = scalar_lea.vmem [#allocation2], 5
        %536 = vst.msk [vmem:[%s535] ss:$8 sm:$0x7] %vm440, %v533
        %537 = vst.msk [vmem:[%s535] ss:$8 sm:$0x0] %vm440, %v533
        %v538 = vld [vmem:[%s358] sm:$0x7]
        %v539 = vunpack.c.l.bf16 %v538
        %v542 = vunpack.c.l.s4 1966171168
        %v543 = vunpack.c.0.s8 %v542
        %v544 = vlaneseq
        %v545 = vshrl.u32 %v544, 7
        %v546 = vsub.s32 %v543, %v545
        %v547 = vrot.slane %v539, %v546
        %548 = vrot.lane.b32.xlu0 %v547, 122
        %v549 = vpop.permute.xlu0 %548
        %v550 = vrot.slane %v549, 1
        %vm551 = vcmask 998400
        %v552 = vsel %vm551, %v549, %v550
        %s554 = scalar_lea.vmem [#allocation2], 6
        %555 = vst.msk [vmem:[%s554] ss:$8 sm:$0x7] %vm440, %v552
        %556 = vst.msk [vmem:[%s554] ss:$8 sm:$0x0] %vm440, %v552
        %v557 = vld [vmem:[%s358] sm:$0x7]
        %v558 = vunpack.c.l.bf16 %v557
        %v561 = vunpack.c.l.s4 1966171168
        %v562 = vunpack.c.0.s8 %v561
        %v563 = vlaneseq
        %v564 = vshrl.u32 %v563, 7
        %v565 = vsub.s32 %v562, %v564
        %v566 = vrot.slane %v558, %v565
        %567 = vrot.lane.b32.xlu0 %v566, 106
        %v568 = vpop.permute.xlu0 %567
        %v569 = vrot.slane %v568, 1
        %vm570 = vcmask 867328
        %v571 = vsel %vm570, %v568, %v569
        %s573 = scalar_lea.vmem [#allocation2], 7
        %574 = vst.msk [vmem:[%s573] ss:$8 sm:$0x7] %vm440, %v571
        %575 = vst.msk [vmem:[%s573] ss:$8 sm:$0x0] %vm440, %v571
        %v576 = vld [vmem:[%s358] sm:$0x7]
        %v577 = vunpack.c.l.bf16 %v576
        %v580 = vunpack.c.l.s4 1966171168
        %v581 = vunpack.c.0.s8 %v580
        %v582 = vlaneseq
        %v583 = vshrl.u32 %v582, 7
        %v584 = vsub.s32 %v581, %v583
        %v585 = vrot.slane %v577, %v584
        %586 = vrot.lane.b32.xlu0 %v585, 105
        %v587 = vpop.permute.xlu0 %586
        %v588 = vrot.slane %v587, 1
        %vm589 = vcmask 859136
        %v590 = vsel %vm589, %v587, %v588
        %s592 = scalar_lea.vmem [#allocation2], 24
        %593 = vst.msk [vmem:[%s592] ss:$8 sm:$0x7] %vm440, %v590
        %594 = vst.msk [vmem:[%s592] ss:$8 sm:$0x0] %vm440, %v590
        %v595 = vld [vmem:[%s358] sm:$0x7]
        %v596 = vunpack.c.l.bf16 %v595
        %v599 = vunpack.c.l.s4 1966171168
        %v600 = vunpack.c.0.s8 %v599
        %v601 = vlaneseq
        %v602 = vshrl.u32 %v601, 7
        %v603 = vsub.s32 %v600, %v602
        %v604 = vrot.slane %v596, %v603
        %605 = vrot.lane.b32.xlu0 %v604, 104
        %v606 = vpop.permute.xlu0 %605
        %v607 = vrot.slane %v606, 1
        %vm608 = vcmask 850944
        %v609 = vsel %vm608, %v606, %v607
        %s611 = scalar_lea.vmem [#allocation2], 25
        %612 = vst.msk [vmem:[%s611] ss:$8 sm:$0x7] %vm440, %v609
        %613 = vst.msk [vmem:[%s611] ss:$8 sm:$0x0] %vm440, %v609
        %v614 = vld [vmem:[%s358] sm:$0x7]
        %v615 = vunpack.c.l.bf16 %v614
        %v618 = vunpack.c.l.s4 1966171168
        %v619 = vunpack.c.0.s8 %v618
        %v620 = vlaneseq
        %v621 = vshrl.u32 %v620, 7
        %v622 = vsub.s32 %v619, %v621
        %v623 = vrot.slane %v615, %v622
        %624 = vrot.lane.b32.xlu0 %v623, 103
        %v625 = vpop.permute.xlu0 %624
        %v626 = vrot.slane %v625, 1
        %vm627 = vcmask 842752
        %v628 = vsel %vm627, %v625, %v626
        %s630 = scalar_lea.vmem [#allocation2], 26
        %631 = vst.msk [vmem:[%s630] ss:$8 sm:$0x7] %vm440, %v628
        %632 = vst.msk [vmem:[%s630] ss:$8 sm:$0x0] %vm440, %v628
        %v633 = vld [vmem:[%s358] sm:$0x7]
        %v634 = vunpack.c.l.bf16 %v633
        %v637 = vunpack.c.l.s4 1966171168
        %v638 = vunpack.c.0.s8 %v637
        %v639 = vlaneseq
        %v640 = vshrl.u32 %v639, 7
        %v641 = vsub.s32 %v638, %v640
        %v642 = vrot.slane %v634, %v641
        %643 = vrot.lane.b32.xlu0 %v642, 102
        %v644 = vpop.permute.xlu0 %643
        %v645 = vrot.slane %v644, 1
        %vm646 = vcmask 834560
        %v647 = vsel %vm646, %v644, %v645
        %s649 = scalar_lea.vmem [#allocation2], 27
        %650 = vst.msk [vmem:[%s649] ss:$8 sm:$0x7] %vm440, %v647
        %651 = vst.msk [vmem:[%s649] ss:$8 sm:$0x0] %vm440, %v647
        %v652 = vld [vmem:[%s358] sm:$0x7]
        %v653 = vunpack.c.l.bf16 %v652
        %v656 = vunpack.c.l.s4 1966171168
        %v657 = vunpack.c.0.s8 %v656
        %v658 = vlaneseq
        %v659 = vshrl.u32 %v658, 7
        %v660 = vsub.s32 %v657, %v659
        %v661 = vrot.slane %v653, %v660
        %662 = vrot.lane.b32.xlu0 %v661, 101
        %v663 = vpop.permute.xlu0 %662
        %v664 = vrot.slane %v663, 1
        %vm665 = vcmask 826368
        %v666 = vsel %vm665, %v663, %v664
        %s668 = scalar_lea.vmem [#allocation2], 28
        %669 = vst.msk [vmem:[%s668] ss:$8 sm:$0x7] %vm440, %v666
        %670 = vst.msk [vmem:[%s668] ss:$8 sm:$0x0] %vm440, %v666
        %v671 = vld [vmem:[%s358] sm:$0x7]
        %v672 = vunpack.c.l.bf16 %v671
        %v675 = vunpack.c.l.s4 1966171168
        %v676 = vunpack.c.0.s8 %v675
        %v677 = vlaneseq
        %v678 = vshrl.u32 %v677, 7
        %v679 = vsub.s32 %v676, %v678
        %v680 = vrot.slane %v672, %v679
        %681 = vrot.lane.b32.xlu0 %v680, 100
        %v682 = vpop.permute.xlu0 %681
        %v683 = vrot.slane %v682, 1
        %vm684 = vcmask 818176
        %v685 = vsel %vm684, %v682, %v683
        %s687 = scalar_lea.vmem [#allocation2], 29
        %688 = vst.msk [vmem:[%s687] ss:$8 sm:$0x7] %vm440, %v685
        %689 = vst.msk [vmem:[%s687] ss:$8 sm:$0x0] %vm440, %v685
        %v690 = vld [vmem:[%s358] sm:$0xf]
        %v691 = vunpack.c.l.bf16 %v690
        %v694 = vunpack.c.l.s4 1966171168
        %v695 = vunpack.c.0.s8 %v694
        %v696 = vlaneseq
        %v697 = vshrl.u32 %v696, 7
        %v698 = vsub.s32 %v695, %v697
        %v699 = vrot.slane %v691, %v698
        %700 = vrot.lane.b32.xlu0 %v699, 84
        %v701 = vpop.permute.xlu0 %700
        %v702 = vrot.slane %v701, 1
        %vm703 = vcmask 687104
        %v704 = vsel %vm703, %v701, %v702
        %s706 = scalar_lea.vmem [#allocation2], 30
        %707 = vst.msk [vmem:[%s706] ss:$8 sm:$0x7] %vm440, %v704
        %708 = vst.msk [vmem:[%s706] ss:$8 sm:$0x0] %vm440, %v704
        %v709 = vld [vmem:[%s358] sm:$0xf]
        %v710 = vunpack.c.l.bf16 %v709
        %v713 = vunpack.c.l.s4 1966171168
        %v714 = vunpack.c.0.s8 %v713
        %v715 = vlaneseq
        %v716 = vshrl.u32 %v715, 7
        %v717 = vsub.s32 %v714, %v716
        %v718 = vrot.slane %v710, %v717
        %719 = vrot.lane.b32.xlu0 %v718, 83
        %v720 = vpop.permute.xlu0 %719
        %v721 = vrot.slane %v720, 1
        %vm722 = vcmask 678912
        %v723 = vsel %vm722, %v720, %v721
        %s725 = scalar_lea.vmem [#allocation2], 31
        %726 = vst.msk [vmem:[%s725] ss:$8 sm:$0x7] %vm440, %v723
        %727 = vst.msk [vmem:[%s725] ss:$8 sm:$0x0] %vm440, %v723
        %v728 = vld [vmem:[%s358] sm:$0xf]
        %v729 = vunpack.c.l.bf16 %v728
        %v732 = vunpack.c.l.s4 1966171168
        %v733 = vunpack.c.0.s8 %v732
        %v734 = vlaneseq
        %v735 = vshrl.u32 %v734, 7
        %v736 = vsub.s32 %v733, %v735
        %v737 = vrot.slane %v729, %v736
        %738 = vrot.lane.b32.xlu0 %v737, 82
        %v739 = vpop.permute.xlu0 %738
        %v740 = vrot.slane %v739, 1
        %vm741 = vcmask 670720
        %v742 = vsel %vm741, %v739, %v740
        %s744 = scalar_lea.vmem [#allocation2], 48
        %745 = vst.msk [vmem:[%s744] ss:$8 sm:$0x7] %vm440, %v742
        %746 = vst.msk [vmem:[%s744] ss:$8 sm:$0x0] %vm440, %v742
        %v747 = vld [vmem:[%s358] sm:$0xf]
        %v748 = vunpack.c.l.bf16 %v747
        %v751 = vunpack.c.l.s4 1966171168
        %v752 = vunpack.c.0.s8 %v751
        %v753 = vlaneseq
        %v754 = vshrl.u32 %v753, 7
        %v755 = vsub.s32 %v752, %v754
        %v756 = vrot.slane %v748, %v755
        %757 = vrot.lane.b32.xlu0 %v756, 81
        %v758 = vpop.permute.xlu0 %757
        %v759 = vrot.slane %v758, 1
        %vm760 = vcmask 662528
        %v761 = vsel %vm760, %v758, %v759
        %s763 = scalar_lea.vmem [#allocation2], 49
        %764 = vst.msk [vmem:[%s763] ss:$8 sm:$0x7] %vm440, %v761
        %765 = vst.msk [vmem:[%s763] ss:$8 sm:$0x0] %vm440, %v761
        %v766 = vld [vmem:[%s358] sm:$0xf]
        %v767 = vunpack.c.l.bf16 %v766
        %v770 = vunpack.c.l.s4 1966171168
        %v771 = vunpack.c.0.s8 %v770
        %v772 = vlaneseq
        %v773 = vshrl.u32 %v772, 7
        %v774 = vsub.s32 %v771, %v773
        %v775 = vrot.slane %v767, %v774
        %776 = vrot.lane.b32.xlu0 %v775, 80
        %v777 = vpop.permute.xlu0 %776
        %v778 = vrot.slane %v777, 1
        %vm779 = vcmask 654336
        %v780 = vsel %vm779, %v777, %v778
        %s782 = scalar_lea.vmem [#allocation2], 50
        %783 = vst.msk [vmem:[%s782] ss:$8 sm:$0x7] %vm440, %v780
        %784 = vst.msk [vmem:[%s782] ss:$8 sm:$0x0] %vm440, %v780
        %v785 = vld [vmem:[%s358] sm:$0xf]
        %v786 = vunpack.c.l.bf16 %v785
        %v789 = vunpack.c.l.s4 1966171168
        %v790 = vunpack.c.0.s8 %v789
        %v791 = vlaneseq
        %v792 = vshrl.u32 %v791, 7
        %v793 = vsub.s32 %v790, %v792
        %v794 = vrot.slane %v786, %v793
        %795 = vrot.lane.b32.xlu0 %v794, 79
        %v796 = vpop.permute.xlu0 %795
        %v797 = vrot.slane %v796, 1
        %vm798 = vcmask 646144
        %v799 = vsel %vm798, %v796, %v797
        %s801 = scalar_lea.vmem [#allocation2], 51
        %802 = vst.msk [vmem:[%s801] ss:$8 sm:$0x7] %vm440, %v799
        %803 = vst.msk [vmem:[%s801] ss:$8 sm:$0x0] %vm440, %v799
        %v804 = vld [vmem:[%s358] sm:$0xf]
        %v805 = vunpack.c.l.bf16 %v804
        %v808 = vunpack.c.l.s4 1966171168
        %v809 = vunpack.c.0.s8 %v808
        %v810 = vlaneseq
        %v811 = vshrl.u32 %v810, 7
        %v812 = vsub.s32 %v809, %v811
        %v813 = vrot.slane %v805, %v812
        %814 = vrot.lane.b32.xlu0 %v813, 78
        %v815 = vpop.permute.xlu0 %814
        %v816 = vrot.slane %v815, 1
        %vm817 = vcmask 637952
        %v818 = vsel %vm817, %v815, %v816
        %s820 = scalar_lea.vmem [#allocation2], 52
        %821 = vst.msk [vmem:[%s820] ss:$8 sm:$0x7] %vm440, %v818
        %822 = vst.msk [vmem:[%s820] ss:$8 sm:$0x0] %vm440, %v818
        %v823 = vld [vmem:[%s358] sm:$0xf]
        %v824 = vunpack.c.l.bf16 %v823
        %v827 = vunpack.c.l.s4 1966171168
        %v828 = vunpack.c.0.s8 %v827
        %v829 = vlaneseq
        %v830 = vshrl.u32 %v829, 7
        %v831 = vsub.s32 %v828, %v830
        %v832 = vrot.slane %v824, %v831
        %833 = vrot.lane.b32.xlu0 %v832, 62
        %v834 = vpop.permute.xlu0 %833
        %v835 = vrot.slane %v834, 1
        %vm836 = vcmask 506880
        %v837 = vsel %vm836, %v834, %v835
        %s839 = scalar_lea.vmem [#allocation2], 53
        %840 = vst.msk [vmem:[%s839] ss:$8 sm:$0x7] %vm440, %v837
        %841 = vst.msk [vmem:[%s839] ss:$8 sm:$0x0] %vm440, %v837
        %v842 = vld [vmem:[%s358] sm:$0xf]
        %v843 = vunpack.c.l.bf16 %v842
        %v846 = vunpack.c.l.s4 1966171168
        %v847 = vunpack.c.0.s8 %v846
        %v848 = vlaneseq
        %v849 = vshrl.u32 %v848, 7
        %v850 = vsub.s32 %v847, %v849
        %v851 = vrot.slane %v843, %v850
        %852 = vrot.lane.b32.xlu0 %v851, 61
        %v853 = vpop.permute.xlu0 %852
        %v854 = vrot.slane %v853, 1
        %vm855 = vcmask 498688
        %v856 = vsel %vm855, %v853, %v854
        %s858 = scalar_lea.vmem [#allocation2], 54
        %859 = vst.msk [vmem:[%s858] ss:$8 sm:$0x7] %vm440, %v856
        %860 = vst.msk [vmem:[%s858] ss:$8 sm:$0x0] %vm440, %v856
        %v861 = vld [vmem:[%s358] sm:$0xf]
        %v862 = vunpack.c.l.bf16 %v861
        %v865 = vunpack.c.l.s4 1966171168
        %v866 = vunpack.c.0.s8 %v865
        %v867 = vlaneseq
        %v868 = vshrl.u32 %v867, 7
        %v869 = vsub.s32 %v866, %v868
        %v870 = vrot.slane %v862, %v869
        %871 = vrot.lane.b32.xlu0 %v870, 60
        %v872 = vpop.permute.xlu0 %871
        %v873 = vrot.slane %v872, 1
        %vm874 = vcmask 490496
        %v875 = vsel %vm874, %v872, %v873
        %s877 = scalar_lea.vmem [#allocation2], 55
        %878 = vst.msk [vmem:[%s877] ss:$8 sm:$0x7] %vm440, %v875
        %879 = vst.msk [vmem:[%s877] ss:$8 sm:$0x0] %vm440, %v875
        %v880 = vld [vmem:[%s358] sm:$0xf]
        %v881 = vunpack.c.l.bf16 %v880
        %v884 = vunpack.c.l.s4 1966171168
        %v885 = vunpack.c.0.s8 %v884
        %v886 = vlaneseq
        %v887 = vshrl.u32 %v886, 7
        %v888 = vsub.s32 %v885, %v887
        %v889 = vrot.slane %v881, %v888
        %890 = vrot.lane.b32.xlu0 %v889, 59
        %v891 = vpop.permute.xlu0 %890
        %v892 = vrot.slane %v891, 1
        %vm893 = vcmask 482304
        %v894 = vsel %vm893, %v891, %v892
        %s896 = scalar_lea.vmem [#allocation2], 72
        %897 = vst.msk [vmem:[%s896] ss:$8 sm:$0x7] %vm440, %v894
        %898 = vst.msk [vmem:[%s896] ss:$8 sm:$0x0] %vm440, %v894
        %v899 = vld [vmem:[%s358] sm:$0xf]
        %v900 = vunpack.c.l.bf16 %v899
        %v903 = vunpack.c.l.s4 1966171168
        %v904 = vunpack.c.0.s8 %v903
        %v905 = vlaneseq
        %v906 = vshrl.u32 %v905, 7
        %v907 = vsub.s32 %v904, %v906
        %v908 = vrot.slane %v900, %v907
        %909 = vrot.lane.b32.xlu0 %v908, 58
        %v910 = vpop.permute.xlu0 %909
        %v911 = vrot.slane %v910, 1
        %vm912 = vcmask 474112
        %v913 = vsel %vm912, %v910, %v911
        %s915 = scalar_lea.vmem [#allocation2], 73
        %916 = vst.msk [vmem:[%s915] ss:$8 sm:$0x7] %vm440, %v913
        %917 = vst.msk [vmem:[%s915] ss:$8 sm:$0x0] %vm440, %v913
        %v918 = vld [vmem:[%s358] sm:$0xf]
        %v919 = vunpack.c.l.bf16 %v918
        %v922 = vunpack.c.l.s4 1966171168
        %v923 = vunpack.c.0.s8 %v922
        %v924 = vlaneseq
        %v925 = vshrl.u32 %v924, 7
        %v926 = vsub.s32 %v923, %v925
        %v927 = vrot.slane %v919, %v926
        %928 = vrot.lane.b32.xlu0 %v927, 57
        %v929 = vpop.permute.xlu0 %928
        %v930 = vrot.slane %v929, 1
        %vm931 = vcmask 465920
        %v932 = vsel %vm931, %v929, %v930
        %s934 = scalar_lea.vmem [#allocation2], 74
        %935 = vst.msk [vmem:[%s934] ss:$8 sm:$0x7] %vm440, %v932
        %936 = vst.msk [vmem:[%s934] ss:$8 sm:$0x0] %vm440, %v932
        %v937 = vld [vmem:[%s358] sm:$0xf]
        %v938 = vunpack.c.l.bf16 %v937
        %v941 = vunpack.c.l.s4 1966171168
        %v942 = vunpack.c.0.s8 %v941
        %v943 = vlaneseq
        %v944 = vshrl.u32 %v943, 7
        %v945 = vsub.s32 %v942, %v944
        %v946 = vrot.slane %v938, %v945
        %947 = vrot.lane.b32.xlu0 %v946, 56
        %v948 = vpop.permute.xlu0 %947
        %v949 = vrot.slane %v948, 1
        %vm950 = vcmask 457728
        %v951 = vsel %vm950, %v948, %v949
        %s953 = scalar_lea.vmem [#allocation2], 75
        %954 = vst.msk [vmem:[%s953] ss:$8 sm:$0x7] %vm440, %v951
        %955 = vst.msk [vmem:[%s953] ss:$8 sm:$0x0] %vm440, %v951
        %v956 = vld [vmem:[%s358] sm:$0xf]
        %v957 = vunpack.c.l.bf16 %v956
        %v960 = vunpack.c.l.s4 1966171168
        %v961 = vunpack.c.0.s8 %v960
        %v962 = vlaneseq
        %v963 = vshrl.u32 %v962, 7
        %v964 = vsub.s32 %v961, %v963
        %v965 = vrot.slane %v957, %v964
        %966 = vrot.lane.b32.xlu0 %v965, 40
        %v967 = vpop.permute.xlu0 %966
        %v968 = vrot.slane %v967, 1
        %vm969 = vcmask 326656
        %v970 = vsel %vm969, %v967, %v968
        %s972 = scalar_lea.vmem [#allocation2], 76
        %973 = vst.msk [vmem:[%s972] ss:$8 sm:$0x7] %vm440, %v970
        %974 = vst.msk [vmem:[%s972] ss:$8 sm:$0x0] %vm440, %v970
        %v975 = vld [vmem:[%s358] sm:$0xf]
        %v976 = vunpack.c.l.bf16 %v975
        %v979 = vunpack.c.l.s4 1966171168
        %v980 = vunpack.c.0.s8 %v979
        %v981 = vlaneseq
        %v982 = vshrl.u32 %v981, 7
        %v983 = vsub.s32 %v980, %v982
        %v984 = vrot.slane %v976, %v983
        %985 = vrot.lane.b32.xlu0 %v984, 39
        %v986 = vpop.permute.xlu0 %985
        %v987 = vrot.slane %v986, 1
        %vm988 = vcmask 318464
        %v989 = vsel %vm988, %v986, %v987
        %s991 = scalar_lea.vmem [#allocation2], 77
        %992 = vst.msk [vmem:[%s991] ss:$8 sm:$0x7] %vm440, %v989
        %993 = vst.msk [vmem:[%s991] ss:$8 sm:$0x0] %vm440, %v989
        %v994 = vld [vmem:[%s358] sm:$0xf]
        %v995 = vunpack.c.l.bf16 %v994
        %v998 = vunpack.c.l.s4 1966171168
        %v999 = vunpack.c.0.s8 %v998
        %v1000 = vlaneseq
        %v1001 = vshrl.u32 %v1000, 7
        %v1002 = vsub.s32 %v999, %v1001
        %v1003 = vrot.slane %v995, %v1002
        %1004 = vrot.lane.b32.xlu0 %v1003, 38
        %v1005 = vpop.permute.xlu0 %1004
        %v1006 = vrot.slane %v1005, 1
        %vm1007 = vcmask 310272
        %v1008 = vsel %vm1007, %v1005, %v1006
        %s1010 = scalar_lea.vmem [#allocation2], 78
        %1011 = vst.msk [vmem:[%s1010] ss:$8 sm:$0x7] %vm440, %v1008
        %1012 = vst.msk [vmem:[%s1010] ss:$8 sm:$0x0] %vm440, %v1008
        %v1013 = vld [vmem:[%s358] sm:$0xf]
        %v1014 = vunpack.c.l.bf16 %v1013
        %v1017 = vunpack.c.l.s4 1966171168
        %v1018 = vunpack.c.0.s8 %v1017
        %v1019 = vlaneseq
        %v1020 = vshrl.u32 %v1019, 7
        %v1021 = vsub.s32 %v1018, %v1020
        %v1022 = vrot.slane %v1014, %v1021
        %1023 = vrot.lane.b32.xlu0 %v1022, 37
        %v1024 = vpop.permute.xlu0 %1023
        %v1025 = vrot.slane %v1024, 1
        %vm1026 = vcmask 302080
        %v1027 = vsel %vm1026, %v1024, %v1025
        %s1029 = scalar_lea.vmem [#allocation2], 79
        %1030 = vst.msk [vmem:[%s1029] ss:$8 sm:$0x7] %vm440, %v1027
        %1031 = vst.msk [vmem:[%s1029] ss:$8 sm:$0x0] %vm440, %v1027
        %v1032 = vld [vmem:[%s358] sm:$0xf]
        %v1033 = vunpack.c.l.bf16 %v1032
        %v1036 = vunpack.c.l.s4 1966171168
        %v1037 = vunpack.c.0.s8 %v1036
        %v1038 = vlaneseq
        %v1039 = vshrl.u32 %v1038, 7
        %v1040 = vsub.s32 %v1037, %v1039
        %v1041 = vrot.slane %v1033, %v1040
        %1042 = vrot.lane.b32.xlu0 %v1041, 36
        %v1043 = vpop.permute.xlu0 %1042
        %v1044 = vrot.slane %v1043, 1
        %vm1045 = vcmask 293888
        %v1046 = vsel %vm1045, %v1043, %v1044
        %s1048 = scalar_lea.vmem [#allocation2], 96
        %1049 = vst.msk [vmem:[%s1048] ss:$8 sm:$0x7] %vm440, %v1046
        %1050 = vst.msk [vmem:[%s1048] ss:$8 sm:$0x0] %vm440, %v1046
        %v1051 = vld [vmem:[%s358] sm:$0xf]
        %v1052 = vunpack.c.l.bf16 %v1051
        %v1055 = vunpack.c.l.s4 1966171168
        %v1056 = vunpack.c.0.s8 %v1055
        %v1057 = vlaneseq
        %v1058 = vshrl.u32 %v1057, 7
        %v1059 = vsub.s32 %v1056, %v1058
        %v1060 = vrot.slane %v1052, %v1059
        %1061 = vrot.lane.b32.xlu0 %v1060, 35
        %v1062 = vpop.permute.xlu0 %1061
        %v1063 = vrot.slane %v1062, 1
        %vm1064 = vcmask 285696
        %v1065 = vsel %vm1064, %v1062, %v1063
        %s1067 = scalar_lea.vmem [#allocation2], 97
        %1068 = vst.msk [vmem:[%s1067] ss:$8 sm:$0x7] %vm440, %v1065
        %1069 = vst.msk [vmem:[%s1067] ss:$8 sm:$0x0] %vm440, %v1065
        %v1070 = vld [vmem:[%s358] sm:$0xf]
        %v1071 = vunpack.c.l.bf16 %v1070
        %v1074 = vunpack.c.l.s4 1966171168
        %v1075 = vunpack.c.0.s8 %v1074
        %v1076 = vlaneseq
        %v1077 = vshrl.u32 %v1076, 7
        %v1078 = vsub.s32 %v1075, %v1077
        %v1079 = vrot.slane %v1071, %v1078
        %1080 = vrot.lane.b32.xlu0 %v1079, 34
        %v1081 = vpop.permute.xlu0 %1080
        %v1082 = vrot.slane %v1081, 1
        %vm1083 = vcmask 277504
        %v1084 = vsel %vm1083, %v1081, %v1082
        %s1086 = scalar_lea.vmem [#allocation2], 98
        %1087 = vst.msk [vmem:[%s1086] ss:$8 sm:$0x7] %vm440, %v1084
        %1088 = vst.msk [vmem:[%s1086] ss:$8 sm:$0x0] %vm440, %v1084
        %v1089 = vld [vmem:[%s358] sm:$0xf]
        %v1090 = vunpack.c.l.bf16 %v1089
        %v1093 = vunpack.c.l.s4 1966171168
        %v1094 = vunpack.c.0.s8 %v1093
        %v1095 = vlaneseq
        %v1096 = vshrl.u32 %v1095, 7
        %v1097 = vsub.s32 %v1094, %v1096
        %v1098 = vrot.slane %v1090, %v1097
        %1099 = vrot.lane.b32.xlu0 %v1098, 18
        %v1100 = vpop.permute.xlu0 %1099
        %v1101 = vrot.slane %v1100, 1
        %vm1102 = vcmask 146432
        %v1103 = vsel %vm1102, %v1100, %v1101
        %s1105 = scalar_lea.vmem [#allocation2], 99
        %1106 = vst.msk [vmem:[%s1105] ss:$8 sm:$0x7] %vm440, %v1103
        %1107 = vst.msk [vmem:[%s1105] ss:$8 sm:$0x0] %vm440, %v1103
        %v1108 = vld [vmem:[%s358] sm:$0xf]
        %v1109 = vunpack.c.l.bf16 %v1108
        %v1112 = vunpack.c.l.s4 1966171168
        %v1113 = vunpack.c.0.s8 %v1112
        %v1114 = vlaneseq
        %v1115 = vshrl.u32 %v1114, 7
        %v1116 = vsub.s32 %v1113, %v1115
        %v1117 = vrot.slane %v1109, %v1116
        %1118 = vrot.lane.b32.xlu0 %v1117, 17
        %v1119 = vpop.permute.xlu0 %1118
        %v1120 = vrot.slane %v1119, 1
        %vm1121 = vcmask 138240
        %v1122 = vsel %vm1121, %v1119, %v1120
        %s1124 = scalar_lea.vmem [#allocation2], 100
        %1125 = vst.msk [vmem:[%s1124] ss:$8 sm:$0x7] %vm440, %v1122
        %1126 = vst.msk [vmem:[%s1124] ss:$8 sm:$0x0] %vm440, %v1122
        %v1127 = vld [vmem:[%s358] sm:$0xf]
        %v1128 = vunpack.c.l.bf16 %v1127
        %v1131 = vunpack.c.l.s4 1966171168
        %v1132 = vunpack.c.0.s8 %v1131
        %v1133 = vlaneseq
        %v1134 = vshrl.u32 %v1133, 7
        %v1135 = vsub.s32 %v1132, %v1134
        %v1136 = vrot.slane %v1128, %v1135
        %1137 = vrot.lane.b32.xlu0 %v1136, 16
        %v1138 = vpop.permute.xlu0 %1137
        %v1139 = vrot.slane %v1138, 1
        %vm1140 = vcmask 130048
        %v1141 = vsel %vm1140, %v1138, %v1139
        %s1143 = scalar_lea.vmem [#allocation2], 101
        %1144 = vst.msk [vmem:[%s1143] ss:$8 sm:$0x7] %vm440, %v1141
        %1145 = vst.msk [vmem:[%s1143] ss:$8 sm:$0x0] %vm440, %v1141
        %v1146 = vld [vmem:[%s358] sm:$0xf]
        %v1147 = vunpack.c.l.bf16 %v1146
        %v1150 = vunpack.c.l.s4 1966171168
        %v1151 = vunpack.c.0.s8 %v1150
        %v1152 = vlaneseq
        %v1153 = vshrl.u32 %v1152, 7
        %v1154 = vsub.s32 %v1151, %v1153
        %v1155 = vrot.slane %v1147, %v1154
        %1156 = vrot.lane.b32.xlu0 %v1155, 15
        %v1157 = vpop.permute.xlu0 %1156
        %v1158 = vrot.slane %v1157, 1
        %vm1159 = vcmask 121856
        %v1160 = vsel %vm1159, %v1157, %v1158
        %s1162 = scalar_lea.vmem [#allocation2], 102
        %1163 = vst.msk [vmem:[%s1162] ss:$8 sm:$0x7] %vm440, %v1160
        %1164 = vst.msk [vmem:[%s1162] ss:$8 sm:$0x0] %vm440, %v1160
        %v1165 = vld [vmem:[%s358] sm:$0xf]
        %v1166 = vunpack.c.l.bf16 %v1165
        %v1169 = vunpack.c.l.s4 1966171168
        %v1170 = vunpack.c.0.s8 %v1169
        %v1171 = vlaneseq
        %v1172 = vshrl.u32 %v1171, 7
        %v1173 = vsub.s32 %v1170, %v1172
        %v1174 = vrot.slane %v1166, %v1173
        %1175 = vrot.lane.b32.xlu0 %v1174, 14
        %v1176 = vpop.permute.xlu0 %1175
        %v1177 = vrot.slane %v1176, 1
        %vm1178 = vcmask 113664
        %v1179 = vsel %vm1178, %v1176, %v1177
        %s1181 = scalar_lea.vmem [#allocation2], 103
        %1182 = vst.msk [vmem:[%s1181] ss:$8 sm:$0x7] %vm440, %v1179
        %1183 = vst.msk [vmem:[%s1181] ss:$8 sm:$0x0] %vm440, %v1179
        %v1184 = vld [vmem:[%s358] sm:$0xf]
        %v1185 = vunpack.c.l.bf16 %v1184
        %v1188 = vunpack.c.l.s4 1966171168
        %v1189 = vunpack.c.0.s8 %v1188
        %v1190 = vlaneseq
        %v1191 = vshrl.u32 %v1190, 7
        %v1192 = vsub.s32 %v1189, %v1191
        %v1193 = vrot.slane %v1185, %v1192
        %1194 = vrot.lane.b32.xlu0 %v1193, 13
        %v1195 = vpop.permute.xlu0 %1194
        %v1196 = vrot.slane %v1195, 1
        %vm1197 = vcmask 105472
        %v1198 = vsel %vm1197, %v1195, %v1196
        %s1200 = scalar_lea.vmem [#allocation2], 120
        %1201 = vst.msk [vmem:[%s1200] ss:$8 sm:$0x7] %vm440, %v1198
        %1202 = vst.msk [vmem:[%s1200] ss:$8 sm:$0x0] %vm440, %v1198
        %v1203 = vld [vmem:[%s358] sm:$0xf]
        %v1204 = vunpack.c.l.bf16 %v1203
        %v1207 = vunpack.c.l.s4 1966171168
        %v1208 = vunpack.c.0.s8 %v1207
        %v1209 = vlaneseq
        %v1210 = vshrl.u32 %v1209, 7
        %v1211 = vsub.s32 %v1208, %v1210
        %v1212 = vrot.slane %v1204, %v1211
        %1213 = vrot.lane.b32.xlu0 %v1212, 12
        %v1214 = vpop.permute.xlu0 %1213
        %v1215 = vrot.slane %v1214, 1
        %vm1216 = vcmask 97280
        %v1217 = vsel %vm1216, %v1214, %v1215
        %s1219 = scalar_lea.vmem [#allocation2], 121
        %1220 = vst.msk [vmem:[%s1219] ss:$8 sm:$0x7] %vm440, %v1217
        %1221 = vst.msk [vmem:[%s1219] ss:$8 sm:$0x0] %vm440, %v1217
        %v1222 = vld [vmem:[%s358 + $0x1] sm:$0x7]
        %v1223 = vunpack.c.l.bf16 %v1222
        %v1226 = vunpack.c.l.s4 1966171168
        %v1227 = vunpack.c.0.s8 %v1226
        %v1228 = vlaneseq
        %v1229 = vshrl.u32 %v1228, 7
        %v1230 = vsub.s32 %v1227, %v1229
        %v1231 = vrot.slane %v1223, %v1230
        %1232 = vrot.lane.b32.xlu0 %v1231, 124
        %v1233 = vpop.permute.xlu0 %1232
        %v1234 = vrot.slane %v1233, 1
        %v1235 = vsel %vm513, %v1233, %v1234
        %s1237 = scalar_lea.vmem [#allocation2], 122
        %1238 = vst.msk [vmem:[%s1237] ss:$8 sm:$0x7] %vm440, %v1235
        %1239 = vst.msk [vmem:[%s1237] ss:$8 sm:$0x0] %vm440, %v1235
        %v1240 = vld [vmem:[%s358 + $0x1] sm:$0x7]
        %v1241 = vunpack.c.l.bf16 %v1240
        %v1244 = vunpack.c.l.s4 1966171168
        %v1245 = vunpack.c.0.s8 %v1244
        %v1246 = vlaneseq
        %v1247 = vshrl.u32 %v1246, 7
        %v1248 = vsub.s32 %v1245, %v1247
        %v1249 = vrot.slane %v1241, %v1248
        %1250 = vrot.lane.b32.xlu0 %v1249, 123
        %v1251 = vpop.permute.xlu0 %1250
        %v1252 = vrot.slane %v1251, 1
        %v1253 = vsel %vm532, %v1251, %v1252
        %s1255 = scalar_lea.vmem [#allocation2], 123
        %1256 = vst.msk [vmem:[%s1255] ss:$8 sm:$0x7] %vm440, %v1253
        %1257 = vst.msk [vmem:[%s1255] ss:$8 sm:$0x0] %vm440, %v1253
        %v1258 = vld [vmem:[%s358 + $0x1] sm:$0x7]
        %v1259 = vunpack.c.l.bf16 %v1258
        %v1262 = vunpack.c.l.s4 1966171168
        %v1263 = vunpack.c.0.s8 %v1262
        %v1264 = vlaneseq
        %v1265 = vshrl.u32 %v1264, 7
        %v1266 = vsub.s32 %v1263, %v1265
        %v1267 = vrot.slane %v1259, %v1266
        %1268 = vrot.lane.b32.xlu0 %v1267, 122
        %v1269 = vpop.permute.xlu0 %1268
        %v1270 = vrot.slane %v1269, 1
        %v1271 = vsel %vm551, %v1269, %v1270
        %s1273 = scalar_lea.vmem [#allocation2], 124
        %1274 = vst.msk [vmem:[%s1273] ss:$8 sm:$0x7] %vm440, %v1271
        %1275 = vst.msk [vmem:[%s1273] ss:$8 sm:$0x0] %vm440, %v1271
        %v1276 = vld [vmem:[%s358 + $0x1] sm:$0x7]
        %v1277 = vunpack.c.l.bf16 %v1276
        %v1280 = vunpack.c.l.s4 1966171168
        %v1281 = vunpack.c.0.s8 %v1280
        %v1282 = vlaneseq
        %v1283 = vshrl.u32 %v1282, 7
        %v1284 = vsub.s32 %v1281, %v1283
        %v1285 = vrot.slane %v1277, %v1284
        %1286 = vrot.lane.b32.xlu0 %v1285, 121
        %v1287 = vpop.permute.xlu0 %1286
        %v1288 = vrot.slane %v1287, 1
        %vm1289 = vcmask 990208
        %v1290 = vsel %vm1289, %v1287, %v1288
        %s1292 = scalar_lea.vmem [#allocation2], 125
        %1293 = vst.msk [vmem:[%s1292] ss:$8 sm:$0x7] %vm440, %v1290
        %1294 = vst.msk [vmem:[%s1292] ss:$8 sm:$0x0] %vm440, %v1290
        %v1295 = vld [vmem:[%s358 + $0x1] sm:$0x7]
        %v1296 = vunpack.c.l.bf16 %v1295
        %v1299 = vunpack.c.l.s4 1966171168
        %v1300 = vunpack.c.0.s8 %v1299
        %v1301 = vlaneseq
        %v1302 = vshrl.u32 %v1301, 7
        %v1303 = vsub.s32 %v1300, %v1302
        %v1304 = vrot.slane %v1296, %v1303
        %1305 = vrot.lane.b32.xlu0 %v1304, 120
        %v1306 = vpop.permute.xlu0 %1305
        %v1307 = vrot.slane %v1306, 1
        %vm1308 = vcmask 982016
        %v1309 = vsel %vm1308, %v1306, %v1307
        %s1311 = scalar_lea.vmem [#allocation2], 126
        %1312 = vst.msk [vmem:[%s1311] ss:$8 sm:$0x7] %vm440, %v1309
        %1313 = vst.msk [vmem:[%s1311] ss:$8 sm:$0x0] %vm440, %v1309
        %v1314 = vld [vmem:[%s358 + $0x1] sm:$0x7]
        %v1315 = vunpack.c.l.bf16 %v1314
        %v1318 = vunpack.c.l.s4 1966171168
        %v1319 = vunpack.c.0.s8 %v1318
        %v1320 = vlaneseq
        %v1321 = vshrl.u32 %v1320, 7
        %v1322 = vsub.s32 %v1319, %v1321
        %v1323 = vrot.slane %v1315, %v1322
        %1324 = vrot.lane.b32.xlu0 %v1323, 119
        %v1325 = vpop.permute.xlu0 %1324
        %v1326 = vrot.slane %v1325, 1
        %vm1327 = vcmask 973824
        %v1328 = vsel %vm1327, %v1325, %v1326
        %s1330 = scalar_lea.vmem [#allocation2], 127
        %1331 = vst.msk [vmem:[%s1330] ss:$8 sm:$0x7] %vm440, %v1328
        %1332 = vst.msk [vmem:[%s1330] ss:$8 sm:$0x0] %vm440, %v1328
        %v1333 = vld [vmem:[%s358 + $0x1] sm:$0x7]
        %v1334 = vunpack.c.l.bf16 %v1333
        %v1337 = vunpack.c.l.s4 1966171168
        %v1338 = vunpack.c.0.s8 %v1337
        %v1339 = vlaneseq
        %v1340 = vshrl.u32 %v1339, 7
        %v1341 = vsub.s32 %v1338, %v1340
        %v1342 = vrot.slane %v1334, %v1341
        %1343 = vrot.lane.b32.xlu0 %v1342, 118
        %v1344 = vpop.permute.xlu0 %1343
        %v1345 = vrot.slane %v1344, 1
        %vm1346 = vcmask 965632
        %v1347 = vsel %vm1346, %v1344, %v1345
        %s1349 = scalar_lea.vmem [#allocation2], 144
        %1350 = vst.msk [vmem:[%s1349] ss:$8 sm:$0x7] %vm440, %v1347
        %1351 = vst.msk [vmem:[%s1349] ss:$8 sm:$0x0] %vm440, %v1347
        %v1352 = vld [vmem:[#allocation2] sm:$0xff]
        %v1353 = vld [vmem:[#allocation2 + $0x8] sm:$0xff]
        %v1354 = vld [vmem:[#allocation2 + $0x10] sm:$0xff]
        %v1355 = vld [vmem:[#allocation2 + $0x18] sm:$0xff]
        %v1356 = vld [vmem:[#allocation2 + $0x20] sm:$0xff]
        %v1357 = vld [vmem:[#allocation2 + $0x28] sm:$0xff]
        %v1358 = vld [vmem:[#allocation2 + $0x30] sm:$0xff]
        %v1359 = vld [vmem:[#allocation2 + $0x38] sm:$0xff]
        %v1360 = vld [vmem:[#allocation2 + $0x40] sm:$0xff]
        %v1361 = vld [vmem:[#allocation2 + $0x48] sm:$0xff]
        %v1362 = vld [vmem:[#allocation2 + $0x50] sm:$0xff]
        %v1363 = vld [vmem:[#allocation2 + $0x58] sm:$0xff]
        %v1364 = vld [vmem:[#allocation2 + $0x60] sm:$0xff]
        %v1365 = vld [vmem:[#allocation2 + $0x68] sm:$0xff]
        %v1366 = vld [vmem:[#allocation2 + $0x70] sm:$0xff]
        %v1367 = vld [vmem:[#allocation2 + $0x78] sm:$0xff]
        %v1368 = vld [vmem:[#allocation2 + $0x80] sm:$0xff]
        %v1369 = vld [vmem:[#allocation2 + $0x88] sm:$0xff]
        %v1370 = vld [vmem:[#allocation2 + $0x90] sm:$0x1]
        %v1371 = vld [vmem:[#allocation2 + $0x98] sm:$0x1]
        %v1372 = vld [vmem:[#allocation2 + $0xa0] sm:$0x1]
        %v1373 = vpack.c.bf16 %v1355, %v1352
        %v1374 = vpack.c.bf16 %v1356, %v1353
        %v1375 = vpack.c.bf16 %v1357, %v1354
        %v1376 = vpack.c.bf16 %v1361, %v1358
        %v1377 = vpack.c.bf16 %v1362, %v1359
        %v1378 = vpack.c.bf16 %v1363, %v1360
        %v1379 = vpack.c.bf16 %v1367, %v1364
        %v1380 = vpack.c.bf16 %v1368, %v1365
        %v1381 = vpack.c.bf16 %v1369, %v1366
        %v1382 = vpack.c.bf16 %v1370, %v1370
        %v1383 = vpack.c.bf16 %v1371, %v1371
        %v1384 = vpack.c.bf16 %v1372, %v1372
        %1386 = vset.pattern.permute.xlu0 0
        %1387 = vperm.xlu0 %1386, %v388
        %v1388 = vpop.permute.xlu0 %1387
        %1391 = vset.pattern.permute.xlu0 0
        %1392 = vperm.xlu0 %1391, %v389
        %v1393 = vpop.permute.xlu0 %1392
        %1396 = vset.pattern.permute.xlu0 0
        %1397 = vperm.xlu0 %1396, %v390
        %v1398 = vpop.permute.xlu0 %1397
        %1401 = vset.pattern.permute.xlu0 0
        %1402 = vperm.xlu0 %1401, %v391
        %v1403 = vpop.permute.xlu0 %1402
        %1406 = vset.pattern.permute.xlu0 0
        %1407 = vperm.xlu0 %1406, %v392
        %v1408 = vpop.permute.xlu0 %1407
        %1411 = vset.pattern.permute.xlu0 0
        %1412 = vperm.xlu0 %1411, %v393
        %v1413 = vpop.permute.xlu0 %1412
        %1416 = vset.pattern.permute.xlu0 0
        %1417 = vperm.xlu0 %1416, %v394
        %v1418 = vpop.permute.xlu0 %1417
        %1421 = vset.pattern.permute.xlu0 0
        %1422 = vperm.xlu0 %1421, %v395
        %v1423 = vpop.permute.xlu0 %1422
        %v1433 = vunpack.c.l.b16 %v380
        %v1434 = vunpack.c.l.b16 %v381
        %v1435 = vunpack.c.l.b16 %v382
        %v1436 = vunpack.c.l.b16 %v383
        %v1437 = vunpack.c.l.b16 %v384
        %v1438 = vunpack.c.l.b16 %v385
        %v1439 = vunpack.c.l.b16 %v386
        %v1440 = vunpack.c.l.b16 %v387
        %v1441 = vpack.c.b16 %v1434, %v1433
        %v1442 = vpack.c.b16 %v1436, %v1435
        %v1443 = vpack.c.b16 %v1438, %v1437
        %v1444 = vpack.c.b16 %v1440, %v1439
        %vm1445 = vcmask 400384
        %v1447 = vsel %vm1445, %v1441, 0
        %v1450 = vsel %vm1445, %v1442, 0
        %v1453 = vsel %vm1445, %v1443, 0
        %v1456 = vsel %vm1445, %v1444, 0
        %vm1458 = vcmask 1040384
        %v1459 = vsel 0, 4294967295, 65535
        %v1460 = vsel %vm1458, %v1459, 0
        %v1462 = vand.u32 %v1382, %v1460
        %v1465 = vand.u32 %v1383, %v1460
        %v1468 = vand.u32 %v1384, %v1460
        %1470 = vmatprep.subr.bf16.mxu0 %v1374
        %1471 = vmatpush1.bf16.msra.mxu0 %v1373
        %1472 = vmatprep.subr.bf16.mxu0 %v1377
        %1473 = vmatpush1.bf16.msra.mxu0 %v1376
        %1474 = vmatprep.subr.bf16.mxu0 %v1380
        %1475 = vmatpush1.bf16.msra.mxu0 %v1379
        %1476 = vmatprep.subr.bf16.mxu0 %v1465
        %1477 = vmatpush1.bf16.msra.mxu0 %v1462
        %1478 = vmatprep.subr.bf16.mxu0 0
        %1479 = vmatpush1.bf16.msra.mxu0 0
        %1480 = vmatprep.subr.bf16.mxu0 0
        %1481 = vmatpush1.bf16.msra.mxu0 0
        %1482 = vmatprep.subr.bf16.mxu0 0
        %1483 = vmatpush1.bf16.msra.mxu0 0
        %1484 = vmatprep.subr.bf16.mxu0 0
        %1485 = vmatpush1.bf16.msra.mxu0 0
        %1486 = vmatprep.subr.bf16.mxu0 0
        %1487 = vmatpush1.bf16.msra.mxu0 0
        %1488 = vmatprep.subr.bf16.mxu0 0
        %1489 = vmatpush1.bf16.msra.mxu0 0
        %1490 = vmatprep.subr.bf16.mxu0 0
        %1491 = vmatpush1.bf16.msra.mxu0 0
        %1492 = vmatprep.subr.bf16.mxu0 0
        %1493 = vmatpush1.bf16.msra.mxu0 0
        %1494 = vmatprep.subr.bf16.mxu0 0
        %1495 = vmatpush1.bf16.msra.mxu0 0
        %1496 = vmatprep.subr.bf16.mxu0 0
        %1497 = vmatpush1.bf16.msra.mxu0 0
        %1498 = vmatprep.subr.bf16.mxu0 0
        %1499 = vmatpush1.bf16.msra.mxu0 0
        %1500 = vmatprep.subr.bf16.mxu0 0
        %1501 = vmatpush1.bf16.msra.mxu0 0
        %1502 = vmatprep.mubr.bf16.mxu0 0
        %1503 = vmatmul.mubr.bf16.gmra.mrb[0].mxu0 %v1447
        %v1504 = vpop.f32.mrb[0].mxu0
        %v1505 = vadd.f32 %v1388, %v1504
        %v1506 = vpop.f32.mrb[0].mxu0
        %v1507 = vadd.f32 %v1388, %v1506
        %v1508 = vpop.f32.mrb[0].mxu0
        %v1509 = vadd.f32 %v1393, %v1508
        %v1510 = vpop.f32.mrb[0].mxu0
        %v1511 = vadd.f32 %v1393, %v1510
        %1512 = vmatprep.mubr.bf16.mxu0 0
        %1513 = vmatmul.mubr.bf16.gmra.mrb[0].mxu0 %v1450
        %v1514 = vpop.f32.mrb[0].mxu0
        %v1515 = vadd.f32 %v1398, %v1514
        %v1516 = vpop.f32.mrb[0].mxu0
        %v1517 = vadd.f32 %v1398, %v1516
        %v1518 = vpop.f32.mrb[0].mxu0
        %v1519 = vadd.f32 %v1403, %v1518
        %v1520 = vpop.f32.mrb[0].mxu0
        %v1521 = vadd.f32 %v1403, %v1520
        %1522 = vmatprep.mubr.bf16.mxu0 0
        %1523 = vmatmul.mubr.bf16.gmra.mrb[0].mxu0 %v1453
        %v1524 = vpop.f32.mrb[0].mxu0
        %v1525 = vadd.f32 %v1408, %v1524
        %v1526 = vpop.f32.mrb[0].mxu0
        %v1527 = vadd.f32 %v1408, %v1526
        %v1528 = vpop.f32.mrb[0].mxu0
        %v1529 = vadd.f32 %v1413, %v1528
        %v1530 = vpop.f32.mrb[0].mxu0
        %v1531 = vadd.f32 %v1413, %v1530
        %1532 = vmatprep.mubr.bf16.mxu0 0
        %1533 = vmatmul.mubr.bf16.gmra.mrb[0].mxu0 %v1456
        %v1534 = vpop.f32.mrb[0].mxu0
        %v1535 = vadd.f32 %v1418, %v1534
        %v1536 = vpop.f32.mrb[0].mxu0
        %v1537 = vadd.f32 %v1418, %v1536
        %v1538 = vpop.f32.mrb[0].mxu0
        %v1539 = vadd.f32 %v1423, %v1538
        %v1540 = vpop.f32.mrb[0].mxu0
        %v1541 = vadd.f32 %v1423, %v1540
        %1542 = vdwg.mxu0
        %1543 = vmatprep.subr.bf16.mxu0 0
        %1544 = vmatpush1.bf16.msra.mxu0 %v1375
        %1545 = vmatprep.subr.bf16.mxu0 0
        %1546 = vmatpush1.bf16.msra.mxu0 %v1378
        %1547 = vmatprep.subr.bf16.mxu0 0
        %1548 = vmatpush1.bf16.msra.mxu0 %v1381
        %1549 = vmatprep.subr.bf16.mxu0 0
        %1550 = vmatpush1.bf16.msra.mxu0 %v1468
        %1551 = vmatprep.subr.bf16.mxu0 0
        %1552 = vmatpush1.bf16.msra.mxu0 0
        %1553 = vmatprep.subr.bf16.mxu0 0
        %1554 = vmatpush1.bf16.msra.mxu0 0
        %1555 = vmatprep.subr.bf16.mxu0 0
        %1556 = vmatpush1.bf16.msra.mxu0 0
        %1557 = vmatprep.subr.bf16.mxu0 0
        %1558 = vmatpush1.bf16.msra.mxu0 0
        %1559 = vmatprep.subr.bf16.mxu0 0
        %1560 = vmatpush1.bf16.msra.mxu0 0
        %1561 = vmatprep.subr.bf16.mxu0 0
        %1562 = vmatpush1.bf16.msra.mxu0 0
        %1563 = vmatprep.subr.bf16.mxu0 0
        %1564 = vmatpush1.bf16.msra.mxu0 0
        %1565 = vmatprep.subr.bf16.mxu0 0
        %1566 = vmatpush1.bf16.msra.mxu0 0
        %1567 = vmatprep.subr.bf16.mxu0 0
        %1568 = vmatpush1.bf16.msra.mxu0 0
        %1569 = vmatprep.subr.bf16.mxu0 0
        %1570 = vmatpush1.bf16.msra.mxu0 0
        %1571 = vmatprep.subr.bf16.mxu0 0
        %1572 = vmatpush1.bf16.msra.mxu0 0
        %1573 = vmatprep.subr.bf16.mxu0 0
        %1574 = vmatpush1.bf16.msra.mxu0 0
        %1575 = vmatprep.mubr.bf16.mxu0 0
        %1576 = vmatmul.mubr.bf16.gmra.mrb[0].mxu0 %v1447
        %v1577 = vpop.f32.mrb[0].mxu0
        %v1578 = vadd.f32 %v1388, %v1577
        %v1579 = vpop.f32.mrb[0].mxu0
        %v1580 = vpop.f32.mrb[0].mxu0
        %v1581 = vadd.f32 %v1393, %v1580
        %v1582 = vpop.f32.mrb[0].mxu0
        %1583 = vmatprep.mubr.bf16.mxu0 0
        %1584 = vmatmul.mubr.bf16.gmra.mrb[0].mxu0 %v1450
        %v1585 = vpop.f32.mrb[0].mxu0
        %v1586 = vadd.f32 %v1398, %v1585
        %v1587 = vpop.f32.mrb[0].mxu0
        %v1588 = vpop.f32.mrb[0].mxu0
        %v1589 = vadd.f32 %v1403, %v1588
        %v1590 = vpop.f32.mrb[0].mxu0
        %1591 = vmatprep.mubr.bf16.mxu0 0
        %1592 = vmatmul.mubr.bf16.gmra.mrb[0].mxu0 %v1453
        %v1593 = vpop.f32.mrb[0].mxu0
        %v1594 = vadd.f32 %v1408, %v1593
        %v1595 = vpop.f32.mrb[0].mxu0
        %v1596 = vpop.f32.mrb[0].mxu0
        %v1597 = vadd.f32 %v1413, %v1596
        %v1598 = vpop.f32.mrb[0].mxu0
        %1599 = vmatprep.mubr.bf16.mxu0 0
        %1600 = vmatmul.mubr.bf16.gmra.mrb[0].mxu0 %v1456
        %v1601 = vpop.f32.mrb[0].mxu0
        %v1602 = vadd.f32 %v1418, %v1601
        %v1603 = vpop.f32.mrb[0].mxu0
        %v1604 = vpop.f32.mrb[0].mxu0
        %v1605 = vadd.f32 %v1423, %v1604
        %v1606 = vpop.f32.mrb[0].mxu0
        %1607 = vdwg.mxu0
        %v1608 = vmax.f32 %v1505, 1e-06
        %v1609 = vmax.f32 %v1507, 1e-06
        %v1610 = vmax.f32 %v1578, 1e-06
        %v1611 = vmax.f32 %v1509, 1e-06
        %v1612 = vmax.f32 %v1511, 1e-06
        %v1613 = vmax.f32 %v1581, 1e-06
        %v1614 = vmax.f32 %v1515, 1e-06
        %v1615 = vmax.f32 %v1517, 1e-06
        %v1616 = vmax.f32 %v1586, 1e-06
        %v1617 = vmax.f32 %v1519, 1e-06
        %v1618 = vmax.f32 %v1521, 1e-06
        %v1619 = vmax.f32 %v1589, 1e-06
        %v1620 = vmax.f32 %v1525, 1e-06
        %v1621 = vmax.f32 %v1527, 1e-06
        %v1622 = vmax.f32 %v1594, 1e-06
        %v1623 = vmax.f32 %v1529, 1e-06
        %v1624 = vmax.f32 %v1531, 1e-06
        %v1625 = vmax.f32 %v1597, 1e-06
        %v1626 = vmax.f32 %v1535, 1e-06
        %v1627 = vmax.f32 %v1537, 1e-06
        %v1628 = vmax.f32 %v1602, 1e-06
        %v1629 = vmax.f32 %v1539, 1e-06
        %v1630 = vmax.f32 %v1541, 1e-06
        %v1631 = vmax.f32 %v1605, 1e-06
        %v1632 = vmul.f32 %v1608, %v1608
        %v1633 = vmul.f32 %v1609, %v1609
        %v1634 = vmul.f32 %v1610, %v1610
        %v1635 = vmul.f32 %v1611, %v1611
        %v1636 = vmul.f32 %v1612, %v1612
        %v1637 = vmul.f32 %v1613, %v1613
        %v1638 = vmul.f32 %v1614, %v1614
        %v1639 = vmul.f32 %v1615, %v1615
        %v1640 = vmul.f32 %v1616, %v1616
        %v1641 = vmul.f32 %v1617, %v1617
        %v1642 = vmul.f32 %v1618, %v1618
        %v1643 = vmul.f32 %v1619, %v1619
        %v1644 = vmul.f32 %v1620, %v1620
        %v1645 = vmul.f32 %v1621, %v1621
        %v1646 = vmul.f32 %v1622, %v1622
        %v1647 = vmul.f32 %v1623, %v1623
        %v1648 = vmul.f32 %v1624, %v1624
        %v1649 = vmul.f32 %v1625, %v1625
        %v1650 = vmul.f32 %v1626, %v1626
        %v1651 = vmul.f32 %v1627, %v1627
        %v1652 = vmul.f32 %v1628, %v1628
        %v1653 = vmul.f32 %v1629, %v1629
        %v1654 = vmul.f32 %v1630, %v1630
        %v1655 = vmul.f32 %v1631, %v1631
        %v1656 = vmul.f32 %v1632, %v1608
        %v1657 = vmul.f32 %v1633, %v1609
        %v1658 = vmul.f32 %v1634, %v1610
        %v1659 = vmul.f32 %v1635, %v1611
        %v1660 = vmul.f32 %v1636, %v1612
        %v1661 = vmul.f32 %v1637, %v1613
        %v1662 = vmul.f32 %v1638, %v1614
        %v1663 = vmul.f32 %v1639, %v1615
        %v1664 = vmul.f32 %v1640, %v1616
        %v1665 = vmul.f32 %v1641, %v1617
        %v1666 = vmul.f32 %v1642, %v1618
        %v1667 = vmul.f32 %v1643, %v1619
        %v1668 = vmul.f32 %v1644, %v1620
        %v1669 = vmul.f32 %v1645, %v1621
        %v1670 = vmul.f32 %v1646, %v1622
        %v1671 = vmul.f32 %v1647, %v1623
        %v1672 = vmul.f32 %v1648, %v1624
        %v1673 = vmul.f32 %v1649, %v1625
        %v1674 = vmul.f32 %v1650, %v1626
        %v1675 = vmul.f32 %v1651, %v1627
        %v1676 = vmul.f32 %v1652, %v1628
        %v1677 = vmul.f32 %v1653, %v1629
        %v1678 = vmul.f32 %v1654, %v1630
        %v1679 = vmul.f32 %v1655, %v1631
        %v1681 = vlaneseq
        %v1682 = vshrl.u32 %v1681, 7
        %v1683 = vsub.s32 0, %v1682
        %v1684 = vrot.slane %v421, %v1683
        %v1685 = vlaneseq
        %v1686 = vshrl.u32 %v1685, 7
        %v1687 = vsub.s32 1, %v1686
        %v1688 = vrot.slane %v421, %v1687
        %v1689 = vlaneseq
        %v1690 = vshrl.u32 %v1689, 7
        %v1691 = vsub.s32 2, %v1690
        %v1692 = vrot.slane %v421, %v1691
        %v1696 = vmul.f32 %v1656, %v1684
        %v1697 = vmul.f32 %v1657, %v1688
        %v1698 = vmul.f32 %v1658, %v1692
        %v1699 = vmul.f32 %v1659, %v1684
        %v1700 = vmul.f32 %v1660, %v1688
        %v1701 = vmul.f32 %v1661, %v1692
        %v1702 = vmul.f32 %v1662, %v1684
        %v1703 = vmul.f32 %v1663, %v1688
        %v1704 = vmul.f32 %v1664, %v1692
        %v1705 = vmul.f32 %v1665, %v1684
        %v1706 = vmul.f32 %v1666, %v1688
        %v1707 = vmul.f32 %v1667, %v1692
        %v1708 = vmul.f32 %v1668, %v1684
        %v1709 = vmul.f32 %v1669, %v1688
        %v1710 = vmul.f32 %v1670, %v1692
        %v1711 = vmul.f32 %v1671, %v1684
        %v1712 = vmul.f32 %v1672, %v1688
        %v1713 = vmul.f32 %v1673, %v1692
        %v1714 = vmul.f32 %v1674, %v1684
        %v1715 = vmul.f32 %v1675, %v1688
        %v1716 = vmul.f32 %v1676, %v1692
        %v1717 = vmul.f32 %v1677, %v1684
        %v1718 = vmul.f32 %v1678, %v1688
        %v1719 = vmul.f32 %v1679, %v1692
        %v1720 = vadd.f32 %v1696, %v1697
        %vm1721 = vcmask 736256
        %v1722 = vsel %vm1721, %v1698, 0.0
        %v1723 = vadd.f32 %v1720, %v1722
        %1724 = vadd.xlane.f32.xlu0 %v1723
        %v1725 = vpop.xlane.xlu0 %1724
        %v1726 = vadd.f32 %v1699, %v1700
        %v1727 = vsel %vm1721, %v1701, 0.0
        %v1728 = vadd.f32 %v1726, %v1727
        %1729 = vadd.xlane.f32.xlu0 %v1728
        %v1730 = vpop.xlane.xlu0 %1729
        %v1731 = vadd.f32 %v1702, %v1703
        %v1732 = vsel %vm1721, %v1704, 0.0
        %v1733 = vadd.f32 %v1731, %v1732
        %1734 = vadd.xlane.f32.xlu0 %v1733
        %v1735 = vpop.xlane.xlu0 %1734
        %v1736 = vadd.f32 %v1705, %v1706
        %v1737 = vsel %vm1721, %v1707, 0.0
        %v1738 = vadd.f32 %v1736, %v1737
        %1739 = vadd.xlane.f32.xlu0 %v1738
        %v1740 = vpop.xlane.xlu0 %1739
        %v1741 = vadd.f32 %v1708, %v1709
        %v1742 = vsel %vm1721, %v1710, 0.0
        %v1743 = vadd.f32 %v1741, %v1742
        %1744 = vadd.xlane.f32.xlu0 %v1743
        %v1745 = vpop.xlane.xlu0 %1744
        %v1746 = vadd.f32 %v1711, %v1712
        %v1747 = vsel %vm1721, %v1713, 0.0
        %v1748 = vadd.f32 %v1746, %v1747
        %1749 = vadd.xlane.f32.xlu0 %v1748
        %v1750 = vpop.xlane.xlu0 %1749
        %v1751 = vadd.f32 %v1714, %v1715
        %v1752 = vsel %vm1721, %v1716, 0.0
        %v1753 = vadd.f32 %v1751, %v1752
        %1754 = vadd.xlane.f32.xlu0 %v1753
        %v1755 = vpop.xlane.xlu0 %1754
        %v1756 = vadd.f32 %v1717, %v1718
        %v1757 = vsel %vm1721, %v1719, 0.0
        %v1758 = vadd.f32 %v1756, %v1757
        %1759 = vadd.xlane.f32.xlu0 %v1758
        %v1760 = vpop.xlane.xlu0 %1759
        %v1761 = vmul.f32 %v1725, 0.00390625
        %v1762 = vmul.f32 %v1730, 0.00390625
        %v1763 = vmul.f32 %v1735, 0.00390625
        %v1764 = vmul.f32 %v1740, 0.00390625
        %v1765 = vmul.f32 %v1745, 0.00390625
        %v1766 = vmul.f32 %v1750, 0.00390625
        %v1767 = vmul.f32 %v1755, 0.00390625
        %v1768 = vmul.f32 %v1760, 0.00390625
        %v1769 = vlog2.pop %v1761
        %v1770 = vmul.f32 %v1769, 0.6931472
        %v1771 = vlog2.pop %v1762
        %v1772 = vmul.f32 %v1771, 0.6931472
        %v1773 = vlog2.pop %v1763
        %v1774 = vmul.f32 %v1773, 0.6931472
        %v1775 = vlog2.pop %v1764
        %v1776 = vmul.f32 %v1775, 0.6931472
        %v1777 = vlog2.pop %v1765
        %v1778 = vmul.f32 %v1777, 0.6931472
        %v1779 = vlog2.pop %v1766
        %v1780 = vmul.f32 %v1779, 0.6931472
        %v1781 = vlog2.pop %v1767
        %v1782 = vmul.f32 %v1781, 0.6931472
        %v1783 = vlog2.pop %v1768
        %v1784 = vmul.f32 %v1783, 0.6931472
        %v1785 = vstv %s425
        %v1786 = vmul.f32 %v1770, %v1785
        %v1787 = vmul.f32 %v1772, %v1785
        %v1788 = vmul.f32 %v1774, %v1785
        %v1789 = vmul.f32 %v1776, %v1785
        %v1790 = vmul.f32 %v1778, %v1785
        %v1791 = vmul.f32 %v1780, %v1785
        %v1792 = vmul.f32 %v1782, %v1785
        %v1793 = vmul.f32 %v1784, %v1785
        %v1794 = vmul.f32 %v1786, 1.442695
        %v1795 = vpow.pop %v1794
        %v1796 = vmul.f32 %v1787, 1.442695
        %v1797 = vpow.pop %v1796
        %v1798 = vmul.f32 %v1788, 1.442695
        %v1799 = vpow.pop %v1798
        %v1800 = vmul.f32 %v1789, 1.442695
        %v1801 = vpow.pop %v1800
        %v1802 = vmul.f32 %v1790, 1.442695
        %v1803 = vpow.pop %v1802
        %v1804 = vmul.f32 %v1791, 1.442695
        %v1805 = vpow.pop %v1804
        %v1806 = vmul.f32 %v1792, 1.442695
        %v1807 = vpow.pop %v1806
        %v1808 = vmul.f32 %v1793, 1.442695
        %v1809 = vpow.pop %v1808
        %v1810 = vmul.f32 %v1795, %v404
        %v1811 = vmul.f32 %v1795, %v405
        %v1812 = vmul.f32 %v1797, %v406
        %v1813 = vmul.f32 %v1797, %v407
        %v1814 = vmul.f32 %v1799, %v408
        %v1815 = vmul.f32 %v1799, %v409
        %v1816 = vmul.f32 %v1801, %v410
        %v1817 = vmul.f32 %v1801, %v411
        %v1818 = vmul.f32 %v1803, %v412
        %v1819 = vmul.f32 %v1803, %v413
        %v1820 = vmul.f32 %v1805, %v414
        %v1821 = vmul.f32 %v1805, %v415
        %v1822 = vmul.f32 %v1807, %v416
        %v1823 = vmul.f32 %v1807, %v417
        %v1824 = vmul.f32 %v1809, %v418
        %v1825 = vmul.f32 %v1809, %v419
        %v1826 = vadd.f32 %v1810, %v1812
        %v1827 = vadd.f32 %v1826, %v1814
        %v1828 = vadd.f32 %v1827, %v1816
        %v1829 = vadd.f32 %v1828, %v1818
        %v1830 = vadd.f32 %v1829, %v1820
        %v1831 = vadd.f32 %v1830, %v1822
        %v1832 = vadd.f32 %v1831, %v1824
        %v1833 = vrot.slane %v1832, 4
        %v1834 = vadd.f32 %v1832, %v1833
        %v1835 = vrot.slane %v1834, 2
        %v1836 = vadd.f32 %v1834, %v1835
        %v1837 = vrot.slane %v1836, 1
        %v1838 = vadd.f32 %v1836, %v1837
        %v1839 = vadd.f32 %v1811, %v1813
        %v1840 = vadd.f32 %v1839, %v1815
        %v1841 = vadd.f32 %v1840, %v1817
        %v1842 = vadd.f32 %v1841, %v1819
        %v1843 = vadd.f32 %v1842, %v1821
        %v1844 = vadd.f32 %v1843, %v1823
        %v1845 = vadd.f32 %v1844, %v1825
        %v1846 = vrot.slane %v1845, 4
        %v1847 = vadd.f32 %v1845, %v1846
        %v1848 = vrot.slane %v1847, 2
        %v1849 = vadd.f32 %v1847, %v1848
        %v1850 = vrot.slane %v1849, 1
        %v1851 = vadd.f32 %v1849, %v1850
        %v1853 = vlaneseq
        %v1854 = vshrl.u32 %v1853, 7
        %v1855 = vsub.s32 0, %v1854
        %v1856 = vrot.slane %v420, %v1855
        %v1857 = vlaneseq
        %v1858 = vshrl.u32 %v1857, 7
        %v1859 = vsub.s32 1, %v1858
        %v1860 = vrot.slane %v420, %v1859
        %v1863 = vadd.f32 %v1838, %v1856
        %v1864 = vadd.f32 %v1851, %v1860
        %v1867 = vcombine.low %v1863, %v1864
        %v1869 = vunpack.c.l.s4 1966171168
        %v1870 = vunpack.c.0.s8 %v1869
        %v1871 = vlaneseq
        %v1872 = vshrl.u32 %v1871, 7
        %v1873 = vsub.s32 %v1870, %v1872
        %v1874 = vrot.slane %v1867, %v1873
        %v1876 = vunpack.c.l.s4 1966171168
        %v1877 = vunpack.c.0.s8 %v1876
        %v1878 = vlaneseq
        %v1879 = vshrl.u32 %v1878, 7
        %v1880 = vsub.s32 %v1877, %v1879
        %v1881 = vrot.slane %v1874, %v1880
        %vm1883 = vcmp.lt.s32.totalorder %v437, 256
        %vm1884 = vmand %vm438, %vm1883
        %1885 = vst.msk [vmem:[%s353] ss:$2 sm:$0x3] %vm1884, %v1881
        %v1886 = vld [vmem:[%s358] sm:$0x7]
        %v1887 = vunpack.c.l.bf16 %v1886
        %v1890 = vunpack.c.l.s4 1966171168
        %v1891 = vunpack.c.0.s8 %v1890
        %v1892 = vlaneseq
        %v1893 = vshrl.u32 %v1892, 7
        %v1894 = vsub.s32 %v1891, %v1893
        %v1895 = vrot.slane %v1887, %v1894
        %v1896 = vcombine.high %v1895, %v1895
        %1898 = vst.msk [vmem:[#allocation2] ss:$8 sm:$0x7] %vm440, %v1896
        %1899 = vst.msk [vmem:[#allocation2] ss:$8 sm:$0x0] %vm440, %v1896
        %v1900 = vld [vmem:[%s358] sm:$0x7]
        %v1901 = vunpack.c.l.bf16 %v1900
        %v1904 = vunpack.c.l.s4 1966171168
        %v1905 = vunpack.c.0.s8 %v1904
        %v1906 = vlaneseq
        %v1907 = vshrl.u32 %v1906, 7
        %v1908 = vsub.s32 %v1905, %v1907
        %v1909 = vrot.slane %v1901, %v1908
        %v1910 = vcombine.high %v1909, %v1909
        %1911 = vrot.lane.b32.xlu0 %v1910, 127
        %v1912 = vpop.permute.xlu0 %1911
        %v1913 = vrot.slane %v1912, 1
        %v1914 = vsel %vm456, %v1912, %v1913
        %1916 = vst.msk [vmem:[%s459] ss:$8 sm:$0x7] %vm440, %v1914
        %1917 = vst.msk [vmem:[%s459] ss:$8 sm:$0x0] %vm440, %v1914
        %v1918 = vld [vmem:[%s358] sm:$0x7]
        %v1919 = vunpack.c.l.bf16 %v1918
        %v1922 = vunpack.c.l.s4 1966171168
        %v1923 = vunpack.c.0.s8 %v1922
        %v1924 = vlaneseq
        %v1925 = vshrl.u32 %v1924, 7
        %v1926 = vsub.s32 %v1923, %v1925
        %v1927 = vrot.slane %v1919, %v1926
        %v1928 = vcombine.high %v1927, %v1927
        %1929 = vrot.lane.b32.xlu0 %v1928, 126
        %v1930 = vpop.permute.xlu0 %1929
        %v1931 = vrot.slane %v1930, 1
        %v1932 = vsel %vm475, %v1930, %v1931
        %1934 = vst.msk [vmem:[%s478] ss:$8 sm:$0x7] %vm440, %v1932
        %1935 = vst.msk [vmem:[%s478] ss:$8 sm:$0x0] %vm440, %v1932
        %v1936 = vld [vmem:[%s358] sm:$0x7]
        %v1937 = vunpack.c.l.bf16 %v1936
        %v1940 = vunpack.c.l.s4 1966171168
        %v1941 = vunpack.c.0.s8 %v1940
        %v1942 = vlaneseq
        %v1943 = vshrl.u32 %v1942, 7
        %v1944 = vsub.s32 %v1941, %v1943
        %v1945 = vrot.slane %v1937, %v1944
        %v1946 = vcombine.high %v1945, %v1945
        %1947 = vrot.lane.b32.xlu0 %v1946, 125
        %v1948 = vpop.permute.xlu0 %1947
        %v1949 = vrot.slane %v1948, 1
        %v1950 = vsel %vm494, %v1948, %v1949
        %1952 = vst.msk [vmem:[%s497] ss:$8 sm:$0x7] %vm440, %v1950
        %1953 = vst.msk [vmem:[%s497] ss:$8 sm:$0x0] %vm440, %v1950
        %v1954 = vld [vmem:[%s358] sm:$0x7]
        %v1955 = vunpack.c.l.bf16 %v1954
        %v1958 = vunpack.c.l.s4 1966171168
        %v1959 = vunpack.c.0.s8 %v1958
        %v1960 = vlaneseq
        %v1961 = vshrl.u32 %v1960, 7
        %v1962 = vsub.s32 %v1959, %v1961
        %v1963 = vrot.slane %v1955, %v1962
        %v1964 = vcombine.high %v1963, %v1963
        %1965 = vrot.lane.b32.xlu0 %v1964, 124
        %v1966 = vpop.permute.xlu0 %1965
        %v1967 = vrot.slane %v1966, 1
        %v1968 = vsel %vm513, %v1966, %v1967
        %1970 = vst.msk [vmem:[%s516] ss:$8 sm:$0x7] %vm440, %v1968
        %1971 = vst.msk [vmem:[%s516] ss:$8 sm:$0x0] %vm440, %v1968
        %v1972 = vld [vmem:[%s358] sm:$0x7]
        %v1973 = vunpack.c.l.bf16 %v1972
        %v1976 = vunpack.c.l.s4 1966171168
        %v1977 = vunpack.c.0.s8 %v1976
        %v1978 = vlaneseq
        %v1979 = vshrl.u32 %v1978, 7
        %v1980 = vsub.s32 %v1977, %v1979
        %v1981 = vrot.slane %v1973, %v1980
        %v1982 = vcombine.high %v1981, %v1981
        %1983 = vrot.lane.b32.xlu0 %v1982, 123
        %v1984 = vpop.permute.xlu0 %1983
        %v1985 = vrot.slane %v1984, 1
        %v1986 = vsel %vm532, %v1984, %v1985
        %1988 = vst.msk [vmem:[%s535] ss:$8 sm:$0x7] %vm440, %v1986
        %1989 = vst.msk [vmem:[%s535] ss:$8 sm:$0x0] %vm440, %v1986
        %v1990 = vld [vmem:[%s358] sm:$0x7]
        %v1991 = vunpack.c.l.bf16 %v1990
        %v1994 = vunpack.c.l.s4 1966171168
        %v1995 = vunpack.c.0.s8 %v1994
        %v1996 = vlaneseq
        %v1997 = vshrl.u32 %v1996, 7
        %v1998 = vsub.s32 %v1995, %v1997
        %v1999 = vrot.slane %v1991, %v1998
        %v2000 = vcombine.high %v1999, %v1999
        %2001 = vrot.lane.b32.xlu0 %v2000, 122
        %v2002 = vpop.permute.xlu0 %2001
        %v2003 = vrot.slane %v2002, 1
        %v2004 = vsel %vm551, %v2002, %v2003
        %2006 = vst.msk [vmem:[%s554] ss:$8 sm:$0x7] %vm440, %v2004
        %2007 = vst.msk [vmem:[%s554] ss:$8 sm:$0x0] %vm440, %v2004
        %v2008 = vld [vmem:[%s358] sm:$0x7]
        %v2009 = vunpack.c.l.bf16 %v2008
        %v2012 = vunpack.c.l.s4 1966171168
        %v2013 = vunpack.c.0.s8 %v2012
        %v2014 = vlaneseq
        %v2015 = vshrl.u32 %v2014, 7
        %v2016 = vsub.s32 %v2013, %v2015
        %v2017 = vrot.slane %v2009, %v2016
        %v2018 = vcombine.high %v2017, %v2017
        %2019 = vrot.lane.b32.xlu0 %v2018, 106
        %v2020 = vpop.permute.xlu0 %2019
        %v2021 = vrot.slane %v2020, 1
        %v2022 = vsel %vm570, %v2020, %v2021
        %2024 = vst.msk [vmem:[%s573] ss:$8 sm:$0x7] %vm440, %v2022
        %2025 = vst.msk [vmem:[%s573] ss:$8 sm:$0x0] %vm440, %v2022
        %v2026 = vld [vmem:[%s358] sm:$0x7]
        %v2027 = vunpack.c.l.bf16 %v2026
        %v2030 = vunpack.c.l.s4 1966171168
        %v2031 = vunpack.c.0.s8 %v2030
        %v2032 = vlaneseq
        %v2033 = vshrl.u32 %v2032, 7
        %v2034 = vsub.s32 %v2031, %v2033
        %v2035 = vrot.slane %v2027, %v2034
        %v2036 = vcombine.high %v2035, %v2035
        %2037 = vrot.lane.b32.xlu0 %v2036, 105
        %v2038 = vpop.permute.xlu0 %2037
        %v2039 = vrot.slane %v2038, 1
        %v2040 = vsel %vm589, %v2038, %v2039
        %2042 = vst.msk [vmem:[%s592] ss:$8 sm:$0x7] %vm440, %v2040
        %2043 = vst.msk [vmem:[%s592] ss:$8 sm:$0x0] %vm440, %v2040
        %v2044 = vld [vmem:[%s358] sm:$0x7]
        %v2045 = vunpack.c.l.bf16 %v2044
        %v2048 = vunpack.c.l.s4 1966171168
        %v2049 = vunpack.c.0.s8 %v2048
        %v2050 = vlaneseq
        %v2051 = vshrl.u32 %v2050, 7
        %v2052 = vsub.s32 %v2049, %v2051
        %v2053 = vrot.slane %v2045, %v2052
        %v2054 = vcombine.high %v2053, %v2053
        %2055 = vrot.lane.b32.xlu0 %v2054, 104
        %v2056 = vpop.permute.xlu0 %2055
        %v2057 = vrot.slane %v2056, 1
        %v2058 = vsel %vm608, %v2056, %v2057
        %2060 = vst.msk [vmem:[%s611] ss:$8 sm:$0x7] %vm440, %v2058
        %2061 = vst.msk [vmem:[%s611] ss:$8 sm:$0x0] %vm440, %v2058
        %v2062 = vld [vmem:[%s358] sm:$0x7]
        %v2063 = vunpack.c.l.bf16 %v2062
        %v2066 = vunpack.c.l.s4 1966171168
        %v2067 = vunpack.c.0.s8 %v2066
        %v2068 = vlaneseq
        %v2069 = vshrl.u32 %v2068, 7
        %v2070 = vsub.s32 %v2067, %v2069
        %v2071 = vrot.slane %v2063, %v2070
        %v2072 = vcombine.high %v2071, %v2071
        %2073 = vrot.lane.b32.xlu0 %v2072, 103
        %v2074 = vpop.permute.xlu0 %2073
        %v2075 = vrot.slane %v2074, 1
        %v2076 = vsel %vm627, %v2074, %v2075
        %2078 = vst.msk [vmem:[%s630] ss:$8 sm:$0x7] %vm440, %v2076
        %2079 = vst.msk [vmem:[%s630] ss:$8 sm:$0x0] %vm440, %v2076
        %v2080 = vld [vmem:[%s358] sm:$0x7]
        %v2081 = vunpack.c.l.bf16 %v2080
        %v2084 = vunpack.c.l.s4 1966171168
        %v2085 = vunpack.c.0.s8 %v2084
        %v2086 = vlaneseq
        %v2087 = vshrl.u32 %v2086, 7
        %v2088 = vsub.s32 %v2085, %v2087
        %v2089 = vrot.slane %v2081, %v2088
        %v2090 = vcombine.high %v2089, %v2089
        %2091 = vrot.lane.b32.xlu0 %v2090, 102
        %v2092 = vpop.permute.xlu0 %2091
        %v2093 = vrot.slane %v2092, 1
        %v2094 = vsel %vm646, %v2092, %v2093
        %2096 = vst.msk [vmem:[%s649] ss:$8 sm:$0x7] %vm440, %v2094
        %2097 = vst.msk [vmem:[%s649] ss:$8 sm:$0x0] %vm440, %v2094
        %v2098 = vld [vmem:[%s358] sm:$0x7]
        %v2099 = vunpack.c.l.bf16 %v2098
        %v2102 = vunpack.c.l.s4 1966171168
        %v2103 = vunpack.c.0.s8 %v2102
        %v2104 = vlaneseq
        %v2105 = vshrl.u32 %v2104, 7
        %v2106 = vsub.s32 %v2103, %v2105
        %v2107 = vrot.slane %v2099, %v2106
        %v2108 = vcombine.high %v2107, %v2107
        %2109 = vrot.lane.b32.xlu0 %v2108, 101
        %v2110 = vpop.permute.xlu0 %2109
        %v2111 = vrot.slane %v2110, 1
        %v2112 = vsel %vm665, %v2110, %v2111
        %2114 = vst.msk [vmem:[%s668] ss:$8 sm:$0x7] %vm440, %v2112
        %2115 = vst.msk [vmem:[%s668] ss:$8 sm:$0x0] %vm440, %v2112
        %v2116 = vld [vmem:[%s358] sm:$0x7]
        %v2117 = vunpack.c.l.bf16 %v2116
        %v2120 = vunpack.c.l.s4 1966171168
        %v2121 = vunpack.c.0.s8 %v2120
        %v2122 = vlaneseq
        %v2123 = vshrl.u32 %v2122, 7
        %v2124 = vsub.s32 %v2121, %v2123
        %v2125 = vrot.slane %v2117, %v2124
        %v2126 = vcombine.high %v2125, %v2125
        %2127 = vrot.lane.b32.xlu0 %v2126, 100
        %v2128 = vpop.permute.xlu0 %2127
        %v2129 = vrot.slane %v2128, 1
        %v2130 = vsel %vm684, %v2128, %v2129
        %2132 = vst.msk [vmem:[%s687] ss:$8 sm:$0x7] %vm440, %v2130
        %2133 = vst.msk [vmem:[%s687] ss:$8 sm:$0x0] %vm440, %v2130
        %v2134 = vld [vmem:[%s358] sm:$0xf]
        %v2135 = vunpack.c.l.bf16 %v2134
        %v2138 = vunpack.c.l.s4 1966171168
        %v2139 = vunpack.c.0.s8 %v2138
        %v2140 = vlaneseq
        %v2141 = vshrl.u32 %v2140, 7
        %v2142 = vsub.s32 %v2139, %v2141
        %v2143 = vrot.slane %v2135, %v2142
        %v2144 = vcombine.high %v2143, %v2143
        %2145 = vrot.lane.b32.xlu0 %v2144, 84
        %v2146 = vpop.permute.xlu0 %2145
        %v2147 = vrot.slane %v2146, 1
        %v2148 = vsel %vm703, %v2146, %v2147
        %2150 = vst.msk [vmem:[%s706] ss:$8 sm:$0x7] %vm440, %v2148
        %2151 = vst.msk [vmem:[%s706] ss:$8 sm:$0x0] %vm440, %v2148
        %v2152 = vld [vmem:[%s358] sm:$0xf]
        %v2153 = vunpack.c.l.bf16 %v2152
        %v2156 = vunpack.c.l.s4 1966171168
        %v2157 = vunpack.c.0.s8 %v2156
        %v2158 = vlaneseq
        %v2159 = vshrl.u32 %v2158, 7
        %v2160 = vsub.s32 %v2157, %v2159
        %v2161 = vrot.slane %v2153, %v2160
        %v2162 = vcombine.high %v2161, %v2161
        %2163 = vrot.lane.b32.xlu0 %v2162, 83
        %v2164 = vpop.permute.xlu0 %2163
        %v2165 = vrot.slane %v2164, 1
        %v2166 = vsel %vm722, %v2164, %v2165
        %2168 = vst.msk [vmem:[%s725] ss:$8 sm:$0x7] %vm440, %v2166
        %2169 = vst.msk [vmem:[%s725] ss:$8 sm:$0x0] %vm440, %v2166
        %v2170 = vld [vmem:[%s358] sm:$0xf]
        %v2171 = vunpack.c.l.bf16 %v2170
        %v2174 = vunpack.c.l.s4 1966171168
        %v2175 = vunpack.c.0.s8 %v2174
        %v2176 = vlaneseq
        %v2177 = vshrl.u32 %v2176, 7
        %v2178 = vsub.s32 %v2175, %v2177
        %v2179 = vrot.slane %v2171, %v2178
        %v2180 = vcombine.high %v2179, %v2179
        %2181 = vrot.lane.b32.xlu0 %v2180, 82
        %v2182 = vpop.permute.xlu0 %2181
        %v2183 = vrot.slane %v2182, 1
        %v2184 = vsel %vm741, %v2182, %v2183
        %2186 = vst.msk [vmem:[%s744] ss:$8 sm:$0x7] %vm440, %v2184
        %2187 = vst.msk [vmem:[%s744] ss:$8 sm:$0x0] %vm440, %v2184
        %v2188 = vld [vmem:[%s358] sm:$0xf]
        %v2189 = vunpack.c.l.bf16 %v2188
        %v2192 = vunpack.c.l.s4 1966171168
        %v2193 = vunpack.c.0.s8 %v2192
        %v2194 = vlaneseq
        %v2195 = vshrl.u32 %v2194, 7
        %v2196 = vsub.s32 %v2193, %v2195
        %v2197 = vrot.slane %v2189, %v2196
        %v2198 = vcombine.high %v2197, %v2197
        %2199 = vrot.lane.b32.xlu0 %v2198, 81
        %v2200 = vpop.permute.xlu0 %2199
        %v2201 = vrot.slane %v2200, 1
        %v2202 = vsel %vm760, %v2200, %v2201
        %2204 = vst.msk [vmem:[%s763] ss:$8 sm:$0x7] %vm440, %v2202
        %2205 = vst.msk [vmem:[%s763] ss:$8 sm:$0x0] %vm440, %v2202
        %v2206 = vld [vmem:[%s358] sm:$0xf]
        %v2207 = vunpack.c.l.bf16 %v2206
        %v2210 = vunpack.c.l.s4 1966171168
        %v2211 = vunpack.c.0.s8 %v2210
        %v2212 = vlaneseq
        %v2213 = vshrl.u32 %v2212, 7
        %v2214 = vsub.s32 %v2211, %v2213
        %v2215 = vrot.slane %v2207, %v2214
        %v2216 = vcombine.high %v2215, %v2215
        %2217 = vrot.lane.b32.xlu0 %v2216, 80
        %v2218 = vpop.permute.xlu0 %2217
        %v2219 = vrot.slane %v2218, 1
        %v2220 = vsel %vm779, %v2218, %v2219
        %2222 = vst.msk [vmem:[%s782] ss:$8 sm:$0x7] %vm440, %v2220
        %2223 = vst.msk [vmem:[%s782] ss:$8 sm:$0x0] %vm440, %v2220
        %v2224 = vld [vmem:[%s358] sm:$0xf]
        %v2225 = vunpack.c.l.bf16 %v2224
        %v2228 = vunpack.c.l.s4 1966171168
        %v2229 = vunpack.c.0.s8 %v2228
        %v2230 = vlaneseq
        %v2231 = vshrl.u32 %v2230, 7
        %v2232 = vsub.s32 %v2229, %v2231
        %v2233 = vrot.slane %v2225, %v2232
        %v2234 = vcombine.high %v2233, %v2233
        %2235 = vrot.lane.b32.xlu0 %v2234, 79
        %v2236 = vpop.permute.xlu0 %2235
        %v2237 = vrot.slane %v2236, 1
        %v2238 = vsel %vm798, %v2236, %v2237
        %2240 = vst.msk [vmem:[%s801] ss:$8 sm:$0x7] %vm440, %v2238
        %2241 = vst.msk [vmem:[%s801] ss:$8 sm:$0x0] %vm440, %v2238
        %v2242 = vld [vmem:[%s358] sm:$0xf]
        %v2243 = vunpack.c.l.bf16 %v2242
        %v2246 = vunpack.c.l.s4 1966171168
        %v2247 = vunpack.c.0.s8 %v2246
        %v2248 = vlaneseq
        %v2249 = vshrl.u32 %v2248, 7
        %v2250 = vsub.s32 %v2247, %v2249
        %v2251 = vrot.slane %v2243, %v2250
        %v2252 = vcombine.high %v2251, %v2251
        %2253 = vrot.lane.b32.xlu0 %v2252, 78
        %v2254 = vpop.permute.xlu0 %2253
        %v2255 = vrot.slane %v2254, 1
        %v2256 = vsel %vm817, %v2254, %v2255
        %2258 = vst.msk [vmem:[%s820] ss:$8 sm:$0x7] %vm440, %v2256
        %2259 = vst.msk [vmem:[%s820] ss:$8 sm:$0x0] %vm440, %v2256
        %v2260 = vld [vmem:[%s358] sm:$0xf]
        %v2261 = vunpack.c.l.bf16 %v2260
        %v2264 = vunpack.c.l.s4 1966171168
        %v2265 = vunpack.c.0.s8 %v2264
        %v2266 = vlaneseq
        %v2267 = vshrl.u32 %v2266, 7
        %v2268 = vsub.s32 %v2265, %v2267
        %v2269 = vrot.slane %v2261, %v2268
        %v2270 = vcombine.high %v2269, %v2269
        %2271 = vrot.lane.b32.xlu0 %v2270, 62
        %v2272 = vpop.permute.xlu0 %2271
        %v2273 = vrot.slane %v2272, 1
        %v2274 = vsel %vm836, %v2272, %v2273
        %2276 = vst.msk [vmem:[%s839] ss:$8 sm:$0x7] %vm440, %v2274
        %2277 = vst.msk [vmem:[%s839] ss:$8 sm:$0x0] %vm440, %v2274
        %v2278 = vld [vmem:[%s358] sm:$0xf]
        %v2279 = vunpack.c.l.bf16 %v2278
        %v2282 = vunpack.c.l.s4 1966171168
        %v2283 = vunpack.c.0.s8 %v2282
        %v2284 = vlaneseq
        %v2285 = vshrl.u32 %v2284, 7
        %v2286 = vsub.s32 %v2283, %v2285
        %v2287 = vrot.slane %v2279, %v2286
        %v2288 = vcombine.high %v2287, %v2287
        %2289 = vrot.lane.b32.xlu0 %v2288, 61
        %v2290 = vpop.permute.xlu0 %2289
        %v2291 = vrot.slane %v2290, 1
        %v2292 = vsel %vm855, %v2290, %v2291
        %2294 = vst.msk [vmem:[%s858] ss:$8 sm:$0x7] %vm440, %v2292
        %2295 = vst.msk [vmem:[%s858] ss:$8 sm:$0x0] %vm440, %v2292
        %v2296 = vld [vmem:[%s358] sm:$0xf]
        %v2297 = vunpack.c.l.bf16 %v2296
        %v2300 = vunpack.c.l.s4 1966171168
        %v2301 = vunpack.c.0.s8 %v2300
        %v2302 = vlaneseq
        %v2303 = vshrl.u32 %v2302, 7
        %v2304 = vsub.s32 %v2301, %v2303
        %v2305 = vrot.slane %v2297, %v2304
        %v2306 = vcombine.high %v2305, %v2305
        %2307 = vrot.lane.b32.xlu0 %v2306, 60
        %v2308 = vpop.permute.xlu0 %2307
        %v2309 = vrot.slane %v2308, 1
        %v2310 = vsel %vm874, %v2308, %v2309
        %2312 = vst.msk [vmem:[%s877] ss:$8 sm:$0x7] %vm440, %v2310
        %2313 = vst.msk [vmem:[%s877] ss:$8 sm:$0x0] %vm440, %v2310
        %v2314 = vld [vmem:[%s358] sm:$0xf]
        %v2315 = vunpack.c.l.bf16 %v2314
        %v2318 = vunpack.c.l.s4 1966171168
        %v2319 = vunpack.c.0.s8 %v2318
        %v2320 = vlaneseq
        %v2321 = vshrl.u32 %v2320, 7
        %v2322 = vsub.s32 %v2319, %v2321
        %v2323 = vrot.slane %v2315, %v2322
        %v2324 = vcombine.high %v2323, %v2323
        %2325 = vrot.lane.b32.xlu0 %v2324, 59
        %v2326 = vpop.permute.xlu0 %2325
        %v2327 = vrot.slane %v2326, 1
        %v2328 = vsel %vm893, %v2326, %v2327
        %2330 = vst.msk [vmem:[%s896] ss:$8 sm:$0x7] %vm440, %v2328
        %2331 = vst.msk [vmem:[%s896] ss:$8 sm:$0x0] %vm440, %v2328
        %v2332 = vld [vmem:[%s358] sm:$0xf]
        %v2333 = vunpack.c.l.bf16 %v2332
        %v2336 = vunpack.c.l.s4 1966171168
        %v2337 = vunpack.c.0.s8 %v2336
        %v2338 = vlaneseq
        %v2339 = vshrl.u32 %v2338, 7
        %v2340 = vsub.s32 %v2337, %v2339
        %v2341 = vrot.slane %v2333, %v2340
        %v2342 = vcombine.high %v2341, %v2341
        %2343 = vrot.lane.b32.xlu0 %v2342, 58
        %v2344 = vpop.permute.xlu0 %2343
        %v2345 = vrot.slane %v2344, 1
        %v2346 = vsel %vm912, %v2344, %v2345
        %2348 = vst.msk [vmem:[%s915] ss:$8 sm:$0x7] %vm440, %v2346
        %2349 = vst.msk [vmem:[%s915] ss:$8 sm:$0x0] %vm440, %v2346
        %v2350 = vld [vmem:[%s358] sm:$0xf]
        %v2351 = vunpack.c.l.bf16 %v2350
        %v2354 = vunpack.c.l.s4 1966171168
        %v2355 = vunpack.c.0.s8 %v2354
        %v2356 = vlaneseq
        %v2357 = vshrl.u32 %v2356, 7
        %v2358 = vsub.s32 %v2355, %v2357
        %v2359 = vrot.slane %v2351, %v2358
        %v2360 = vcombine.high %v2359, %v2359
        %2361 = vrot.lane.b32.xlu0 %v2360, 57
        %v2362 = vpop.permute.xlu0 %2361
        %v2363 = vrot.slane %v2362, 1
        %v2364 = vsel %vm931, %v2362, %v2363
        %2366 = vst.msk [vmem:[%s934] ss:$8 sm:$0x7] %vm440, %v2364
        %2367 = vst.msk [vmem:[%s934] ss:$8 sm:$0x0] %vm440, %v2364
        %v2368 = vld [vmem:[%s358] sm:$0xf]
        %v2369 = vunpack.c.l.bf16 %v2368
        %v2372 = vunpack.c.l.s4 1966171168
        %v2373 = vunpack.c.0.s8 %v2372
        %v2374 = vlaneseq
        %v2375 = vshrl.u32 %v2374, 7
        %v2376 = vsub.s32 %v2373, %v2375
        %v2377 = vrot.slane %v2369, %v2376
        %v2378 = vcombine.high %v2377, %v2377
        %2379 = vrot.lane.b32.xlu0 %v2378, 56
        %v2380 = vpop.permute.xlu0 %2379
        %v2381 = vrot.slane %v2380, 1
        %v2382 = vsel %vm950, %v2380, %v2381
        %2384 = vst.msk [vmem:[%s953] ss:$8 sm:$0x7] %vm440, %v2382
        %2385 = vst.msk [vmem:[%s953] ss:$8 sm:$0x0] %vm440, %v2382
        %v2386 = vld [vmem:[%s358] sm:$0xf]
        %v2387 = vunpack.c.l.bf16 %v2386
        %v2390 = vunpack.c.l.s4 1966171168
        %v2391 = vunpack.c.0.s8 %v2390
        %v2392 = vlaneseq
        %v2393 = vshrl.u32 %v2392, 7
        %v2394 = vsub.s32 %v2391, %v2393
        %v2395 = vrot.slane %v2387, %v2394
        %v2396 = vcombine.high %v2395, %v2395
        %2397 = vrot.lane.b32.xlu0 %v2396, 40
        %v2398 = vpop.permute.xlu0 %2397
        %v2399 = vrot.slane %v2398, 1
        %v2400 = vsel %vm969, %v2398, %v2399
        %2402 = vst.msk [vmem:[%s972] ss:$8 sm:$0x7] %vm440, %v2400
        %2403 = vst.msk [vmem:[%s972] ss:$8 sm:$0x0] %vm440, %v2400
        %v2404 = vld [vmem:[%s358] sm:$0xf]
        %v2405 = vunpack.c.l.bf16 %v2404
        %v2408 = vunpack.c.l.s4 1966171168
        %v2409 = vunpack.c.0.s8 %v2408
        %v2410 = vlaneseq
        %v2411 = vshrl.u32 %v2410, 7
        %v2412 = vsub.s32 %v2409, %v2411
        %v2413 = vrot.slane %v2405, %v2412
        %v2414 = vcombine.high %v2413, %v2413
        %2415 = vrot.lane.b32.xlu0 %v2414, 39
        %v2416 = vpop.permute.xlu0 %2415
        %v2417 = vrot.slane %v2416, 1
        %v2418 = vsel %vm988, %v2416, %v2417
        %2420 = vst.msk [vmem:[%s991] ss:$8 sm:$0x7] %vm440, %v2418
        %2421 = vst.msk [vmem:[%s991] ss:$8 sm:$0x0] %vm440, %v2418
        %v2422 = vld [vmem:[%s358] sm:$0xf]
        %v2423 = vunpack.c.l.bf16 %v2422
        %v2426 = vunpack.c.l.s4 1966171168
        %v2427 = vunpack.c.0.s8 %v2426
        %v2428 = vlaneseq
        %v2429 = vshrl.u32 %v2428, 7
        %v2430 = vsub.s32 %v2427, %v2429
        %v2431 = vrot.slane %v2423, %v2430
        %v2432 = vcombine.high %v2431, %v2431
        %2433 = vrot.lane.b32.xlu0 %v2432, 38
        %v2434 = vpop.permute.xlu0 %2433
        %v2435 = vrot.slane %v2434, 1
        %v2436 = vsel %vm1007, %v2434, %v2435
        %2438 = vst.msk [vmem:[%s1010] ss:$8 sm:$0x7] %vm440, %v2436
        %2439 = vst.msk [vmem:[%s1010] ss:$8 sm:$0x0] %vm440, %v2436
        %v2440 = vld [vmem:[%s358] sm:$0xf]
        %v2441 = vunpack.c.l.bf16 %v2440
        %v2444 = vunpack.c.l.s4 1966171168
        %v2445 = vunpack.c.0.s8 %v2444
        %v2446 = vlaneseq
        %v2447 = vshrl.u32 %v2446, 7
        %v2448 = vsub.s32 %v2445, %v2447
        %v2449 = vrot.slane %v2441, %v2448
        %v2450 = vcombine.high %v2449, %v2449
        %2451 = vrot.lane.b32.xlu0 %v2450, 37
        %v2452 = vpop.permute.xlu0 %2451
        %v2453 = vrot.slane %v2452, 1
        %v2454 = vsel %vm1026, %v2452, %v2453
        %2456 = vst.msk [vmem:[%s1029] ss:$8 sm:$0x7] %vm440, %v2454
        %2457 = vst.msk [vmem:[%s1029] ss:$8 sm:$0x0] %vm440, %v2454
        %v2458 = vld [vmem:[%s358] sm:$0xf]
        %v2459 = vunpack.c.l.bf16 %v2458
        %v2462 = vunpack.c.l.s4 1966171168
        %v2463 = vunpack.c.0.s8 %v2462
        %v2464 = vlaneseq
        %v2465 = vshrl.u32 %v2464, 7
        %v2466 = vsub.s32 %v2463, %v2465
        %v2467 = vrot.slane %v2459, %v2466
        %v2468 = vcombine.high %v2467, %v2467
        %2469 = vrot.lane.b32.xlu0 %v2468, 36
        %v2470 = vpop.permute.xlu0 %2469
        %v2471 = vrot.slane %v2470, 1
        %v2472 = vsel %vm1045, %v2470, %v2471
        %2474 = vst.msk [vmem:[%s1048] ss:$8 sm:$0x7] %vm440, %v2472
        %2475 = vst.msk [vmem:[%s1048] ss:$8 sm:$0x0] %vm440, %v2472
        %v2476 = vld [vmem:[%s358] sm:$0xf]
        %v2477 = vunpack.c.l.bf16 %v2476
        %v2480 = vunpack.c.l.s4 1966171168
        %v2481 = vunpack.c.0.s8 %v2480
        %v2482 = vlaneseq
        %v2483 = vshrl.u32 %v2482, 7
        %v2484 = vsub.s32 %v2481, %v2483
        %v2485 = vrot.slane %v2477, %v2484
        %v2486 = vcombine.high %v2485, %v2485
        %2487 = vrot.lane.b32.xlu0 %v2486, 35
        %v2488 = vpop.permute.xlu0 %2487
        %v2489 = vrot.slane %v2488, 1
        %v2490 = vsel %vm1064, %v2488, %v2489
        %2492 = vst.msk [vmem:[%s1067] ss:$8 sm:$0x7] %vm440, %v2490
        %2493 = vst.msk [vmem:[%s1067] ss:$8 sm:$0x0] %vm440, %v2490
        %v2494 = vld [vmem:[%s358] sm:$0xf]
        %v2495 = vunpack.c.l.bf16 %v2494
        %v2498 = vunpack.c.l.s4 1966171168
        %v2499 = vunpack.c.0.s8 %v2498
        %v2500 = vlaneseq
        %v2501 = vshrl.u32 %v2500, 7
        %v2502 = vsub.s32 %v2499, %v2501
        %v2503 = vrot.slane %v2495, %v2502
        %v2504 = vcombine.high %v2503, %v2503
        %2505 = vrot.lane.b32.xlu0 %v2504, 34
        %v2506 = vpop.permute.xlu0 %2505
        %v2507 = vrot.slane %v2506, 1
        %v2508 = vsel %vm1083, %v2506, %v2507
        %2510 = vst.msk [vmem:[%s1086] ss:$8 sm:$0x7] %vm440, %v2508
        %2511 = vst.msk [vmem:[%s1086] ss:$8 sm:$0x0] %vm440, %v2508
        %v2512 = vld [vmem:[%s358] sm:$0xf]
        %v2513 = vunpack.c.l.bf16 %v2512
        %v2516 = vunpack.c.l.s4 1966171168
        %v2517 = vunpack.c.0.s8 %v2516
        %v2518 = vlaneseq
        %v2519 = vshrl.u32 %v2518, 7
        %v2520 = vsub.s32 %v2517, %v2519
        %v2521 = vrot.slane %v2513, %v2520
        %v2522 = vcombine.high %v2521, %v2521
        %2523 = vrot.lane.b32.xlu0 %v2522, 18
        %v2524 = vpop.permute.xlu0 %2523
        %v2525 = vrot.slane %v2524, 1
        %v2526 = vsel %vm1102, %v2524, %v2525
        %2528 = vst.msk [vmem:[%s1105] ss:$8 sm:$0x7] %vm440, %v2526
        %2529 = vst.msk [vmem:[%s1105] ss:$8 sm:$0x0] %vm440, %v2526
        %v2530 = vld [vmem:[%s358] sm:$0xf]
        %v2531 = vunpack.c.l.bf16 %v2530
        %v2534 = vunpack.c.l.s4 1966171168
        %v2535 = vunpack.c.0.s8 %v2534
        %v2536 = vlaneseq
        %v2537 = vshrl.u32 %v2536, 7
        %v2538 = vsub.s32 %v2535, %v2537
        %v2539 = vrot.slane %v2531, %v2538
        %v2540 = vcombine.high %v2539, %v2539
        %2541 = vrot.lane.b32.xlu0 %v2540, 17
        %v2542 = vpop.permute.xlu0 %2541
        %v2543 = vrot.slane %v2542, 1
        %v2544 = vsel %vm1121, %v2542, %v2543
        %2546 = vst.msk [vmem:[%s1124] ss:$8 sm:$0x7] %vm440, %v2544
        %2547 = vst.msk [vmem:[%s1124] ss:$8 sm:$0x0] %vm440, %v2544
        %v2548 = vld [vmem:[%s358] sm:$0xf]
        %v2549 = vunpack.c.l.bf16 %v2548
        %v2552 = vunpack.c.l.s4 1966171168
        %v2553 = vunpack.c.0.s8 %v2552
        %v2554 = vlaneseq
        %v2555 = vshrl.u32 %v2554, 7
        %v2556 = vsub.s32 %v2553, %v2555
        %v2557 = vrot.slane %v2549, %v2556
        %v2558 = vcombine.high %v2557, %v2557
        %2559 = vrot.lane.b32.xlu0 %v2558, 16
        %v2560 = vpop.permute.xlu0 %2559
        %v2561 = vrot.slane %v2560, 1
        %v2562 = vsel %vm1140, %v2560, %v2561
        %2564 = vst.msk [vmem:[%s1143] ss:$8 sm:$0x7] %vm440, %v2562
        %2565 = vst.msk [vmem:[%s1143] ss:$8 sm:$0x0] %vm440, %v2562
        %v2566 = vld [vmem:[%s358] sm:$0xf]
        %v2567 = vunpack.c.l.bf16 %v2566
        %v2570 = vunpack.c.l.s4 1966171168
        %v2571 = vunpack.c.0.s8 %v2570
        %v2572 = vlaneseq
        %v2573 = vshrl.u32 %v2572, 7
        %v2574 = vsub.s32 %v2571, %v2573
        %v2575 = vrot.slane %v2567, %v2574
        %v2576 = vcombine.high %v2575, %v2575
        %2577 = vrot.lane.b32.xlu0 %v2576, 15
        %v2578 = vpop.permute.xlu0 %2577
        %v2579 = vrot.slane %v2578, 1
        %v2580 = vsel %vm1159, %v2578, %v2579
        %2582 = vst.msk [vmem:[%s1162] ss:$8 sm:$0x7] %vm440, %v2580
        %2583 = vst.msk [vmem:[%s1162] ss:$8 sm:$0x0] %vm440, %v2580
        %v2584 = vld [vmem:[%s358] sm:$0xf]
        %v2585 = vunpack.c.l.bf16 %v2584
        %v2588 = vunpack.c.l.s4 1966171168
        %v2589 = vunpack.c.0.s8 %v2588
        %v2590 = vlaneseq
        %v2591 = vshrl.u32 %v2590, 7
        %v2592 = vsub.s32 %v2589, %v2591
        %v2593 = vrot.slane %v2585, %v2592
        %v2594 = vcombine.high %v2593, %v2593
        %2595 = vrot.lane.b32.xlu0 %v2594, 14
        %v2596 = vpop.permute.xlu0 %2595
        %v2597 = vrot.slane %v2596, 1
        %v2598 = vsel %vm1178, %v2596, %v2597
        %2600 = vst.msk [vmem:[%s1181] ss:$8 sm:$0x7] %vm440, %v2598
        %2601 = vst.msk [vmem:[%s1181] ss:$8 sm:$0x0] %vm440, %v2598
        %v2602 = vld [vmem:[%s358] sm:$0xf]
        %v2603 = vunpack.c.l.bf16 %v2602
        %v2606 = vunpack.c.l.s4 1966171168
        %v2607 = vunpack.c.0.s8 %v2606
        %v2608 = vlaneseq
        %v2609 = vshrl.u32 %v2608, 7
        %v2610 = vsub.s32 %v2607, %v2609
        %v2611 = vrot.slane %v2603, %v2610
        %v2612 = vcombine.high %v2611, %v2611
        %2613 = vrot.lane.b32.xlu0 %v2612, 13
        %v2614 = vpop.permute.xlu0 %2613
        %v2615 = vrot.slane %v2614, 1
        %v2616 = vsel %vm1197, %v2614, %v2615
        %2618 = vst.msk [vmem:[%s1200] ss:$8 sm:$0x7] %vm440, %v2616
        %2619 = vst.msk [vmem:[%s1200] ss:$8 sm:$0x0] %vm440, %v2616
        %v2620 = vld [vmem:[%s358] sm:$0xf]
        %v2621 = vunpack.c.l.bf16 %v2620
        %v2624 = vunpack.c.l.s4 1966171168
        %v2625 = vunpack.c.0.s8 %v2624
        %v2626 = vlaneseq
        %v2627 = vshrl.u32 %v2626, 7
        %v2628 = vsub.s32 %v2625, %v2627
        %v2629 = vrot.slane %v2621, %v2628
        %v2630 = vcombine.high %v2629, %v2629
        %2631 = vrot.lane.b32.xlu0 %v2630, 12
        %v2632 = vpop.permute.xlu0 %2631
        %v2633 = vrot.slane %v2632, 1
        %v2634 = vsel %vm1216, %v2632, %v2633
        %2636 = vst.msk [vmem:[%s1219] ss:$8 sm:$0x7] %vm440, %v2634
        %2637 = vst.msk [vmem:[%s1219] ss:$8 sm:$0x0] %vm440, %v2634
        %v2638 = vld [vmem:[%s358 + $0x1] sm:$0x7]
        %v2639 = vunpack.c.l.bf16 %v2638
        %v2642 = vunpack.c.l.s4 1966171168
        %v2643 = vunpack.c.0.s8 %v2642
        %v2644 = vlaneseq
        %v2645 = vshrl.u32 %v2644, 7
        %v2646 = vsub.s32 %v2643, %v2645
        %v2647 = vrot.slane %v2639, %v2646
        %v2648 = vcombine.high %v2647, %v2647
        %2649 = vrot.lane.b32.xlu0 %v2648, 124
        %v2650 = vpop.permute.xlu0 %2649
        %v2651 = vrot.slane %v2650, 1
        %v2652 = vsel %vm513, %v2650, %v2651
        %2654 = vst.msk [vmem:[%s1237] ss:$8 sm:$0x7] %vm440, %v2652
        %2655 = vst.msk [vmem:[%s1237] ss:$8 sm:$0x0] %vm440, %v2652
        %v2656 = vld [vmem:[%s358 + $0x1] sm:$0x7]
        %v2657 = vunpack.c.l.bf16 %v2656
        %v2660 = vunpack.c.l.s4 1966171168
        %v2661 = vunpack.c.0.s8 %v2660
        %v2662 = vlaneseq
        %v2663 = vshrl.u32 %v2662, 7
        %v2664 = vsub.s32 %v2661, %v2663
        %v2665 = vrot.slane %v2657, %v2664
        %v2666 = vcombine.high %v2665, %v2665
        %2667 = vrot.lane.b32.xlu0 %v2666, 123
        %v2668 = vpop.permute.xlu0 %2667
        %v2669 = vrot.slane %v2668, 1
        %v2670 = vsel %vm532, %v2668, %v2669
        %2672 = vst.msk [vmem:[%s1255] ss:$8 sm:$0x7] %vm440, %v2670
        %2673 = vst.msk [vmem:[%s1255] ss:$8 sm:$0x0] %vm440, %v2670
        %v2674 = vld [vmem:[%s358 + $0x1] sm:$0x7]
        %v2675 = vunpack.c.l.bf16 %v2674
        %v2678 = vunpack.c.l.s4 1966171168
        %v2679 = vunpack.c.0.s8 %v2678
        %v2680 = vlaneseq
        %v2681 = vshrl.u32 %v2680, 7
        %v2682 = vsub.s32 %v2679, %v2681
        %v2683 = vrot.slane %v2675, %v2682
        %v2684 = vcombine.high %v2683, %v2683
        %2685 = vrot.lane.b32.xlu0 %v2684, 122
        %v2686 = vpop.permute.xlu0 %2685
        %v2687 = vrot.slane %v2686, 1
        %v2688 = vsel %vm551, %v2686, %v2687
        %2690 = vst.msk [vmem:[%s1273] ss:$8 sm:$0x7] %vm440, %v2688
        %2691 = vst.msk [vmem:[%s1273] ss:$8 sm:$0x0] %vm440, %v2688
        %v2692 = vld [vmem:[%s358 + $0x1] sm:$0x7]
        %v2693 = vunpack.c.l.bf16 %v2692
        %v2696 = vunpack.c.l.s4 1966171168
        %v2697 = vunpack.c.0.s8 %v2696
        %v2698 = vlaneseq
        %v2699 = vshrl.u32 %v2698, 7
        %v2700 = vsub.s32 %v2697, %v2699
        %v2701 = vrot.slane %v2693, %v2700
        %v2702 = vcombine.high %v2701, %v2701
        %2703 = vrot.lane.b32.xlu0 %v2702, 121
        %v2704 = vpop.permute.xlu0 %2703
        %v2705 = vrot.slane %v2704, 1
        %v2706 = vsel %vm1289, %v2704, %v2705
        %2708 = vst.msk [vmem:[%s1292] ss:$8 sm:$0x7] %vm440, %v2706
        %2709 = vst.msk [vmem:[%s1292] ss:$8 sm:$0x0] %vm440, %v2706
        %v2710 = vld [vmem:[%s358 + $0x1] sm:$0x7]
        %v2711 = vunpack.c.l.bf16 %v2710
        %v2714 = vunpack.c.l.s4 1966171168
        %v2715 = vunpack.c.0.s8 %v2714
        %v2716 = vlaneseq
        %v2717 = vshrl.u32 %v2716, 7
        %v2718 = vsub.s32 %v2715, %v2717
        %v2719 = vrot.slane %v2711, %v2718
        %v2720 = vcombine.high %v2719, %v2719
        %2721 = vrot.lane.b32.xlu0 %v2720, 120
        %v2722 = vpop.permute.xlu0 %2721
        %v2723 = vrot.slane %v2722, 1
        %v2724 = vsel %vm1308, %v2722, %v2723
        %2726 = vst.msk [vmem:[%s1311] ss:$8 sm:$0x7] %vm440, %v2724
        %2727 = vst.msk [vmem:[%s1311] ss:$8 sm:$0x0] %vm440, %v2724
        %v2728 = vld [vmem:[%s358 + $0x1] sm:$0x7]
        %v2729 = vunpack.c.l.bf16 %v2728
        %v2732 = vunpack.c.l.s4 1966171168
        %v2733 = vunpack.c.0.s8 %v2732
        %v2734 = vlaneseq
        %v2735 = vshrl.u32 %v2734, 7
        %v2736 = vsub.s32 %v2733, %v2735
        %v2737 = vrot.slane %v2729, %v2736
        %v2738 = vcombine.high %v2737, %v2737
        %2739 = vrot.lane.b32.xlu0 %v2738, 119
        %v2740 = vpop.permute.xlu0 %2739
        %v2741 = vrot.slane %v2740, 1
        %v2742 = vsel %vm1327, %v2740, %v2741
        %2744 = vst.msk [vmem:[%s1330] ss:$8 sm:$0x7] %vm440, %v2742
        %2745 = vst.msk [vmem:[%s1330] ss:$8 sm:$0x0] %vm440, %v2742
        %v2746 = vld [vmem:[%s358 + $0x1] sm:$0x7]
        %v2747 = vunpack.c.l.bf16 %v2746
        %v2750 = vunpack.c.l.s4 1966171168
        %v2751 = vunpack.c.0.s8 %v2750
        %v2752 = vlaneseq
        %v2753 = vshrl.u32 %v2752, 7
        %v2754 = vsub.s32 %v2751, %v2753
        %v2755 = vrot.slane %v2747, %v2754
        %v2756 = vcombine.high %v2755, %v2755
        %2757 = vrot.lane.b32.xlu0 %v2756, 118
        %v2758 = vpop.permute.xlu0 %2757
        %v2759 = vrot.slane %v2758, 1
        %v2760 = vsel %vm1346, %v2758, %v2759
        %2762 = vst.msk [vmem:[%s1349] ss:$8 sm:$0x7] %vm440, %v2760
        %2763 = vst.msk [vmem:[%s1349] ss:$8 sm:$0x0] %vm440, %v2760
        %v2764 = vld [vmem:[#allocation2] sm:$0xff]
        %v2765 = vld [vmem:[#allocation2 + $0x8] sm:$0xff]
        %v2766 = vld [vmem:[#allocation2 + $0x10] sm:$0xff]
        %v2767 = vld [vmem:[#allocation2 + $0x18] sm:$0xff]
        %v2768 = vld [vmem:[#allocation2 + $0x20] sm:$0xff]
        %v2769 = vld [vmem:[#allocation2 + $0x28] sm:$0xff]
        %v2770 = vld [vmem:[#allocation2 + $0x30] sm:$0xff]
        %v2771 = vld [vmem:[#allocation2 + $0x38] sm:$0xff]
        %v2772 = vld [vmem:[#allocation2 + $0x40] sm:$0xff]
        %v2773 = vld [vmem:[#allocation2 + $0x48] sm:$0xff]
        %v2774 = vld [vmem:[#allocation2 + $0x50] sm:$0xff]
        %v2775 = vld [vmem:[#allocation2 + $0x58] sm:$0xff]
        %v2776 = vld [vmem:[#allocation2 + $0x60] sm:$0xff]
        %v2777 = vld [vmem:[#allocation2 + $0x68] sm:$0xff]
        %v2778 = vld [vmem:[#allocation2 + $0x70] sm:$0xff]
        %v2779 = vld [vmem:[#allocation2 + $0x78] sm:$0xff]
        %v2780 = vld [vmem:[#allocation2 + $0x80] sm:$0xff]
        %v2781 = vld [vmem:[#allocation2 + $0x88] sm:$0xff]
        %v2782 = vld [vmem:[#allocation2 + $0x90] sm:$0x1]
        %v2783 = vld [vmem:[#allocation2 + $0x98] sm:$0x1]
        %v2784 = vld [vmem:[#allocation2 + $0xa0] sm:$0x1]
        %v2785 = vpack.c.bf16 %v2767, %v2764
        %v2786 = vpack.c.bf16 %v2768, %v2765
        %v2787 = vpack.c.bf16 %v2769, %v2766
        %v2788 = vpack.c.bf16 %v2773, %v2770
        %v2789 = vpack.c.bf16 %v2774, %v2771
        %v2790 = vpack.c.bf16 %v2775, %v2772
        %v2791 = vpack.c.bf16 %v2779, %v2776
        %v2792 = vpack.c.bf16 %v2780, %v2777
        %v2793 = vpack.c.bf16 %v2781, %v2778
        %v2794 = vpack.c.bf16 %v2782, %v2782
        %v2795 = vpack.c.bf16 %v2783, %v2783
        %v2796 = vpack.c.bf16 %v2784, %v2784
        %v2798 = vand.u32 %v2794, %v1460
        %v2801 = vand.u32 %v2795, %v1460
        %v2804 = vand.u32 %v2796, %v1460
        %2806 = vmatprep.subr.bf16.mxu0 %v2786
        %2807 = vmatpush1.bf16.msra.mxu0 %v2785
        %2808 = vmatprep.subr.bf16.mxu0 %v2789
        %2809 = vmatpush1.bf16.msra.mxu0 %v2788
        %2810 = vmatprep.subr.bf16.mxu0 %v2792
        %2811 = vmatpush1.bf16.msra.mxu0 %v2791
        %2812 = vmatprep.subr.bf16.mxu0 %v2801
        %2813 = vmatpush1.bf16.msra.mxu0 %v2798
        %2814 = vmatprep.subr.bf16.mxu0 0
        %2815 = vmatpush1.bf16.msra.mxu0 0
        %2816 = vmatprep.subr.bf16.mxu0 0
        %2817 = vmatpush1.bf16.msra.mxu0 0
        %2818 = vmatprep.subr.bf16.mxu0 0
        %2819 = vmatpush1.bf16.msra.mxu0 0
        %2820 = vmatprep.subr.bf16.mxu0 0
        %2821 = vmatpush1.bf16.msra.mxu0 0
        %2822 = vmatprep.subr.bf16.mxu0 0
        %2823 = vmatpush1.bf16.msra.mxu0 0
        %2824 = vmatprep.subr.bf16.mxu0 0
        %2825 = vmatpush1.bf16.msra.mxu0 0
        %2826 = vmatprep.subr.bf16.mxu0 0
        %2827 = vmatpush1.bf16.msra.mxu0 0
        %2828 = vmatprep.subr.bf16.mxu0 0
        %2829 = vmatpush1.bf16.msra.mxu0 0
        %2830 = vmatprep.subr.bf16.mxu0 0
        %2831 = vmatpush1.bf16.msra.mxu0 0
        %2832 = vmatprep.subr.bf16.mxu0 0
        %2833 = vmatpush1.bf16.msra.mxu0 0
        %2834 = vmatprep.subr.bf16.mxu0 0
        %2835 = vmatpush1.bf16.msra.mxu0 0
        %2836 = vmatprep.subr.bf16.mxu0 0
        %2837 = vmatpush1.bf16.msra.mxu0 0
        %2838 = vmatprep.mubr.bf16.mxu0 0
        %2839 = vmatmul.mubr.bf16.gmra.mrb[0].mxu0 %v1447
        %v2840 = vpop.f32.mrb[0].mxu0
        %v2841 = vadd.f32 %v1388, %v2840
        %v2842 = vpop.f32.mrb[0].mxu0
        %v2843 = vadd.f32 %v1388, %v2842
        %v2844 = vpop.f32.mrb[0].mxu0
        %v2845 = vadd.f32 %v1393, %v2844
        %v2846 = vpop.f32.mrb[0].mxu0
        %v2847 = vadd.f32 %v1393, %v2846
        %2848 = vmatprep.mubr.bf16.mxu0 0
        %2849 = vmatmul.mubr.bf16.gmra.mrb[0].mxu0 %v1450
        %v2850 = vpop.f32.mrb[0].mxu0
        %v2851 = vadd.f32 %v1398, %v2850
        %v2852 = vpop.f32.mrb[0].mxu0
        %v2853 = vadd.f32 %v1398, %v2852
        %v2854 = vpop.f32.mrb[0].mxu0
        %v2855 = vadd.f32 %v1403, %v2854
        %v2856 = vpop.f32.mrb[0].mxu0
        %v2857 = vadd.f32 %v1403, %v2856
        %2858 = vmatprep.mubr.bf16.mxu0 0
        %2859 = vmatmul.mubr.bf16.gmra.mrb[0].mxu0 %v1453
        %v2860 = vpop.f32.mrb[0].mxu0
        %v2861 = vadd.f32 %v1408, %v2860
        %v2862 = vpop.f32.mrb[0].mxu0
        %v2863 = vadd.f32 %v1408, %v2862
        %v2864 = vpop.f32.mrb[0].mxu0
        %v2865 = vadd.f32 %v1413, %v2864
        %v2866 = vpop.f32.mrb[0].mxu0
        %v2867 = vadd.f32 %v1413, %v2866
        %2868 = vmatprep.mubr.bf16.mxu0 0
        %2869 = vmatmul.mubr.bf16.gmra.mrb[0].mxu0 %v1456
        %v2870 = vpop.f32.mrb[0].mxu0
        %v2871 = vadd.f32 %v1418, %v2870
        %v2872 = vpop.f32.mrb[0].mxu0
        %v2873 = vadd.f32 %v1418, %v2872
        %v2874 = vpop.f32.mrb[0].mxu0
        %v2875 = vadd.f32 %v1423, %v2874
        %v2876 = vpop.f32.mrb[0].mxu0
        %v2877 = vadd.f32 %v1423, %v2876
        %2878 = vdwg.mxu0
        %2879 = vmatprep.subr.bf16.mxu0 0
        %2880 = vmatpush1.bf16.msra.mxu0 %v2787
        %2881 = vmatprep.subr.bf16.mxu0 0
        %2882 = vmatpush1.bf16.msra.mxu0 %v2790
        %2883 = vmatprep.subr.bf16.mxu0 0
        %2884 = vmatpush1.bf16.msra.mxu0 %v2793
        %2885 = vmatprep.subr.bf16.mxu0 0
        %2886 = vmatpush1.bf16.msra.mxu0 %v2804
        %2887 = vmatprep.subr.bf16.mxu0 0
        %2888 = vmatpush1.bf16.msra.mxu0 0
        %2889 = vmatprep.subr.bf16.mxu0 0
        %2890 = vmatpush1.bf16.msra.mxu0 0
        %2891 = vmatprep.subr.bf16.mxu0 0
        %2892 = vmatpush1.bf16.msra.mxu0 0
        %2893 = vmatprep.subr.bf16.mxu0 0
        %2894 = vmatpush1.bf16.msra.mxu0 0
        %2895 = vmatprep.subr.bf16.mxu0 0
        %2896 = vmatpush1.bf16.msra.mxu0 0
        %2897 = vmatprep.subr.bf16.mxu0 0
        %2898 = vmatpush1.bf16.msra.mxu0 0
        %2899 = vmatprep.subr.bf16.mxu0 0
        %2900 = vmatpush1.bf16.msra.mxu0 0
        %2901 = vmatprep.subr.bf16.mxu0 0
        %2902 = vmatpush1.bf16.msra.mxu0 0
        %2903 = vmatprep.subr.bf16.mxu0 0
        %2904 = vmatpush1.bf16.msra.mxu0 0
        %2905 = vmatprep.subr.bf16.mxu0 0
        %2906 = vmatpush1.bf16.msra.mxu0 0
        %2907 = vmatprep.subr.bf16.mxu0 0
        %2908 = vmatpush1.bf16.msra.mxu0 0
        %2909 = vmatprep.subr.bf16.mxu0 0
        %2910 = vmatpush1.bf16.msra.mxu0 0
        %2911 = vmatprep.mubr.bf16.mxu0 0
        %2912 = vmatmul.mubr.bf16.gmra.mrb[0].mxu0 %v1447
        %v2913 = vpop.f32.mrb[0].mxu0
        %v2914 = vadd.f32 %v1388, %v2913
        %v2915 = vpop.f32.mrb[0].mxu0
        %v2916 = vpop.f32.mrb[0].mxu0
        %v2917 = vadd.f32 %v1393, %v2916
        %v2918 = vpop.f32.mrb[0].mxu0
        %2919 = vmatprep.mubr.bf16.mxu0 0
        %2920 = vmatmul.mubr.bf16.gmra.mrb[0].mxu0 %v1450
        %v2921 = vpop.f32.mrb[0].mxu0
        %v2922 = vadd.f32 %v1398, %v2921
        %v2923 = vpop.f32.mrb[0].mxu0
        %v2924 = vpop.f32.mrb[0].mxu0
        %v2925 = vadd.f32 %v1403, %v2924
        %v2926 = vpop.f32.mrb[0].mxu0
        %2927 = vmatprep.mubr.bf16.mxu0 0
        %2928 = vmatmul.mubr.bf16.gmra.mrb[0].mxu0 %v1453
        %v2929 = vpop.f32.mrb[0].mxu0
        %v2930 = vadd.f32 %v1408, %v2929
        %v2931 = vpop.f32.mrb[0].mxu0
        %v2932 = vpop.f32.mrb[0].mxu0
        %v2933 = vadd.f32 %v1413, %v2932
        %v2934 = vpop.f32.mrb[0].mxu0
        %2935 = vmatprep.mubr.bf16.mxu0 0
        %2936 = vmatmul.mubr.bf16.gmra.mrb[0].mxu0 %v1456
        %v2937 = vpop.f32.mrb[0].mxu0
        %v2938 = vadd.f32 %v1418, %v2937
        %v2939 = vpop.f32.mrb[0].mxu0
        %v2940 = vpop.f32.mrb[0].mxu0
        %v2941 = vadd.f32 %v1423, %v2940
        %v2942 = vpop.f32.mrb[0].mxu0
        %2943 = vdwg.mxu0
        %v2944 = vmax.f32 %v2841, 1e-06
        %v2945 = vmax.f32 %v2843, 1e-06
        %v2946 = vmax.f32 %v2914, 1e-06
        %v2947 = vmax.f32 %v2845, 1e-06
        %v2948 = vmax.f32 %v2847, 1e-06
        %v2949 = vmax.f32 %v2917, 1e-06
        %v2950 = vmax.f32 %v2851, 1e-06
        %v2951 = vmax.f32 %v2853, 1e-06
        %v2952 = vmax.f32 %v2922, 1e-06
        %v2953 = vmax.f32 %v2855, 1e-06
        %v2954 = vmax.f32 %v2857, 1e-06
        %v2955 = vmax.f32 %v2925, 1e-06
        %v2956 = vmax.f32 %v2861, 1e-06
        %v2957 = vmax.f32 %v2863, 1e-06
        %v2958 = vmax.f32 %v2930, 1e-06
        %v2959 = vmax.f32 %v2865, 1e-06
        %v2960 = vmax.f32 %v2867, 1e-06
        %v2961 = vmax.f32 %v2933, 1e-06
        %v2962 = vmax.f32 %v2871, 1e-06
        %v2963 = vmax.f32 %v2873, 1e-06
        %v2964 = vmax.f32 %v2938, 1e-06
        %v2965 = vmax.f32 %v2875, 1e-06
        %v2966 = vmax.f32 %v2877, 1e-06
        %v2967 = vmax.f32 %v2941, 1e-06
        %v2968 = vmul.f32 %v2944, %v2944
        %v2969 = vmul.f32 %v2945, %v2945
        %v2970 = vmul.f32 %v2946, %v2946
        %v2971 = vmul.f32 %v2947, %v2947
        %v2972 = vmul.f32 %v2948, %v2948
        %v2973 = vmul.f32 %v2949, %v2949
        %v2974 = vmul.f32 %v2950, %v2950
        %v2975 = vmul.f32 %v2951, %v2951
        %v2976 = vmul.f32 %v2952, %v2952
        %v2977 = vmul.f32 %v2953, %v2953
        %v2978 = vmul.f32 %v2954, %v2954
        %v2979 = vmul.f32 %v2955, %v2955
        %v2980 = vmul.f32 %v2956, %v2956
        %v2981 = vmul.f32 %v2957, %v2957
        %v2982 = vmul.f32 %v2958, %v2958
        %v2983 = vmul.f32 %v2959, %v2959
        %v2984 = vmul.f32 %v2960, %v2960
        %v2985 = vmul.f32 %v2961, %v2961
        %v2986 = vmul.f32 %v2962, %v2962
        %v2987 = vmul.f32 %v2963, %v2963
        %v2988 = vmul.f32 %v2964, %v2964
        %v2989 = vmul.f32 %v2965, %v2965
        %v2990 = vmul.f32 %v2966, %v2966
        %v2991 = vmul.f32 %v2967, %v2967
        %v2992 = vmul.f32 %v2968, %v2944
        %v2993 = vmul.f32 %v2969, %v2945
        %v2994 = vmul.f32 %v2970, %v2946
        %v2995 = vmul.f32 %v2971, %v2947
        %v2996 = vmul.f32 %v2972, %v2948
        %v2997 = vmul.f32 %v2973, %v2949
        %v2998 = vmul.f32 %v2974, %v2950
        %v2999 = vmul.f32 %v2975, %v2951
        %v3000 = vmul.f32 %v2976, %v2952
        %v3001 = vmul.f32 %v2977, %v2953
        %v3002 = vmul.f32 %v2978, %v2954
        %v3003 = vmul.f32 %v2979, %v2955
        %v3004 = vmul.f32 %v2980, %v2956
        %v3005 = vmul.f32 %v2981, %v2957
        %v3006 = vmul.f32 %v2982, %v2958
        %v3007 = vmul.f32 %v2983, %v2959
        %v3008 = vmul.f32 %v2984, %v2960
        %v3009 = vmul.f32 %v2985, %v2961
        %v3010 = vmul.f32 %v2986, %v2962
        %v3011 = vmul.f32 %v2987, %v2963
        %v3012 = vmul.f32 %v2988, %v2964
        %v3013 = vmul.f32 %v2989, %v2965
        %v3014 = vmul.f32 %v2990, %v2966
        %v3015 = vmul.f32 %v2991, %v2967
        %v3016 = vmul.f32 %v2992, %v1684
        %v3017 = vmul.f32 %v2993, %v1688
        %v3018 = vmul.f32 %v2994, %v1692
        %v3019 = vmul.f32 %v2995, %v1684
        %v3020 = vmul.f32 %v2996, %v1688
        %v3021 = vmul.f32 %v2997, %v1692
        %v3022 = vmul.f32 %v2998, %v1684
        %v3023 = vmul.f32 %v2999, %v1688
        %v3024 = vmul.f32 %v3000, %v1692
        %v3025 = vmul.f32 %v3001, %v1684
        %v3026 = vmul.f32 %v3002, %v1688
        %v3027 = vmul.f32 %v3003, %v1692
        %v3028 = vmul.f32 %v3004, %v1684
        %v3029 = vmul.f32 %v3005, %v1688
        %v3030 = vmul.f32 %v3006, %v1692
        %v3031 = vmul.f32 %v3007, %v1684
        %v3032 = vmul.f32 %v3008, %v1688
        %v3033 = vmul.f32 %v3009, %v1692
        %v3034 = vmul.f32 %v3010, %v1684
        %v3035 = vmul.f32 %v3011, %v1688
        %v3036 = vmul.f32 %v3012, %v1692
        %v3037 = vmul.f32 %v3013, %v1684
        %v3038 = vmul.f32 %v3014, %v1688
        %v3039 = vmul.f32 %v3015, %v1692
        %v3040 = vadd.f32 %v3016, %v3017
        %v3041 = vsel %vm1721, %v3018, 0.0
        %v3042 = vadd.f32 %v3040, %v3041
        %3043 = vadd.xlane.f32.xlu0 %v3042
        %v3044 = vpop.xlane.xlu0 %3043
        %v3045 = vadd.f32 %v3019, %v3020
        %v3046 = vsel %vm1721, %v3021, 0.0
        %v3047 = vadd.f32 %v3045, %v3046
        %3048 = vadd.xlane.f32.xlu0 %v3047
        %v3049 = vpop.xlane.xlu0 %3048
        %v3050 = vadd.f32 %v3022, %v3023
        %v3051 = vsel %vm1721, %v3024, 0.0
        %v3052 = vadd.f32 %v3050, %v3051
        %3053 = vadd.xlane.f32.xlu0 %v3052
        %v3054 = vpop.xlane.xlu0 %3053
        %v3055 = vadd.f32 %v3025, %v3026
        %v3056 = vsel %vm1721, %v3027, 0.0
        %v3057 = vadd.f32 %v3055, %v3056
        %3058 = vadd.xlane.f32.xlu0 %v3057
        %v3059 = vpop.xlane.xlu0 %3058
        %v3060 = vadd.f32 %v3028, %v3029
        %v3061 = vsel %vm1721, %v3030, 0.0
        %v3062 = vadd.f32 %v3060, %v3061
        %3063 = vadd.xlane.f32.xlu0 %v3062
        %v3064 = vpop.xlane.xlu0 %3063
        %v3065 = vadd.f32 %v3031, %v3032
        %v3066 = vsel %vm1721, %v3033, 0.0
        %v3067 = vadd.f32 %v3065, %v3066
        %3068 = vadd.xlane.f32.xlu0 %v3067
        %v3069 = vpop.xlane.xlu0 %3068
        %v3070 = vadd.f32 %v3034, %v3035
        %v3071 = vsel %vm1721, %v3036, 0.0
        %v3072 = vadd.f32 %v3070, %v3071
        %3073 = vadd.xlane.f32.xlu0 %v3072
        %v3074 = vpop.xlane.xlu0 %3073
        %v3075 = vadd.f32 %v3037, %v3038
        %v3076 = vsel %vm1721, %v3039, 0.0
        %v3077 = vadd.f32 %v3075, %v3076
        %3078 = vadd.xlane.f32.xlu0 %v3077
        %v3079 = vpop.xlane.xlu0 %3078
        %v3080 = vmul.f32 %v3044, 0.00390625
        %v3081 = vmul.f32 %v3049, 0.00390625
        %v3082 = vmul.f32 %v3054, 0.00390625
        %v3083 = vmul.f32 %v3059, 0.00390625
        %v3084 = vmul.f32 %v3064, 0.00390625
        %v3085 = vmul.f32 %v3069, 0.00390625
        %v3086 = vmul.f32 %v3074, 0.00390625
        %v3087 = vmul.f32 %v3079, 0.00390625
        %v3088 = vlog2.pop %v3080
        %v3089 = vmul.f32 %v3088, 0.6931472
        %v3090 = vlog2.pop %v3081
        %v3091 = vmul.f32 %v3090, 0.6931472
        %v3092 = vlog2.pop %v3082
        %v3093 = vmul.f32 %v3092, 0.6931472
        %v3094 = vlog2.pop %v3083
        %v3095 = vmul.f32 %v3094, 0.6931472
        %v3096 = vlog2.pop %v3084
        %v3097 = vmul.f32 %v3096, 0.6931472
        %v3098 = vlog2.pop %v3085
        %v3099 = vmul.f32 %v3098, 0.6931472
        %v3100 = vlog2.pop %v3086
        %v3101 = vmul.f32 %v3100, 0.6931472
        %v3102 = vlog2.pop %v3087
        %v3103 = vmul.f32 %v3102, 0.6931472
        %v3104 = vmul.f32 %v3089, %v1785
        %v3105 = vmul.f32 %v3091, %v1785
        %v3106 = vmul.f32 %v3093, %v1785
        %v3107 = vmul.f32 %v3095, %v1785
        %v3108 = vmul.f32 %v3097, %v1785
        %v3109 = vmul.f32 %v3099, %v1785
        %v3110 = vmul.f32 %v3101, %v1785
        %v3111 = vmul.f32 %v3103, %v1785
        %v3112 = vmul.f32 %v3104, 1.442695
        %v3113 = vpow.pop %v3112
        %v3114 = vmul.f32 %v3105, 1.442695
        %v3115 = vpow.pop %v3114
        %v3116 = vmul.f32 %v3106, 1.442695
        %v3117 = vpow.pop %v3116
        %v3118 = vmul.f32 %v3107, 1.442695
        %v3119 = vpow.pop %v3118
        %v3120 = vmul.f32 %v3108, 1.442695
        %v3121 = vpow.pop %v3120
        %v3122 = vmul.f32 %v3109, 1.442695
        %v3123 = vpow.pop %v3122
        %v3124 = vmul.f32 %v3110, 1.442695
        %v3125 = vpow.pop %v3124
        %v3126 = vmul.f32 %v3111, 1.442695
        %v3127 = vpow.pop %v3126
        %v3128 = vmul.f32 %v3113, %v404
        %v3129 = vmul.f32 %v3113, %v405
        %v3130 = vmul.f32 %v3115, %v406
        %v3131 = vmul.f32 %v3115, %v407
        %v3132 = vmul.f32 %v3117, %v408
        %v3133 = vmul.f32 %v3117, %v409
        %v3134 = vmul.f32 %v3119, %v410
        %v3135 = vmul.f32 %v3119, %v411
        %v3136 = vmul.f32 %v3121, %v412
        %v3137 = vmul.f32 %v3121, %v413
        %v3138 = vmul.f32 %v3123, %v414
        %v3139 = vmul.f32 %v3123, %v415
        %v3140 = vmul.f32 %v3125, %v416
        %v3141 = vmul.f32 %v3125, %v417
        %v3142 = vmul.f32 %v3127, %v418
        %v3143 = vmul.f32 %v3127, %v419
        %v3144 = vadd.f32 %v3128, %v3130
        %v3145 = vadd.f32 %v3144, %v3132
        %v3146 = vadd.f32 %v3145, %v3134
        %v3147 = vadd.f32 %v3146, %v3136
        %v3148 = vadd.f32 %v3147, %v3138
        %v3149 = vadd.f32 %v3148, %v3140
        %v3150 = vadd.f32 %v3149, %v3142
        %v3151 = vrot.slane %v3150, 4
        %v3152 = vadd.f32 %v3150, %v3151
        %v3153 = vrot.slane %v3152, 2
        %v3154 = vadd.f32 %v3152, %v3153
        %v3155 = vrot.slane %v3154, 1
        %v3156 = vadd.f32 %v3154, %v3155
        %v3157 = vadd.f32 %v3129, %v3131
        %v3158 = vadd.f32 %v3157, %v3133
        %v3159 = vadd.f32 %v3158, %v3135
        %v3160 = vadd.f32 %v3159, %v3137
        %v3161 = vadd.f32 %v3160, %v3139
        %v3162 = vadd.f32 %v3161, %v3141
        %v3163 = vadd.f32 %v3162, %v3143
        %v3164 = vrot.slane %v3163, 4
        %v3165 = vadd.f32 %v3163, %v3164
        %v3166 = vrot.slane %v3165, 2
        %v3167 = vadd.f32 %v3165, %v3166
        %v3168 = vrot.slane %v3167, 1
        %v3169 = vadd.f32 %v3167, %v3168
        %v3170 = vadd.f32 %v3156, %v1856
        %v3171 = vadd.f32 %v3169, %v1860
        %v3174 = vcombine.low %v3170, %v3171
        %v3176 = vunpack.c.l.s4 1966171168
        %v3177 = vunpack.c.0.s8 %v3176
        %v3178 = vlaneseq
        %v3179 = vshrl.u32 %v3178, 7
        %v3180 = vsub.s32 %v3177, %v3179
        %v3181 = vrot.slane %v3174, %v3180
        %v3183 = vunpack.c.l.s4 1966171168
        %v3184 = vunpack.c.0.s8 %v3183
        %v3185 = vlaneseq
        %v3186 = vshrl.u32 %v3185, 7
        %v3187 = vsub.s32 %v3184, %v3186
        %v3188 = vrot.slane %v3181, %v3187
        %s3190 = scalar_lea.vmem %s353, 1 [#allocation8]
        %3191 = vst.msk [vmem:[%s3190] ss:$2 sm:$0x3] %vm1884, %v3188
        %s3192 = sand.u32 %s211, 1
        %s3193 = scalar_lea.sflag [#allocation6], %s3192
        %s3194 = sand.u32 %s211, 1
        %s3195 = smul.addr %s3194, 4
        %s3196 = scalar_lea.vmem [#allocation8], %s3195
        // Predicated region
        $region53: #{tpu_custom_call.1} parent=47 // pred_check
          %p3197 = pneg %p221
        $region54: #{tpu_custom_call.1} parent=47 // pred_check_branch
          %3199 = sbr.rel (%p3197) target = $region56
        $region55: #{tpu_custom_call.1} parent=47 // pred_region
          %s3201 = ssub.s32 64, 64
          %3202 = vsyncadd %s3193, %s3201
          %s3203 = smul.addr %s29, 2
          %s3204 = smul.addr %s3203, 32
          %s3205 = scalar_lea.hbm %s8, %s3204
          %s3207 = sshll.u32 %s3196, 4
          %s3208 = int_to_ptr.vmem [resolvable:$true] %s3207
          %3210 = dma.vmem_to_hbm [thread:$0]  %s3208, 64, %s3205, %s3193
        $region56: #{tpu_custom_call.1} parent=47 // pred_fallthru
          _
      $region48: #{tpu_custom_call.1} parent=5 // pred_fallthru
        _
      %p3211 = scmp.le.s32.totalorder 2, %s24
      // Predicated region
      $region57: #{tpu_custom_call.1} parent=5 // pred_check
        %p3212 = pneg %p3211
      $region58: #{tpu_custom_call.1} parent=5 // pred_check_branch
        %3214 = sbr.rel (%p3212) target = $region60
      $region59: #{tpu_custom_call.1} parent=5 // pred_region
        %s3215 = ssub.s32 %s24, 2
        // Predicated region
        $region61: #{tpu_custom_call.1} parent=59 // pred_check
          %p3216 = pneg %p227
        $region62: #{tpu_custom_call.1} parent=59 // pred_check_branch
          %3218 = sbr.rel (%p3216) target = $region64
        $region63: #{tpu_custom_call.1} parent=59 // pred_region
          %s3219 = sand.u32 %s212, 1
          %s3220 = scalar_lea.sflag [#allocation6], %s3219
          %s3221 = sand.u32 %s212, 1
          %s3222 = smul.addr %s3221, 4
          %s3223 = scalar_lea.vmem [#allocation8], %s3222
          %3224 = dma.done %s3220, 64
        $region64: #{tpu_custom_call.1} parent=59 // pred_fallthru
          _
      $region60: #{tpu_custom_call.1} parent=5 // pred_fallthru
        _
    $region6: #{tpu_custom_call.1} parent=1 // loop_footer
      %s28 = sadd.s32 1, %s24
    $region7: #{tpu_custom_call.1} parent=1 // loop_footer_branch
      %23 = sbr.rel target = $region3
    $region8: #{tpu_custom_call.1} parent=1 // loop_exit
      _
    %3225 = vsyncpa [#allocation6], 1
    %s3226 = scalar_lea.sflag [#allocation6], 1
    %3227 = vsyncpa %s3226, 1
    %3228 = vsyncpa [#allocation7], 1
    %s3229 = scalar_lea.sflag [#allocation7], 1
    %3230 = vsyncpa %s3229, 1

</llo_original>
